<compile_context>
chip_gen: v7x
topology: tpu7x:2x2x1
jax: 0.10.0
libtpu: 0.0.40
codegen_flags: <defaults>
</compile_context>

<pallas_src>
import jax
import jax.numpy as jnp
from jax import lax
from jax.experimental import pallas as pl
from jax.experimental.pallas import tpu as pltpu

VMEM_SPEC = pl.BlockSpec(memory_space=pltpu.MemorySpace.VMEM)


# ----------------------------------------------------------------------------
# Fused forward kernel factory (static dims captured by closure).
# ----------------------------------------------------------------------------
def make_feature_lstm_kernel(*, S, B, H, L, T):
    f32 = jnp.float32

    def kernel(*refs):
        it = iter(refs)
        feat_ref = next(it)          # (S*B, F)   time-major, row = t*B + b
        mask_ref = next(it)          # (S*B, 1)   1.0 where t < len(b)
        len_ref = next(it)           # (B, 1)     int32 sequence lengths
        pw_ref = next(it)            # (F, E)
        pb_ref = next(it)            # (1, E)
        layer_refs = [(next(it), next(it), next(it)) for _ in range(L)]
        #   per layer: wih_both (I, 8H), b_both (1, 8H), whh_both (H, 8H)
        tagw_ref = next(it)          # (2*H*L, T)
        tagb_ref = next(it)          # (1, T)
        transT_ref = next(it)        # (T, T)  transT[j, i] = trans[i -> j]
        tag_ref = next(it)           # out: (B, S) int32
        score_ref = next(it)         # out: (B, 1) f32
        lstm_ref = next(it)          # scratch: (S*B, 2*H*L) f32 hidden-state slab

        # ---- feature projection + length mask: one GEMM over all timesteps
        x = jnp.dot(feat_ref[...], pw_ref[...], preferred_element_type=f32)
        x = (x + pb_ref[...]) * mask_ref[...]                       # (S*B, E)

        # ---- hoisted constants for the direction-stacked recurrence
        row2b = lax.broadcasted_iota(jnp.int32, (2 * B, 1), 0)
        is_fwd_row = row2b < B                                       # (2B, 1) bool

        # ---- stacked bidirectional LSTM layers (PyTorch gate order i,f,g,o)
        for l in range(L):
            wih_ref, b_ref, whh_ref = layer_refs[l]
            if l == 0:
                cur_in = x                                           # (S*B, E)
            else:
                cur_in = lstm_ref[:, (l - 1) * 2 * H:l * 2 * H]      # (S*B, 2H)

            # input contribution for BOTH directions, all timesteps: one GEMM
            gx = jnp.dot(cur_in, wih_ref[...],
                         preferred_element_type=f32) + b_ref[...]    # (S*B, 8H)
            whh_both = whh_ref[...]                                  # (H, 8H)

            # fused fwd/bwd recurrence: one (2B,H)x(H,8H) matmul per timestep
            h_st = jnp.zeros((2 * B, H), f32)                        # [h_f ; h_b]
            c_st = jnp.zeros((2 * B, H), f32)
            base = l * 2 * H
            for t in range(S):
                tb = S - 1 - t
                # input-gate terms for (fwd @ t, bwd @ tb): off the serial chain
                g_in = jnp.concatenate(
                    [gx[t * B:(t + 1) * B, 0:4 * H],
                     gx[tb * B:(tb + 1) * B, 4 * H:8 * H]], axis=0)  # (2B, 4H)

                g_all = jnp.dot(h_st, whh_both,
                                preferred_element_type=f32)          # (2B, 8H)
                g = g_in + jnp.where(is_fwd_row,
                                     g_all[:, 0:4 * H],
                                     g_all[:, 4 * H:8 * H])          # (2B, 4H)

                sig = jax.nn.sigmoid(g)       # one EUP pass over the full 128-lane gate vreg
                i_g = sig[:, 0:H]
                f_g = sig[:, H:2 * H]
                o_g = sig[:, 3 * H:4 * H]
                gg = jnp.tanh(g[:, 2 * H:3 * H])
                c_st = f_g * c_st + i_g * gg
                h_st = o_g * jnp.tanh(c_st)

                # write directly into the final concatenated-layers layout
                lstm_ref[t * B:(t + 1) * B, base:base + H] = h_st[0:B]
                lstm_ref[tb * B:(tb + 1) * B, base + H:base + 2 * H] = h_st[B:2 * B]

        lstm_out = lstm_ref[...]                                     # (S*B, 2*H*L)

        # ---- hidden2tag (fused)
        emit = jnp.dot(lstm_out, tagw_ref[...], preferred_element_type=f32)
        emit = emit + tagb_ref[...]                                  # (S*B, T)

        # ---- CRF Viterbi forward (max-product), frozen past each length
        lens = len_ref[...]                                          # (B, 1) int32
        transT = transT_ref[...]                                     # (T, T)
        delta = emit[0:B, :]                                         # (B, T)
        # iotas hoisted out of the time loops (broadcast_in_dim is not CSE'd)
        ii3 = lax.broadcasted_iota(jnp.int32, (B, T, T), 2)
        jidx = lax.broadcasted_iota(jnp.int32, (B, T), 1)
        col = lax.broadcasted_iota(jnp.int32, (B, S), 1)

        bps = [jnp.zeros((B, T), jnp.int32)]
        for t in range(1, S):
            # scores[b, j, i] = delta[b, i] + trans[i -> j]  (last axis = prev tag)
            scores = delta[:, None, :] + transT[None, :, :]          # (B, T, T)
            best = jnp.max(scores, axis=-1)                          # (B, T)
            arg = jnp.min(jnp.where(scores == best[:, :, None], ii3, T),
                          axis=-1).astype(jnp.int32)                 # (B, T)
            new_delta = best + emit[t * B:(t + 1) * B, :]
            valid = t < lens                                         # (B, 1) bool
            delta = jnp.where(valid, new_delta, delta)
            bps.append(arg)

        maxv = jnp.max(delta, axis=-1, keepdims=True)                # (B, 1)
        best_last = jnp.min(jnp.where(delta == maxv, jidx, T),
                            axis=-1, keepdims=True).astype(jnp.int32)  # (B, 1)
        score_ref[...] = maxv
        # TODO(synk): seq_score is ill-defined for zero-length sequences
        # (delta is initialised from emit[0] unconditionally), matching the
        # behaviour of the reference implementation.

        # ---- backtrack (fully unrolled; gather via one-hot sum), lane-dense out
        cur = best_last                                              # (B, 1)
        tags = jnp.zeros((B, S), jnp.int32)                          # (B, S)
        for r in range(S):
            t = S - 1 - r
            bp_next = bps[min(t + 1, S - 1)]                         # (B, T)
            onehot = jidx == cur                                     # (B, T)
            # TODO(synk): f32 one-hot sum is exact while tag indices fit the
            # f32 mantissa (trivially true for T=8); use int arithmetic if T grows.
            from_bp = jnp.sum(jnp.where(onehot, bp_next.astype(f32), 0.0),
                              axis=-1, keepdims=True).astype(jnp.int32)
            new_cur = jnp.where(t == lens - 1, best_last,
                                jnp.where(t < lens - 1, from_bp, cur))
            tag_t = jnp.where(t < lens, new_cur, 0)                  # (B, 1)
            tags = jnp.where(col == t, tag_t, tags)
            cur = new_cur
        tag_ref[...] = tags                                          # (B, S)

    return kernel


# ----------------------------------------------------------------------------
# Parameter init (deterministic, synthetic). Forward/backward input AND
# recurrent weights plus biases are pre-stacked so each layer needs a single
# X·Wih GEMM and a single per-timestep h·Whh GEMM covering both directions.
# ----------------------------------------------------------------------------
def init_params(key, feature_dim, feat_emb_dim, hidden_dim, layers, tag_size):
    s = 0.1
    keys = jax.random.split(key, 5 + 6 * layers)
    p = {
        'proj_w': jax.random.normal(keys[0], (feature_dim, feat_emb_dim), jnp.float32) * s,
        'proj_b': jax.random.normal(keys[1], (1, feat_emb_dim), jnp.float32) * s,
        'tag_w':  jax.random.normal(keys[2], (2 * hidden_dim * layers, tag_size), jnp.float32) * s,
        'tag_b':  jax.random.normal(keys[3], (1, tag_size), jnp.float32) * s,
        'trans':  jax.random.normal(keys[4], (tag_size, tag_size), jnp.float32) * s,
        'lstm':   [],
    }
    k = 5
    for l in range(layers):
        in_dim = feat_emb_dim if l == 0 else 2 * hidden_dim
        per_dir = {}
        for d in ('fwd', 'bwd'):
            wih = jax.random.normal(keys[k], (in_dim, 4 * hidden_dim), jnp.float32) * s; k += 1
            whh = jax.random.normal(keys[k], (hidden_dim, 4 * hidden_dim), jnp.float32) * s; k += 1
            b   = jax.random.normal(keys[k], (1, 4 * hidden_dim), jnp.float32) * s; k += 1
            per_dir[d] = (wih, whh, b)   # b = b_ih + b_hh fused
        p['lstm'].append({
            'wih': jnp.concatenate([per_dir['fwd'][0], per_dir['bwd'][0]], axis=-1),  # (I, 8H)
            'b':   jnp.concatenate([per_dir['fwd'][2], per_dir['bwd'][2]], axis=-1),  # (1, 8H)
            'whh': jnp.concatenate([per_dir['fwd'][1], per_dir['bwd'][1]], axis=-1),  # (H, 8H)
        })
    return p


# ----------------------------------------------------------------------------
# Forward pass wrapper: one pallas_call for the whole model.
# ----------------------------------------------------------------------------
def feature_lstm_forward(params, feature_sentence, lengths, *, hidden_dim, layers, tag_size):
    """Returns (tag_seq [B,S] int32, seq_score [B] f32, seq_mask [B,S] bool)."""
    B, S, F = feature_sentence.shape
    H, L, T = hidden_dim, layers, tag_size
    lens = lengths[:, 0]                                              # (B,)

    # Dropout layers (in_feat / proj_feat / lstm_feat / dense_feat) are identity in eval.
    mask = (jnp.arange(S)[None, :] < lens[:, None]).astype(jnp.float32)  # (B, S)

    # Time-major flatten (row index = t*B + b); only layout prep done in JAX.
    feat_tm = feature_sentence.transpose(1, 0, 2).reshape(S * B, F)
    mask_tm = mask.T.reshape(S * B, 1)
    lens_b1 = lens.reshape(B, 1).astype(jnp.int32)

    inputs = [feat_tm, mask_tm, lens_b1, params['proj_w'], params['proj_b']]
    for l in range(L):
        lay = params['lstm'][l]
        inputs += [lay['wih'], lay['b'], lay['whh']]
    inputs += [params['tag_w'], params['tag_b'], params['trans'].T]

    kernel = make_feature_lstm_kernel(S=S, B=B, H=H, L=L, T=T)
    tag_seq, score = pl.pallas_call(
        kernel,
        out_shape=(jax.ShapeDtypeStruct((B, S), jnp.int32),
                   jax.ShapeDtypeStruct((B, 1), jnp.float32)),
        in_specs=[VMEM_SPEC] * len(inputs),
        out_specs=(VMEM_SPEC, VMEM_SPEC),
        scratch_shapes=[pltpu.VMEM((S * B, 2 * H * L), jnp.float32)],
        compiler_params=pltpu.CompilerParams(vmem_limit_bytes=32 * 1024 * 1024),
    )(*inputs)

    seq_score = score[:, 0]                                           # (B,)
    seq_mask = jnp.arange(S)[None, :] < lens[:, None]                 # (B, S) bool
    return tag_seq, seq_score, seq_mask


if __name__ == "__main__":
    # small config consistent with the module:
    #   feature_dim=16, feature_emb_dim=16, hidden_dim=32, layers=2, tag_size=8,
    #   zero_init=True, batch=2, seq=8
    B, S, F = 2, 8, 16
    E, H, L, T = 16, 32, 2, 8

    key = jax.random.PRNGKey(0)
    kx, kp = jax.random.split(key, 2)
    feature_sentence = jax.random.normal(kx, (B, S, F), jnp.float32)
    lengths = jnp.array([[S], [5]], dtype=jnp.int32)                  # (B, 1)

    params = init_params(kp, F, E, H, L, T)
    tag_seq, seq_score, seq_mask = feature_lstm_forward(
        params, feature_sentence, lengths, hidden_dim=H, layers=L, tag_size=T)

    jax.block_until_ready((tag_seq, seq_score, seq_mask))
    assert tag_seq.shape == (B, S) and seq_score.shape == (B,) and seq_mask.shape == (B, S)
    print("KERNEL_OK")
</pallas_src>

<mosaic_0001>
module attributes {stable_mosaic.version = 11 : i64} {
  func.func @kernel(%arg0: memref<16x16xf32, #tpu.memory_space<vmem>>, %arg1: memref<16x1xf32, #tpu.memory_space<vmem>>, %arg2: memref<2x1xi32, #tpu.memory_space<vmem>>, %arg3: memref<16x16xf32, #tpu.memory_space<vmem>>, %arg4: memref<1x16xf32, #tpu.memory_space<vmem>>, %arg5: memref<16x256xf32, #tpu.memory_space<vmem>>, %arg6: memref<1x256xf32, #tpu.memory_space<vmem>>, %arg7: memref<32x256xf32, #tpu.memory_space<vmem>>, %arg8: memref<64x256xf32, #tpu.memory_space<vmem>>, %arg9: memref<1x256xf32, #tpu.memory_space<vmem>>, %arg10: memref<32x256xf32, #tpu.memory_space<vmem>>, %arg11: memref<128x8xf32, #tpu.memory_space<vmem>>, %arg12: memref<1x8xf32, #tpu.memory_space<vmem>>, %arg13: memref<8x8xf32, #tpu.memory_space<vmem>>, %arg14: memref<2x8xi32, #tpu.memory_space<vmem>>, %arg15: memref<2x1xf32, #tpu.memory_space<vmem>>, %arg16: memref<16x128xf32, #tpu.memory_space<vmem>>) attributes {dimension_semantics = [], scalar_prefetch = 0 : i64, scratch_operands = 1 : i64, tpu.core_type = #tpu.core_type<tc>} {
    %c0 = arith.constant 0 : index
    %c0_0 = arith.constant 0 : index
    %0 = vector.load %arg0[%c0, %c0_0] : memref<16x16xf32, #tpu.memory_space<vmem>>, vector<16x16xf32>
    %c0_1 = arith.constant 0 : index
    %c0_2 = arith.constant 0 : index
    %1 = vector.load %arg3[%c0_1, %c0_2] : memref<16x16xf32, #tpu.memory_space<vmem>>, vector<16x16xf32>
    %cst = arith.constant dense<0.000000e+00> : vector<16x16xf32>
    %2 = tpu.matmul %0, %1, %cst {dimension_numbers = #tpu.dot_dimension_numbers<[1], [0], [0], [1], [0, 0, 1, 1], [], []>} : vector<16x16xf32>, vector<16x16xf32>, vector<16x16xf32> -> vector<16x16xf32>
    %c0_3 = arith.constant 0 : index
    %c0_4 = arith.constant 0 : index
    %3 = vector.load %arg4[%c0_3, %c0_4] : memref<1x16xf32, #tpu.memory_space<vmem>>, vector<1x16xf32>
    %4 = vector.broadcast %3 : vector<1x16xf32> to vector<16x16xf32>
    %5 = arith.addf %2, %4 : vector<16x16xf32>
    %c0_5 = arith.constant 0 : index
    %c0_6 = arith.constant 0 : index
    %6 = vector.load %arg1[%c0_5, %c0_6] : memref<16x1xf32, #tpu.memory_space<vmem>>, vector<16x1xf32>
    %7 = vector.broadcast %6 : vector<16x1xf32> to vector<16x16xf32>
    %8 = arith.mulf %5, %7 : vector<16x16xf32>
    %9 = tpu.iota {dimensions = array<i32: 0>} : vector<4x1xi32>
    %c2_i32 = arith.constant 2 : i32
    %10 = vector.broadcast %c2_i32 : i32 to vector<4x1xi32>
    %11 = arith.cmpi slt, %9, %10 : vector<4x1xi32>
    %c0_7 = arith.constant 0 : index
    %c0_8 = arith.constant 0 : index
    %12 = vector.load %arg5[%c0_7, %c0_8] : memref<16x256xf32, #tpu.memory_space<vmem>>, vector<16x256xf32>
    %cst_9 = arith.constant dense<0.000000e+00> : vector<16x256xf32>
    %13 = tpu.matmul %8, %12, %cst_9 {dimension_numbers = #tpu.dot_dimension_numbers<[1], [0], [0], [1], [0, 0, 1, 1], [], []>} : vector<16x16xf32>, vector<16x256xf32>, vector<16x256xf32> -> vector<16x256xf32>
    %c0_10 = arith.constant 0 : index
    %c0_11 = arith.constant 0 : index
    %14 = vector.load %arg6[%c0_10, %c0_11] : memref<1x256xf32, #tpu.memory_space<vmem>>, vector<1x256xf32>
    %15 = vector.broadcast %14 : vector<1x256xf32> to vector<16x256xf32>
    %16 = arith.addf %13, %15 : vector<16x256xf32>
    %c0_12 = arith.constant 0 : index
    %c0_13 = arith.constant 0 : index
    %17 = vector.load %arg7[%c0_12, %c0_13] : memref<32x256xf32, #tpu.memory_space<vmem>>, vector<32x256xf32>
    %cst_14 = arith.constant 0.000000e+00 : f32
    %18 = vector.broadcast %cst_14 : f32 to vector<4x32xf32>
    %cst_15 = arith.constant 0.000000e+00 : f32
    %19 = vector.broadcast %cst_15 : f32 to vector<4x32xf32>
    %20 = vector.extract_strided_slice %16 {offsets = [0, 0], sizes = [2, 128], strides = [1, 1]} : vector<16x256xf32> to vector<2x128xf32>
    %21 = vector.extract_strided_slice %16 {offsets = [14, 128], sizes = [2, 128], strides = [1, 1]} : vector<16x256xf32> to vector<2x128xf32>
    %22 = tpu.concatenate %20, %21 in 0 : vector<2x128xf32>, vector<2x128xf32> -> vector<4x128xf32>
    %cst_16 = arith.constant dense<0.000000e+00> : vector<4x256xf32>
    %23 = tpu.matmul %18, %17, %cst_16 {dimension_numbers = #tpu.dot_dimension_numbers<[1], [0], [0], [1], [0, 0, 1, 1], [], []>} : vector<4x32xf32>, vector<32x256xf32>, vector<4x256xf32> -> vector<4x256xf32>
    %24 = vector.extract_strided_slice %23 {offsets = [0, 0], sizes = [4, 128], strides = [1, 1]} : vector<4x256xf32> to vector<4x128xf32>
    %25 = vector.extract_strided_slice %23 {offsets = [0, 128], sizes = [4, 128], strides = [1, 1]} : vector<4x256xf32> to vector<4x128xf32>
    %26 = vector.shape_cast %11 : vector<4x1xi1> to vector<4x1xi1>
    %27 = vector.broadcast %26 : vector<4x1xi1> to vector<4x128xi1>
    %28 = arith.select %27, %24, %25 : vector<4x128xi1>, vector<4x128xf32>
    %29 = arith.addf %22, %28 : vector<4x128xf32>
    %30 = arith.negf %29 : vector<4x128xf32>
    %31 = math.exp %30 : vector<4x128xf32>
    %cst_17 = arith.constant 1.000000e+00 : f32
    %32 = vector.broadcast %cst_17 : f32 to vector<4x128xf32>
    %33 = arith.addf %32, %31 : vector<4x128xf32>
    %34 = arith.divf %32, %33 : vector<4x128xf32>
    %35 = vector.extract_strided_slice %34 {offsets = [0, 0], sizes = [4, 32], strides = [1, 1]} : vector<4x128xf32> to vector<4x32xf32>
    %36 = vector.extract_strided_slice %34 {offsets = [0, 32], sizes = [4, 32], strides = [1, 1]} : vector<4x128xf32> to vector<4x32xf32>
    %37 = vector.extract_strided_slice %34 {offsets = [0, 96], sizes = [4, 32], strides = [1, 1]} : vector<4x128xf32> to vector<4x32xf32>
    %38 = vector.extract_strided_slice %29 {offsets = [0, 64], sizes = [4, 32], strides = [1, 1]} : vector<4x128xf32> to vector<4x32xf32>
    %39 = math.tanh %38 : vector<4x32xf32>
    %40 = arith.mulf %36, %19 : vector<4x32xf32>
    %41 = arith.mulf %35, %39 : vector<4x32xf32>
    %42 = arith.addf %40, %41 : vector<4x32xf32>
    %43 = math.tanh %42 : vector<4x32xf32>
    %44 = arith.mulf %37, %43 : vector<4x32xf32>
    %45 = vector.extract_strided_slice %44 {offsets = [0, 0], sizes = [2, 32], strides = [1, 1]} : vector<4x32xf32> to vector<2x32xf32>
    %c0_18 = arith.constant 0 : index
    %c0_19 = arith.constant 0 : index
    %46 = vector.load %arg16[%c0_18, %c0_19] : memref<16x128xf32, #tpu.memory_space<vmem>>, vector<2x32xf32>
    tpu.vector_store %arg16[%c0_18, %c0_19], %45 {strides = array<i32>} : memref<16x128xf32, #tpu.memory_space<vmem>>, vector<2x32xf32>,
    %47 = vector.extract_strided_slice %44 {offsets = [2, 0], sizes = [2, 32], strides = [1, 1]} : vector<4x32xf32> to vector<2x32xf32>
    %c14 = arith.constant 14 : index
    %c32 = arith.constant 32 : index
    %48 = vector.load %arg16[%c14, %c32] : memref<16x128xf32, #tpu.memory_space<vmem>>, vector<2x32xf32>
    tpu.vector_store %arg16[%c14, %c32], %47 {strides = array<i32>} : memref<16x128xf32, #tpu.memory_space<vmem>>, vector<2x32xf32>,
    %49 = vector.extract_strided_slice %16 {offsets = [2, 0], sizes = [2, 128], strides = [1, 1]} : vector<16x256xf32> to vector<2x128xf32>
    %50 = vector.extract_strided_slice %16 {offsets = [12, 128], sizes = [2, 128], strides = [1, 1]} : vector<16x256xf32> to vector<2x128xf32>
    %51 = tpu.concatenate %49, %50 in 0 : vector<2x128xf32>, vector<2x128xf32> -> vector<4x128xf32>
    %cst_20 = arith.constant dense<0.000000e+00> : vector<4x256xf32>
    %52 = tpu.matmul %44, %17, %cst_20 {dimension_numbers = #tpu.dot_dimension_numbers<[1], [0], [0], [1], [0, 0, 1, 1], [], []>} : vector<4x32xf32>, vector<32x256xf32>, vector<4x256xf32> -> vector<4x256xf32>
    %53 = vector.extract_strided_slice %52 {offsets = [0, 0], sizes = [4, 128], strides = [1, 1]} : vector<4x256xf32> to vector<4x128xf32>
    %54 = vector.extract_strided_slice %52 {offsets = [0, 128], sizes = [4, 128], strides = [1, 1]} : vector<4x256xf32> to vector<4x128xf32>
    %55 = vector.shape_cast %11 : vector<4x1xi1> to vector<4x1xi1>
    %56 = vector.broadcast %55 : vector<4x1xi1> to vector<4x128xi1>
    %57 = arith.select %56, %53, %54 : vector<4x128xi1>, vector<4x128xf32>
    %58 = arith.addf %51, %57 : vector<4x128xf32>
    %59 = arith.negf %58 : vector<4x128xf32>
    %60 = math.exp %59 : vector<4x128xf32>
    %cst_21 = arith.constant 1.000000e+00 : f32
    %61 = vector.broadcast %cst_21 : f32 to vector<4x128xf32>
    %62 = arith.addf %61, %60 : vector<4x128xf32>
    %63 = arith.divf %61, %62 : vector<4x128xf32>
    %64 = vector.extract_strided_slice %63 {offsets = [0, 0], sizes = [4, 32], strides = [1, 1]} : vector<4x128xf32> to vector<4x32xf32>
    %65 = vector.extract_strided_slice %63 {offsets = [0, 32], sizes = [4, 32], strides = [1, 1]} : vector<4x128xf32> to vector<4x32xf32>
    %66 = vector.extract_strided_slice %63 {offsets = [0, 96], sizes = [4, 32], strides = [1, 1]} : vector<4x128xf32> to vector<4x32xf32>
    %67 = vector.extract_strided_slice %58 {offsets = [0, 64], sizes = [4, 32], strides = [1, 1]} : vector<4x128xf32> to vector<4x32xf32>
    %68 = math.tanh %67 : vector<4x32xf32>
    %69 = arith.mulf %65, %42 : vector<4x32xf32>
    %70 = arith.mulf %64, %68 : vector<4x32xf32>
    %71 = arith.addf %69, %70 : vector<4x32xf32>
    %72 = math.tanh %71 : vector<4x32xf32>
    %73 = arith.mulf %66, %72 : vector<4x32xf32>
    %74 = vector.extract_strided_slice %73 {offsets = [0, 0], sizes = [2, 32], strides = [1, 1]} : vector<4x32xf32> to vector<2x32xf32>
    %c2 = arith.constant 2 : index
    %c0_22 = arith.constant 0 : index
    %75 = vector.load %arg16[%c2, %c0_22] : memref<16x128xf32, #tpu.memory_space<vmem>>, vector<2x32xf32>
    tpu.vector_store %arg16[%c2, %c0_22], %74 {strides = array<i32>} : memref<16x128xf32, #tpu.memory_space<vmem>>, vector<2x32xf32>,
    %76 = vector.extract_strided_slice %73 {offsets = [2, 0], sizes = [2, 32], strides = [1, 1]} : vector<4x32xf32> to vector<2x32xf32>
    %c12 = arith.constant 12 : index
    %c32_23 = arith.constant 32 : index
    %77 = vector.load %arg16[%c12, %c32_23] : memref<16x128xf32, #tpu.memory_space<vmem>>, vector<2x32xf32>
    tpu.vector_store %arg16[%c12, %c32_23], %76 {strides = array<i32>} : memref<16x128xf32, #tpu.memory_space<vmem>>, vector<2x32xf32>,
    %78 = vector.extract_strided_slice %16 {offsets = [4, 0], sizes = [2, 128], strides = [1, 1]} : vector<16x256xf32> to vector<2x128xf32>
    %79 = vector.extract_strided_slice %16 {offsets = [10, 128], sizes = [2, 128], strides = [1, 1]} : vector<16x256xf32> to vector<2x128xf32>
    %80 = tpu.concatenate %78, %79 in 0 : vector<2x128xf32>, vector<2x128xf32> -> vector<4x128xf32>
    %cst_24 = arith.constant dense<0.000000e+00> : vector<4x256xf32>
    %81 = tpu.matmul %73, %17, %cst_24 {dimension_numbers = #tpu.dot_dimension_numbers<[1], [0], [0], [1], [0, 0, 1, 1], [], []>} : vector<4x32xf32>, vector<32x256xf32>, vector<4x256xf32> -> vector<4x256xf32>
    %82 = vector.extract_strided_slice %81 {offsets = [0, 0], sizes = [4, 128], strides = [1, 1]} : vector<4x256xf32> to vector<4x128xf32>
    %83 = vector.extract_strided_slice %81 {offsets = [0, 128], sizes = [4, 128], strides = [1, 1]} : vector<4x256xf32> to vector<4x128xf32>
    %84 = vector.shape_cast %11 : vector<4x1xi1> to vector<4x1xi1>
    %85 = vector.broadcast %84 : vector<4x1xi1> to vector<4x128xi1>
    %86 = arith.select %85, %82, %83 : vector<4x128xi1>, vector<4x128xf32>
    %87 = arith.addf %80, %86 : vector<4x128xf32>
    %88 = arith.negf %87 : vector<4x128xf32>
    %89 = math.exp %88 : vector<4x128xf32>
    %cst_25 = arith.constant 1.000000e+00 : f32
    %90 = vector.broadcast %cst_25 : f32 to vector<4x128xf32>
    %91 = arith.addf %90, %89 : vector<4x128xf32>
    %92 = arith.divf %90, %91 : vector<4x128xf32>
    %93 = vector.extract_strided_slice %92 {offsets = [0, 0], sizes = [4, 32], strides = [1, 1]} : vector<4x128xf32> to vector<4x32xf32>
    %94 = vector.extract_strided_slice %92 {offsets = [0, 32], sizes = [4, 32], strides = [1, 1]} : vector<4x128xf32> to vector<4x32xf32>
    %95 = vector.extract_strided_slice %92 {offsets = [0, 96], sizes = [4, 32], strides = [1, 1]} : vector<4x128xf32> to vector<4x32xf32>
    %96 = vector.extract_strided_slice %87 {offsets = [0, 64], sizes = [4, 32], strides = [1, 1]} : vector<4x128xf32> to vector<4x32xf32>
    %97 = math.tanh %96 : vector<4x32xf32>
    %98 = arith.mulf %94, %71 : vector<4x32xf32>
    %99 = arith.mulf %93, %97 : vector<4x32xf32>
    %100 = arith.addf %98, %99 : vector<4x32xf32>
    %101 = math.tanh %100 : vector<4x32xf32>
    %102 = arith.mulf %95, %101 : vector<4x32xf32>
    %103 = vector.extract_strided_slice %102 {offsets = [0, 0], sizes = [2, 32], strides = [1, 1]} : vector<4x32xf32> to vector<2x32xf32>
    %c4 = arith.constant 4 : index
    %c0_26 = arith.constant 0 : index
    %104 = vector.load %arg16[%c4, %c0_26] : memref<16x128xf32, #tpu.memory_space<vmem>>, vector<2x32xf32>
    tpu.vector_store %arg16[%c4, %c0_26], %103 {strides = array<i32>} : memref<16x128xf32, #tpu.memory_space<vmem>>, vector<2x32xf32>,
    %105 = vector.extract_strided_slice %102 {offsets = [2, 0], sizes = [2, 32], strides = [1, 1]} : vector<4x32xf32> to vector<2x32xf32>
    %c10 = arith.constant 10 : index
    %c32_27 = arith.constant 32 : index
    %106 = vector.load %arg16[%c10, %c32_27] : memref<16x128xf32, #tpu.memory_space<vmem>>, vector<2x32xf32>
    tpu.vector_store %arg16[%c10, %c32_27], %105 {strides = array<i32>} : memref<16x128xf32, #tpu.memory_space<vmem>>, vector<2x32xf32>,
    %107 = vector.extract_strided_slice %16 {offsets = [6, 0], sizes = [2, 128], strides = [1, 1]} : vector<16x256xf32> to vector<2x128xf32>
    %108 = vector.extract_strided_slice %16 {offsets = [8, 128], sizes = [2, 128], strides = [1, 1]} : vector<16x256xf32> to vector<2x128xf32>
    %109 = tpu.concatenate %107, %108 in 0 : vector<2x128xf32>, vector<2x128xf32> -> vector<4x128xf32>
    %cst_28 = arith.constant dense<0.000000e+00> : vector<4x256xf32>
    %110 = tpu.matmul %102, %17, %cst_28 {dimension_numbers = #tpu.dot_dimension_numbers<[1], [0], [0], [1], [0, 0, 1, 1], [], []>} : vector<4x32xf32>, vector<32x256xf32>, vector<4x256xf32> -> vector<4x256xf32>
    %111 = vector.extract_strided_slice %110 {offsets = [0, 0], sizes = [4, 128], strides = [1, 1]} : vector<4x256xf32> to vector<4x128xf32>
    %112 = vector.extract_strided_slice %110 {offsets = [0, 128], sizes = [4, 128], strides = [1, 1]} : vector<4x256xf32> to vector<4x128xf32>
    %113 = vector.shape_cast %11 : vector<4x1xi1> to vector<4x1xi1>
    %114 = vector.broadcast %113 : vector<4x1xi1> to vector<4x128xi1>
    %115 = arith.select %114, %111, %112 : vector<4x128xi1>, vector<4x128xf32>
    %116 = arith.addf %109, %115 : vector<4x128xf32>
    %117 = arith.negf %116 : vector<4x128xf32>
    %118 = math.exp %117 : vector<4x128xf32>
    %cst_29 = arith.constant 1.000000e+00 : f32
    %119 = vector.broadcast %cst_29 : f32 to vector<4x128xf32>
    %120 = arith.addf %119, %118 : vector<4x128xf32>
    %121 = arith.divf %119, %120 : vector<4x128xf32>
    %122 = vector.extract_strided_slice %121 {offsets = [0, 0], sizes = [4, 32], strides = [1, 1]} : vector<4x128xf32> to vector<4x32xf32>
    %123 = vector.extract_strided_slice %121 {offsets = [0, 32], sizes = [4, 32], strides = [1, 1]} : vector<4x128xf32> to vector<4x32xf32>
    %124 = vector.extract_strided_slice %121 {offsets = [0, 96], sizes = [4, 32], strides = [1, 1]} : vector<4x128xf32> to vector<4x32xf32>
    %125 = vector.extract_strided_slice %116 {offsets = [0, 64], sizes = [4, 32], strides = [1, 1]} : vector<4x128xf32> to vector<4x32xf32>
    %126 = math.tanh %125 : vector<4x32xf32>
    %127 = arith.mulf %123, %100 : vector<4x32xf32>
    %128 = arith.mulf %122, %126 : vector<4x32xf32>
    %129 = arith.addf %127, %128 : vector<4x32xf32>
    %130 = math.tanh %129 : vector<4x32xf32>
    %131 = arith.mulf %124, %130 : vector<4x32xf32>
    %132 = vector.extract_strided_slice %131 {offsets = [0, 0], sizes = [2, 32], strides = [1, 1]} : vector<4x32xf32> to vector<2x32xf32>
    %c6 = arith.constant 6 : index
    %c0_30 = arith.constant 0 : index
    %133 = vector.load %arg16[%c6, %c0_30] : memref<16x128xf32, #tpu.memory_space<vmem>>, vector<2x32xf32>
    tpu.vector_store %arg16[%c6, %c0_30], %132 {strides = array<i32>} : memref<16x128xf32, #tpu.memory_space<vmem>>, vector<2x32xf32>,
    %134 = vector.extract_strided_slice %131 {offsets = [2, 0], sizes = [2, 32], strides = [1, 1]} : vector<4x32xf32> to vector<2x32xf32>
    %c8 = arith.constant 8 : index
    %c32_31 = arith.constant 32 : index
    %135 = vector.load %arg16[%c8, %c32_31] : memref<16x128xf32, #tpu.memory_space<vmem>>, vector<2x32xf32>
    tpu.vector_store %arg16[%c8, %c32_31], %134 {strides = array<i32>} : memref<16x128xf32, #tpu.memory_space<vmem>>, vector<2x32xf32>,
    %136 = vector.extract_strided_slice %16 {offsets = [8, 0], sizes = [2, 128], strides = [1, 1]} : vector<16x256xf32> to vector<2x128xf32>
    %137 = vector.extract_strided_slice %16 {offsets = [6, 128], sizes = [2, 128], strides = [1, 1]} : vector<16x256xf32> to vector<2x128xf32>
    %138 = tpu.concatenate %136, %137 in 0 : vector<2x128xf32>, vector<2x128xf32> -> vector<4x128xf32>
    %cst_32 = arith.constant dense<0.000000e+00> : vector<4x256xf32>
    %139 = tpu.matmul %131, %17, %cst_32 {dimension_numbers = #tpu.dot_dimension_numbers<[1], [0], [0], [1], [0, 0, 1, 1], [], []>} : vector<4x32xf32>, vector<32x256xf32>, vector<4x256xf32> -> vector<4x256xf32>
    %140 = vector.extract_strided_slice %139 {offsets = [0, 0], sizes = [4, 128], strides = [1, 1]} : vector<4x256xf32> to vector<4x128xf32>
    %141 = vector.extract_strided_slice %139 {offsets = [0, 128], sizes = [4, 128], strides = [1, 1]} : vector<4x256xf32> to vector<4x128xf32>
    %142 = vector.shape_cast %11 : vector<4x1xi1> to vector<4x1xi1>
    %143 = vector.broadcast %142 : vector<4x1xi1> to vector<4x128xi1>
    %144 = arith.select %143, %140, %141 : vector<4x128xi1>, vector<4x128xf32>
    %145 = arith.addf %138, %144 : vector<4x128xf32>
    %146 = arith.negf %145 : vector<4x128xf32>
    %147 = math.exp %146 : vector<4x128xf32>
    %cst_33 = arith.constant 1.000000e+00 : f32
    %148 = vector.broadcast %cst_33 : f32 to vector<4x128xf32>
    %149 = arith.addf %148, %147 : vector<4x128xf32>
    %150 = arith.divf %148, %149 : vector<4x128xf32>
    %151 = vector.extract_strided_slice %150 {offsets = [0, 0], sizes = [4, 32], strides = [1, 1]} : vector<4x128xf32> to vector<4x32xf32>
    %152 = vector.extract_strided_slice %150 {offsets = [0, 32], sizes = [4, 32], strides = [1, 1]} : vector<4x128xf32> to vector<4x32xf32>
    %153 = vector.extract_strided_slice %150 {offsets = [0, 96], sizes = [4, 32], strides = [1, 1]} : vector<4x128xf32> to vector<4x32xf32>
    %154 = vector.extract_strided_slice %145 {offsets = [0, 64], sizes = [4, 32], strides = [1, 1]} : vector<4x128xf32> to vector<4x32xf32>
    %155 = math.tanh %154 : vector<4x32xf32>
    %156 = arith.mulf %152, %129 : vector<4x32xf32>
    %157 = arith.mulf %151, %155 : vector<4x32xf32>
    %158 = arith.addf %156, %157 : vector<4x32xf32>
    %159 = math.tanh %158 : vector<4x32xf32>
    %160 = arith.mulf %153, %159 : vector<4x32xf32>
    %161 = vector.extract_strided_slice %160 {offsets = [0, 0], sizes = [2, 32], strides = [1, 1]} : vector<4x32xf32> to vector<2x32xf32>
    %c8_34 = arith.constant 8 : index
    %c0_35 = arith.constant 0 : index
    %162 = vector.load %arg16[%c8_34, %c0_35] : memref<16x128xf32, #tpu.memory_space<vmem>>, vector<2x32xf32>
    tpu.vector_store %arg16[%c8_34, %c0_35], %161 {strides = array<i32>} : memref<16x128xf32, #tpu.memory_space<vmem>>, vector<2x32xf32>,
    %163 = vector.extract_strided_slice %160 {offsets = [2, 0], sizes = [2, 32], strides = [1, 1]} : vector<4x32xf32> to vector<2x32xf32>
    %c6_36 = arith.constant 6 : index
    %c32_37 = arith.constant 32 : index
    %164 = vector.load %arg16[%c6_36, %c32_37] : memref<16x128xf32, #tpu.memory_space<vmem>>, vector<2x32xf32>
    tpu.vector_store %arg16[%c6_36, %c32_37], %163 {strides = array<i32>} : memref<16x128xf32, #tpu.memory_space<vmem>>, vector<2x32xf32>,
    %165 = vector.extract_strided_slice %16 {offsets = [10, 0], sizes = [2, 128], strides = [1, 1]} : vector<16x256xf32> to vector<2x128xf32>
    %166 = vector.extract_strided_slice %16 {offsets = [4, 128], sizes = [2, 128], strides = [1, 1]} : vector<16x256xf32> to vector<2x128xf32>
    %167 = tpu.concatenate %165, %166 in 0 : vector<2x128xf32>, vector<2x128xf32> -> vector<4x128xf32>
    %cst_38 = arith.constant dense<0.000000e+00> : vector<4x256xf32>
    %168 = tpu.matmul %160, %17, %cst_38 {dimension_numbers = #tpu.dot_dimension_numbers<[1], [0], [0], [1], [0, 0, 1, 1], [], []>} : vector<4x32xf32>, vector<32x256xf32>, vector<4x256xf32> -> vector<4x256xf32>
    %169 = vector.extract_strided_slice %168 {offsets = [0, 0], sizes = [4, 128], strides = [1, 1]} : vector<4x256xf32> to vector<4x128xf32>
    %170 = vector.extract_strided_slice %168 {offsets = [0, 128], sizes = [4, 128], strides = [1, 1]} : vector<4x256xf32> to vector<4x128xf32>
    %171 = vector.shape_cast %11 : vector<4x1xi1> to vector<4x1xi1>
    %172 = vector.broadcast %171 : vector<4x1xi1> to vector<4x128xi1>
    %173 = arith.select %172, %169, %170 : vector<4x128xi1>, vector<4x128xf32>
    %174 = arith.addf %167, %173 : vector<4x128xf32>
    %175 = arith.negf %174 : vector<4x128xf32>
    %176 = math.exp %175 : vector<4x128xf32>
    %cst_39 = arith.constant 1.000000e+00 : f32
    %177 = vector.broadcast %cst_39 : f32 to vector<4x128xf32>
    %178 = arith.addf %177, %176 : vector<4x128xf32>
    %179 = arith.divf %177, %178 : vector<4x128xf32>
    %180 = vector.extract_strided_slice %179 {offsets = [0, 0], sizes = [4, 32], strides = [1, 1]} : vector<4x128xf32> to vector<4x32xf32>
    %181 = vector.extract_strided_slice %179 {offsets = [0, 32], sizes = [4, 32], strides = [1, 1]} : vector<4x128xf32> to vector<4x32xf32>
    %182 = vector.extract_strided_slice %179 {offsets = [0, 96], sizes = [4, 32], strides = [1, 1]} : vector<4x128xf32> to vector<4x32xf32>
    %183 = vector.extract_strided_slice %174 {offsets = [0, 64], sizes = [4, 32], strides = [1, 1]} : vector<4x128xf32> to vector<4x32xf32>
    %184 = math.tanh %183 : vector<4x32xf32>
    %185 = arith.mulf %181, %158 : vector<4x32xf32>
    %186 = arith.mulf %180, %184 : vector<4x32xf32>
    %187 = arith.addf %185, %186 : vector<4x32xf32>
    %188 = math.tanh %187 : vector<4x32xf32>
    %189 = arith.mulf %182, %188 : vector<4x32xf32>
    %190 = vector.extract_strided_slice %189 {offsets = [0, 0], sizes = [2, 32], strides = [1, 1]} : vector<4x32xf32> to vector<2x32xf32>
    %c10_40 = arith.constant 10 : index
    %c0_41 = arith.constant 0 : index
    %191 = vector.load %arg16[%c10_40, %c0_41] : memref<16x128xf32, #tpu.memory_space<vmem>>, vector<2x32xf32>
    tpu.vector_store %arg16[%c10_40, %c0_41], %190 {strides = array<i32>} : memref<16x128xf32, #tpu.memory_space<vmem>>, vector<2x32xf32>,
    %192 = vector.extract_strided_slice %189 {offsets = [2, 0], sizes = [2, 32], strides = [1, 1]} : vector<4x32xf32> to vector<2x32xf32>
    %c4_42 = arith.constant 4 : index
    %c32_43 = arith.constant 32 : index
    %193 = vector.load %arg16[%c4_42, %c32_43] : memref<16x128xf32, #tpu.memory_space<vmem>>, vector<2x32xf32>
    tpu.vector_store %arg16[%c4_42, %c32_43], %192 {strides = array<i32>} : memref<16x128xf32, #tpu.memory_space<vmem>>, vector<2x32xf32>,
    %194 = vector.extract_strided_slice %16 {offsets = [12, 0], sizes = [2, 128], strides = [1, 1]} : vector<16x256xf32> to vector<2x128xf32>
    %195 = vector.extract_strided_slice %16 {offsets = [2, 128], sizes = [2, 128], strides = [1, 1]} : vector<16x256xf32> to vector<2x128xf32>
    %196 = tpu.concatenate %194, %195 in 0 : vector<2x128xf32>, vector<2x128xf32> -> vector<4x128xf32>
    %cst_44 = arith.constant dense<0.000000e+00> : vector<4x256xf32>
    %197 = tpu.matmul %189, %17, %cst_44 {dimension_numbers = #tpu.dot_dimension_numbers<[1], [0], [0], [1], [0, 0, 1, 1], [], []>} : vector<4x32xf32>, vector<32x256xf32>, vector<4x256xf32> -> vector<4x256xf32>
    %198 = vector.extract_strided_slice %197 {offsets = [0, 0], sizes = [4, 128], strides = [1, 1]} : vector<4x256xf32> to vector<4x128xf32>
    %199 = vector.extract_strided_slice %197 {offsets = [0, 128], sizes = [4, 128], strides = [1, 1]} : vector<4x256xf32> to vector<4x128xf32>
    %200 = vector.shape_cast %11 : vector<4x1xi1> to vector<4x1xi1>
    %201 = vector.broadcast %200 : vector<4x1xi1> to vector<4x128xi1>
    %202 = arith.select %201, %198, %199 : vector<4x128xi1>, vector<4x128xf32>
    %203 = arith.addf %196, %202 : vector<4x128xf32>
    %204 = arith.negf %203 : vector<4x128xf32>
    %205 = math.exp %204 : vector<4x128xf32>
    %cst_45 = arith.constant 1.000000e+00 : f32
    %206 = vector.broadcast %cst_45 : f32 to vector<4x128xf32>
    %207 = arith.addf %206, %205 : vector<4x128xf32>
    %208 = arith.divf %206, %207 : vector<4x128xf32>
    %209 = vector.extract_strided_slice %208 {offsets = [0, 0], sizes = [4, 32], strides = [1, 1]} : vector<4x128xf32> to vector<4x32xf32>
    %210 = vector.extract_strided_slice %208 {offsets = [0, 32], sizes = [4, 32], strides = [1, 1]} : vector<4x128xf32> to vector<4x32xf32>
    %211 = vector.extract_strided_slice %208 {offsets = [0, 96], sizes = [4, 32], strides = [1, 1]} : vector<4x128xf32> to vector<4x32xf32>
    %212 = vector.extract_strided_slice %203 {offsets = [0, 64], sizes = [4, 32], strides = [1, 1]} : vector<4x128xf32> to vector<4x32xf32>
    %213 = math.tanh %212 : vector<4x32xf32>
    %214 = arith.mulf %210, %187 : vector<4x32xf32>
    %215 = arith.mulf %209, %213 : vector<4x32xf32>
    %216 = arith.addf %214, %215 : vector<4x32xf32>
    %217 = math.tanh %216 : vector<4x32xf32>
    %218 = arith.mulf %211, %217 : vector<4x32xf32>
    %219 = vector.extract_strided_slice %218 {offsets = [0, 0], sizes = [2, 32], strides = [1, 1]} : vector<4x32xf32> to vector<2x32xf32>
    %c12_46 = arith.constant 12 : index
    %c0_47 = arith.constant 0 : index
    %220 = vector.load %arg16[%c12_46, %c0_47] : memref<16x128xf32, #tpu.memory_space<vmem>>, vector<2x32xf32>
    tpu.vector_store %arg16[%c12_46, %c0_47], %219 {strides = array<i32>} : memref<16x128xf32, #tpu.memory_space<vmem>>, vector<2x32xf32>,
    %221 = vector.extract_strided_slice %218 {offsets = [2, 0], sizes = [2, 32], strides = [1, 1]} : vector<4x32xf32> to vector<2x32xf32>
    %c2_48 = arith.constant 2 : index
    %c32_49 = arith.constant 32 : index
    %222 = vector.load %arg16[%c2_48, %c32_49] : memref<16x128xf32, #tpu.memory_space<vmem>>, vector<2x32xf32>
    tpu.vector_store %arg16[%c2_48, %c32_49], %221 {strides = array<i32>} : memref<16x128xf32, #tpu.memory_space<vmem>>, vector<2x32xf32>,
    %223 = vector.extract_strided_slice %16 {offsets = [14, 0], sizes = [2, 128], strides = [1, 1]} : vector<16x256xf32> to vector<2x128xf32>
    %224 = vector.extract_strided_slice %16 {offsets = [0, 128], sizes = [2, 128], strides = [1, 1]} : vector<16x256xf32> to vector<2x128xf32>
    %225 = tpu.concatenate %223, %224 in 0 : vector<2x128xf32>, vector<2x128xf32> -> vector<4x128xf32>
    %cst_50 = arith.constant dense<0.000000e+00> : vector<4x256xf32>
    %226 = tpu.matmul %218, %17, %cst_50 {dimension_numbers = #tpu.dot_dimension_numbers<[1], [0], [0], [1], [0, 0, 1, 1], [], []>} : vector<4x32xf32>, vector<32x256xf32>, vector<4x256xf32> -> vector<4x256xf32>
    %227 = vector.extract_strided_slice %226 {offsets = [0, 0], sizes = [4, 128], strides = [1, 1]} : vector<4x256xf32> to vector<4x128xf32>
    %228 = vector.extract_strided_slice %226 {offsets = [0, 128], sizes = [4, 128], strides = [1, 1]} : vector<4x256xf32> to vector<4x128xf32>
    %229 = vector.shape_cast %11 : vector<4x1xi1> to vector<4x1xi1>
    %230 = vector.broadcast %229 : vector<4x1xi1> to vector<4x128xi1>
    %231 = arith.select %230, %227, %228 : vector<4x128xi1>, vector<4x128xf32>
    %232 = arith.addf %225, %231 : vector<4x128xf32>
    %233 = arith.negf %232 : vector<4x128xf32>
    %234 = math.exp %233 : vector<4x128xf32>
    %cst_51 = arith.constant 1.000000e+00 : f32
    %235 = vector.broadcast %cst_51 : f32 to vector<4x128xf32>
    %236 = arith.addf %235, %234 : vector<4x128xf32>
    %237 = arith.divf %235, %236 : vector<4x128xf32>
    %238 = vector.extract_strided_slice %237 {offsets = [0, 0], sizes = [4, 32], strides = [1, 1]} : vector<4x128xf32> to vector<4x32xf32>
    %239 = vector.extract_strided_slice %237 {offsets = [0, 32], sizes = [4, 32], strides = [1, 1]} : vector<4x128xf32> to vector<4x32xf32>
    %240 = vector.extract_strided_slice %237 {offsets = [0, 96], sizes = [4, 32], strides = [1, 1]} : vector<4x128xf32> to vector<4x32xf32>
    %241 = vector.extract_strided_slice %232 {offsets = [0, 64], sizes = [4, 32], strides = [1, 1]} : vector<4x128xf32> to vector<4x32xf32>
    %242 = math.tanh %241 : vector<4x32xf32>
    %243 = arith.mulf %239, %216 : vector<4x32xf32>
    %244 = arith.mulf %238, %242 : vector<4x32xf32>
    %245 = arith.addf %243, %244 : vector<4x32xf32>
    %246 = math.tanh %245 : vector<4x32xf32>
    %247 = arith.mulf %240, %246 : vector<4x32xf32>
    %248 = vector.extract_strided_slice %247 {offsets = [0, 0], sizes = [2, 32], strides = [1, 1]} : vector<4x32xf32> to vector<2x32xf32>
    %c14_52 = arith.constant 14 : index
    %c0_53 = arith.constant 0 : index
    %249 = vector.load %arg16[%c14_52, %c0_53] : memref<16x128xf32, #tpu.memory_space<vmem>>, vector<2x32xf32>
    tpu.vector_store %arg16[%c14_52, %c0_53], %248 {strides = array<i32>} : memref<16x128xf32, #tpu.memory_space<vmem>>, vector<2x32xf32>,
    %250 = vector.extract_strided_slice %247 {offsets = [2, 0], sizes = [2, 32], strides = [1, 1]} : vector<4x32xf32> to vector<2x32xf32>
    %c0_54 = arith.constant 0 : index
    %c32_55 = arith.constant 32 : index
    %251 = vector.load %arg16[%c0_54, %c32_55] : memref<16x128xf32, #tpu.memory_space<vmem>>, vector<2x32xf32>
    tpu.vector_store %arg16[%c0_54, %c32_55], %250 {strides = array<i32>} : memref<16x128xf32, #tpu.memory_space<vmem>>, vector<2x32xf32>,
    %c0_56 = arith.constant 0 : index
    %c0_57 = arith.constant 0 : index
    %252 = vector.load %arg16[%c0_56, %c0_57] : memref<16x128xf32, #tpu.memory_space<vmem>>, vector<16x64xf32>
    %c0_58 = arith.constant 0 : index
    %c0_59 = arith.constant 0 : index
    %253 = vector.load %arg8[%c0_58, %c0_59] : memref<64x256xf32, #tpu.memory_space<vmem>>, vector<64x256xf32>
    %cst_60 = arith.constant dense<0.000000e+00> : vector<16x256xf32>
    %254 = tpu.matmul %252, %253, %cst_60 {dimension_numbers = #tpu.dot_dimension_numbers<[1], [0], [0], [1], [0, 0, 1, 1], [], []>} : vector<16x64xf32>, vector<64x256xf32>, vector<16x256xf32> -> vector<16x256xf32>
    %c0_61 = arith.constant 0 : index
    %c0_62 = arith.constant 0 : index
    %255 = vector.load %arg9[%c0_61, %c0_62] : memref<1x256xf32, #tpu.memory_space<vmem>>, vector<1x256xf32>
    %256 = vector.broadcast %255 : vector<1x256xf32> to vector<16x256xf32>
    %257 = arith.addf %254, %256 : vector<16x256xf32>
    %c0_63 = arith.constant 0 : index
    %c0_64 = arith.constant 0 : index
    %258 = vector.load %arg10[%c0_63, %c0_64] : memref<32x256xf32, #tpu.memory_space<vmem>>, vector<32x256xf32>
    %cst_65 = arith.constant 0.000000e+00 : f32
    %259 = vector.broadcast %cst_65 : f32 to vector<4x32xf32>
    %cst_66 = arith.constant 0.000000e+00 : f32
    %260 = vector.broadcast %cst_66 : f32 to vector<4x32xf32>
    %261 = vector.extract_strided_slice %257 {offsets = [0, 0], sizes = [2, 128], strides = [1, 1]} : vector<16x256xf32> to vector<2x128xf32>
    %262 = vector.extract_strided_slice %257 {offsets = [14, 128], sizes = [2, 128], strides = [1, 1]} : vector<16x256xf32> to vector<2x128xf32>
    %263 = tpu.concatenate %261, %262 in 0 : vector<2x128xf32>, vector<2x128xf32> -> vector<4x128xf32>
    %cst_67 = arith.constant dense<0.000000e+00> : vector<4x256xf32>
    %264 = tpu.matmul %259, %258, %cst_67 {dimension_numbers = #tpu.dot_dimension_numbers<[1], [0], [0], [1], [0, 0, 1, 1], [], []>} : vector<4x32xf32>, vector<32x256xf32>, vector<4x256xf32> -> vector<4x256xf32>
    %265 = vector.extract_strided_slice %264 {offsets = [0, 0], sizes = [4, 128], strides = [1, 1]} : vector<4x256xf32> to vector<4x128xf32>
    %266 = vector.extract_strided_slice %264 {offsets = [0, 128], sizes = [4, 128], strides = [1, 1]} : vector<4x256xf32> to vector<4x128xf32>
    %267 = vector.shape_cast %11 : vector<4x1xi1> to vector<4x1xi1>
    %268 = vector.broadcast %267 : vector<4x1xi1> to vector<4x128xi1>
    %269 = arith.select %268, %265, %266 : vector<4x128xi1>, vector<4x128xf32>
    %270 = arith.addf %263, %269 : vector<4x128xf32>
    %271 = arith.negf %270 : vector<4x128xf32>
    %272 = math.exp %271 : vector<4x128xf32>
    %cst_68 = arith.constant 1.000000e+00 : f32
    %273 = vector.broadcast %cst_68 : f32 to vector<4x128xf32>
    %274 = arith.addf %273, %272 : vector<4x128xf32>
    %275 = arith.divf %273, %274 : vector<4x128xf32>
    %276 = vector.extract_strided_slice %275 {offsets = [0, 0], sizes = [4, 32], strides = [1, 1]} : vector<4x128xf32> to vector<4x32xf32>
    %277 = vector.extract_strided_slice %275 {offsets = [0, 32], sizes = [4, 32], strides = [1, 1]} : vector<4x128xf32> to vector<4x32xf32>
    %278 = vector.extract_strided_slice %275 {offsets = [0, 96], sizes = [4, 32], strides = [1, 1]} : vector<4x128xf32> to vector<4x32xf32>
    %279 = vector.extract_strided_slice %270 {offsets = [0, 64], sizes = [4, 32], strides = [1, 1]} : vector<4x128xf32> to vector<4x32xf32>
    %280 = math.tanh %279 : vector<4x32xf32>
    %281 = arith.mulf %277, %260 : vector<4x32xf32>
    %282 = arith.mulf %276, %280 : vector<4x32xf32>
    %283 = arith.addf %281, %282 : vector<4x32xf32>
    %284 = math.tanh %283 : vector<4x32xf32>
    %285 = arith.mulf %278, %284 : vector<4x32xf32>
    %286 = vector.extract_strided_slice %285 {offsets = [0, 0], sizes = [2, 32], strides = [1, 1]} : vector<4x32xf32> to vector<2x32xf32>
    %c0_69 = arith.constant 0 : index
    %c64 = arith.constant 64 : index
    %287 = vector.load %arg16[%c0_69, %c64] : memref<16x128xf32, #tpu.memory_space<vmem>>, vector<2x32xf32>
    tpu.vector_store %arg16[%c0_69, %c64], %286 {strides = array<i32>} : memref<16x128xf32, #tpu.memory_space<vmem>>, vector<2x32xf32>,
    %288 = vector.extract_strided_slice %285 {offsets = [2, 0], sizes = [2, 32], strides = [1, 1]} : vector<4x32xf32> to vector<2x32xf32>
    %c14_70 = arith.constant 14 : index
    %c96 = arith.constant 96 : index
    %289 = vector.load %arg16[%c14_70, %c96] : memref<16x128xf32, #tpu.memory_space<vmem>>, vector<2x32xf32>
    tpu.vector_store %arg16[%c14_70, %c96], %288 {strides = array<i32>} : memref<16x128xf32, #tpu.memory_space<vmem>>, vector<2x32xf32>,
    %290 = vector.extract_strided_slice %257 {offsets = [2, 0], sizes = [2, 128], strides = [1, 1]} : vector<16x256xf32> to vector<2x128xf32>
    %291 = vector.extract_strided_slice %257 {offsets = [12, 128], sizes = [2, 128], strides = [1, 1]} : vector<16x256xf32> to vector<2x128xf32>
    %292 = tpu.concatenate %290, %291 in 0 : vector<2x128xf32>, vector<2x128xf32> -> vector<4x128xf32>
    %cst_71 = arith.constant dense<0.000000e+00> : vector<4x256xf32>
    %293 = tpu.matmul %285, %258, %cst_71 {dimension_numbers = #tpu.dot_dimension_numbers<[1], [0], [0], [1], [0, 0, 1, 1], [], []>} : vector<4x32xf32>, vector<32x256xf32>, vector<4x256xf32> -> vector<4x256xf32>
    %294 = vector.extract_strided_slice %293 {offsets = [0, 0], sizes = [4, 128], strides = [1, 1]} : vector<4x256xf32> to vector<4x128xf32>
    %295 = vector.extract_strided_slice %293 {offsets = [0, 128], sizes = [4, 128], strides = [1, 1]} : vector<4x256xf32> to vector<4x128xf32>
    %296 = vector.shape_cast %11 : vector<4x1xi1> to vector<4x1xi1>
    %297 = vector.broadcast %296 : vector<4x1xi1> to vector<4x128xi1>
    %298 = arith.select %297, %294, %295 : vector<4x128xi1>, vector<4x128xf32>
    %299 = arith.addf %292, %298 : vector<4x128xf32>
    %300 = arith.negf %299 : vector<4x128xf32>
    %301 = math.exp %300 : vector<4x128xf32>
    %cst_72 = arith.constant 1.000000e+00 : f32
    %302 = vector.broadcast %cst_72 : f32 to vector<4x128xf32>
    %303 = arith.addf %302, %301 : vector<4x128xf32>
    %304 = arith.divf %302, %303 : vector<4x128xf32>
    %305 = vector.extract_strided_slice %304 {offsets = [0, 0], sizes = [4, 32], strides = [1, 1]} : vector<4x128xf32> to vector<4x32xf32>
    %306 = vector.extract_strided_slice %304 {offsets = [0, 32], sizes = [4, 32], strides = [1, 1]} : vector<4x128xf32> to vector<4x32xf32>
    %307 = vector.extract_strided_slice %304 {offsets = [0, 96], sizes = [4, 32], strides = [1, 1]} : vector<4x128xf32> to vector<4x32xf32>
    %308 = vector.extract_strided_slice %299 {offsets = [0, 64], sizes = [4, 32], strides = [1, 1]} : vector<4x128xf32> to vector<4x32xf32>
    %309 = math.tanh %308 : vector<4x32xf32>
    %310 = arith.mulf %306, %283 : vector<4x32xf32>
    %311 = arith.mulf %305, %309 : vector<4x32xf32>
    %312 = arith.addf %310, %311 : vector<4x32xf32>
    %313 = math.tanh %312 : vector<4x32xf32>
    %314 = arith.mulf %307, %313 : vector<4x32xf32>
    %315 = vector.extract_strided_slice %314 {offsets = [0, 0], sizes = [2, 32], strides = [1, 1]} : vector<4x32xf32> to vector<2x32xf32>
    %c2_73 = arith.constant 2 : index
    %c64_74 = arith.constant 64 : index
    %316 = vector.load %arg16[%c2_73, %c64_74] : memref<16x128xf32, #tpu.memory_space<vmem>>, vector<2x32xf32>
    tpu.vector_store %arg16[%c2_73, %c64_74], %315 {strides = array<i32>} : memref<16x128xf32, #tpu.memory_space<vmem>>, vector<2x32xf32>,
    %317 = vector.extract_strided_slice %314 {offsets = [2, 0], sizes = [2, 32], strides = [1, 1]} : vector<4x32xf32> to vector<2x32xf32>
    %c12_75 = arith.constant 12 : index
    %c96_76 = arith.constant 96 : index
    %318 = vector.load %arg16[%c12_75, %c96_76] : memref<16x128xf32, #tpu.memory_space<vmem>>, vector<2x32xf32>
    tpu.vector_store %arg16[%c12_75, %c96_76], %317 {strides = array<i32>} : memref<16x128xf32, #tpu.memory_space<vmem>>, vector<2x32xf32>,
    %319 = vector.extract_strided_slice %257 {offsets = [4, 0], sizes = [2, 128], strides = [1, 1]} : vector<16x256xf32> to vector<2x128xf32>
    %320 = vector.extract_strided_slice %257 {offsets = [10, 128], sizes = [2, 128], strides = [1, 1]} : vector<16x256xf32> to vector<2x128xf32>
    %321 = tpu.concatenate %319, %320 in 0 : vector<2x128xf32>, vector<2x128xf32> -> vector<4x128xf32>
    %cst_77 = arith.constant dense<0.000000e+00> : vector<4x256xf32>
    %322 = tpu.matmul %314, %258, %cst_77 {dimension_numbers = #tpu.dot_dimension_numbers<[1], [0], [0], [1], [0, 0, 1, 1], [], []>} : vector<4x32xf32>, vector<32x256xf32>, vector<4x256xf32> -> vector<4x256xf32>
    %323 = vector.extract_strided_slice %322 {offsets = [0, 0], sizes = [4, 128], strides = [1, 1]} : vector<4x256xf32> to vector<4x128xf32>
    %324 = vector.extract_strided_slice %322 {offsets = [0, 128], sizes = [4, 128], strides = [1, 1]} : vector<4x256xf32> to vector<4x128xf32>
    %325 = vector.shape_cast %11 : vector<4x1xi1> to vector<4x1xi1>
    %326 = vector.broadcast %325 : vector<4x1xi1> to vector<4x128xi1>
    %327 = arith.select %326, %323, %324 : vector<4x128xi1>, vector<4x128xf32>
    %328 = arith.addf %321, %327 : vector<4x128xf32>
    %329 = arith.negf %328 : vector<4x128xf32>
    %330 = math.exp %329 : vector<4x128xf32>
    %cst_78 = arith.constant 1.000000e+00 : f32
    %331 = vector.broadcast %cst_78 : f32 to vector<4x128xf32>
    %332 = arith.addf %331, %330 : vector<4x128xf32>
    %333 = arith.divf %331, %332 : vector<4x128xf32>
    %334 = vector.extract_strided_slice %333 {offsets = [0, 0], sizes = [4, 32], strides = [1, 1]} : vector<4x128xf32> to vector<4x32xf32>
    %335 = vector.extract_strided_slice %333 {offsets = [0, 32], sizes = [4, 32], strides = [1, 1]} : vector<4x128xf32> to vector<4x32xf32>
    %336 = vector.extract_strided_slice %333 {offsets = [0, 96], sizes = [4, 32], strides = [1, 1]} : vector<4x128xf32> to vector<4x32xf32>
    %337 = vector.extract_strided_slice %328 {offsets = [0, 64], sizes = [4, 32], strides = [1, 1]} : vector<4x128xf32> to vector<4x32xf32>
    %338 = math.tanh %337 : vector<4x32xf32>
    %339 = arith.mulf %335, %312 : vector<4x32xf32>
    %340 = arith.mulf %334, %338 : vector<4x32xf32>
    %341 = arith.addf %339, %340 : vector<4x32xf32>
    %342 = math.tanh %341 : vector<4x32xf32>
    %343 = arith.mulf %336, %342 : vector<4x32xf32>
    %344 = vector.extract_strided_slice %343 {offsets = [0, 0], sizes = [2, 32], strides = [1, 1]} : vector<4x32xf32> to vector<2x32xf32>
    %c4_79 = arith.constant 4 : index
    %c64_80 = arith.constant 64 : index
    %345 = vector.load %arg16[%c4_79, %c64_80] : memref<16x128xf32, #tpu.memory_space<vmem>>, vector<2x32xf32>
    tpu.vector_store %arg16[%c4_79, %c64_80], %344 {strides = array<i32>} : memref<16x128xf32, #tpu.memory_space<vmem>>, vector<2x32xf32>,
    %346 = vector.extract_strided_slice %343 {offsets = [2, 0], sizes = [2, 32], strides = [1, 1]} : vector<4x32xf32> to vector<2x32xf32>
    %c10_81 = arith.constant 10 : index
    %c96_82 = arith.constant 96 : index
    %347 = vector.load %arg16[%c10_81, %c96_82] : memref<16x128xf32, #tpu.memory_space<vmem>>, vector<2x32xf32>
    tpu.vector_store %arg16[%c10_81, %c96_82], %346 {strides = array<i32>} : memref<16x128xf32, #tpu.memory_space<vmem>>, vector<2x32xf32>,
    %348 = vector.extract_strided_slice %257 {offsets = [6, 0], sizes = [2, 128], strides = [1, 1]} : vector<16x256xf32> to vector<2x128xf32>
    %349 = vector.extract_strided_slice %257 {offsets = [8, 128], sizes = [2, 128], strides = [1, 1]} : vector<16x256xf32> to vector<2x128xf32>
    %350 = tpu.concatenate %348, %349 in 0 : vector<2x128xf32>, vector<2x128xf32> -> vector<4x128xf32>
    %cst_83 = arith.constant dense<0.000000e+00> : vector<4x256xf32>
    %351 = tpu.matmul %343, %258, %cst_83 {dimension_numbers = #tpu.dot_dimension_numbers<[1], [0], [0], [1], [0, 0, 1, 1], [], []>} : vector<4x32xf32>, vector<32x256xf32>, vector<4x256xf32> -> vector<4x256xf32>
    %352 = vector.extract_strided_slice %351 {offsets = [0, 0], sizes = [4, 128], strides = [1, 1]} : vector<4x256xf32> to vector<4x128xf32>
    %353 = vector.extract_strided_slice %351 {offsets = [0, 128], sizes = [4, 128], strides = [1, 1]} : vector<4x256xf32> to vector<4x128xf32>
    %354 = vector.shape_cast %11 : vector<4x1xi1> to vector<4x1xi1>
    %355 = vector.broadcast %354 : vector<4x1xi1> to vector<4x128xi1>
    %356 = arith.select %355, %352, %353 : vector<4x128xi1>, vector<4x128xf32>
    %357 = arith.addf %350, %356 : vector<4x128xf32>
    %358 = arith.negf %357 : vector<4x128xf32>
    %359 = math.exp %358 : vector<4x128xf32>
    %cst_84 = arith.constant 1.000000e+00 : f32
    %360 = vector.broadcast %cst_84 : f32 to vector<4x128xf32>
    %361 = arith.addf %360, %359 : vector<4x128xf32>
    %362 = arith.divf %360, %361 : vector<4x128xf32>
    %363 = vector.extract_strided_slice %362 {offsets = [0, 0], sizes = [4, 32], strides = [1, 1]} : vector<4x128xf32> to vector<4x32xf32>
    %364 = vector.extract_strided_slice %362 {offsets = [0, 32], sizes = [4, 32], strides = [1, 1]} : vector<4x128xf32> to vector<4x32xf32>
    %365 = vector.extract_strided_slice %362 {offsets = [0, 96], sizes = [4, 32], strides = [1, 1]} : vector<4x128xf32> to vector<4x32xf32>
    %366 = vector.extract_strided_slice %357 {offsets = [0, 64], sizes = [4, 32], strides = [1, 1]} : vector<4x128xf32> to vector<4x32xf32>
    %367 = math.tanh %366 : vector<4x32xf32>
    %368 = arith.mulf %364, %341 : vector<4x32xf32>
    %369 = arith.mulf %363, %367 : vector<4x32xf32>
    %370 = arith.addf %368, %369 : vector<4x32xf32>
    %371 = math.tanh %370 : vector<4x32xf32>
    %372 = arith.mulf %365, %371 : vector<4x32xf32>
    %373 = vector.extract_strided_slice %372 {offsets = [0, 0], sizes = [2, 32], strides = [1, 1]} : vector<4x32xf32> to vector<2x32xf32>
    %c6_85 = arith.constant 6 : index
    %c64_86 = arith.constant 64 : index
    %374 = vector.load %arg16[%c6_85, %c64_86] : memref<16x128xf32, #tpu.memory_space<vmem>>, vector<2x32xf32>
    tpu.vector_store %arg16[%c6_85, %c64_86], %373 {strides = array<i32>} : memref<16x128xf32, #tpu.memory_space<vmem>>, vector<2x32xf32>,
    %375 = vector.extract_strided_slice %372 {offsets = [2, 0], sizes = [2, 32], strides = [1, 1]} : vector<4x32xf32> to vector<2x32xf32>
    %c8_87 = arith.constant 8 : index
    %c96_88 = arith.constant 96 : index
    %376 = vector.load %arg16[%c8_87, %c96_88] : memref<16x128xf32, #tpu.memory_space<vmem>>, vector<2x32xf32>
    tpu.vector_store %arg16[%c8_87, %c96_88], %375 {strides = array<i32>} : memref<16x128xf32, #tpu.memory_space<vmem>>, vector<2x32xf32>,
    %377 = vector.extract_strided_slice %257 {offsets = [8, 0], sizes = [2, 128], strides = [1, 1]} : vector<16x256xf32> to vector<2x128xf32>
    %378 = vector.extract_strided_slice %257 {offsets = [6, 128], sizes = [2, 128], strides = [1, 1]} : vector<16x256xf32> to vector<2x128xf32>
    %379 = tpu.concatenate %377, %378 in 0 : vector<2x128xf32>, vector<2x128xf32> -> vector<4x128xf32>
    %cst_89 = arith.constant dense<0.000000e+00> : vector<4x256xf32>
    %380 = tpu.matmul %372, %258, %cst_89 {dimension_numbers = #tpu.dot_dimension_numbers<[1], [0], [0], [1], [0, 0, 1, 1], [], []>} : vector<4x32xf32>, vector<32x256xf32>, vector<4x256xf32> -> vector<4x256xf32>
    %381 = vector.extract_strided_slice %380 {offsets = [0, 0], sizes = [4, 128], strides = [1, 1]} : vector<4x256xf32> to vector<4x128xf32>
    %382 = vector.extract_strided_slice %380 {offsets = [0, 128], sizes = [4, 128], strides = [1, 1]} : vector<4x256xf32> to vector<4x128xf32>
    %383 = vector.shape_cast %11 : vector<4x1xi1> to vector<4x1xi1>
    %384 = vector.broadcast %383 : vector<4x1xi1> to vector<4x128xi1>
    %385 = arith.select %384, %381, %382 : vector<4x128xi1>, vector<4x128xf32>
    %386 = arith.addf %379, %385 : vector<4x128xf32>
    %387 = arith.negf %386 : vector<4x128xf32>
    %388 = math.exp %387 : vector<4x128xf32>
    %cst_90 = arith.constant 1.000000e+00 : f32
    %389 = vector.broadcast %cst_90 : f32 to vector<4x128xf32>
    %390 = arith.addf %389, %388 : vector<4x128xf32>
    %391 = arith.divf %389, %390 : vector<4x128xf32>
    %392 = vector.extract_strided_slice %391 {offsets = [0, 0], sizes = [4, 32], strides = [1, 1]} : vector<4x128xf32> to vector<4x32xf32>
    %393 = vector.extract_strided_slice %391 {offsets = [0, 32], sizes = [4, 32], strides = [1, 1]} : vector<4x128xf32> to vector<4x32xf32>
    %394 = vector.extract_strided_slice %391 {offsets = [0, 96], sizes = [4, 32], strides = [1, 1]} : vector<4x128xf32> to vector<4x32xf32>
    %395 = vector.extract_strided_slice %386 {offsets = [0, 64], sizes = [4, 32], strides = [1, 1]} : vector<4x128xf32> to vector<4x32xf32>
    %396 = math.tanh %395 : vector<4x32xf32>
    %397 = arith.mulf %393, %370 : vector<4x32xf32>
    %398 = arith.mulf %392, %396 : vector<4x32xf32>
    %399 = arith.addf %397, %398 : vector<4x32xf32>
    %400 = math.tanh %399 : vector<4x32xf32>
    %401 = arith.mulf %394, %400 : vector<4x32xf32>
    %402 = vector.extract_strided_slice %401 {offsets = [0, 0], sizes = [2, 32], strides = [1, 1]} : vector<4x32xf32> to vector<2x32xf32>
    %c8_91 = arith.constant 8 : index
    %c64_92 = arith.constant 64 : index
    %403 = vector.load %arg16[%c8_91, %c64_92] : memref<16x128xf32, #tpu.memory_space<vmem>>, vector<2x32xf32>
    tpu.vector_store %arg16[%c8_91, %c64_92], %402 {strides = array<i32>} : memref<16x128xf32, #tpu.memory_space<vmem>>, vector<2x32xf32>,
    %404 = vector.extract_strided_slice %401 {offsets = [2, 0], sizes = [2, 32], strides = [1, 1]} : vector<4x32xf32> to vector<2x32xf32>
    %c6_93 = arith.constant 6 : index
    %c96_94 = arith.constant 96 : index
    %405 = vector.load %arg16[%c6_93, %c96_94] : memref<16x128xf32, #tpu.memory_space<vmem>>, vector<2x32xf32>
    tpu.vector_store %arg16[%c6_93, %c96_94], %404 {strides = array<i32>} : memref<16x128xf32, #tpu.memory_space<vmem>>, vector<2x32xf32>,
    %406 = vector.extract_strided_slice %257 {offsets = [10, 0], sizes = [2, 128], strides = [1, 1]} : vector<16x256xf32> to vector<2x128xf32>
    %407 = vector.extract_strided_slice %257 {offsets = [4, 128], sizes = [2, 128], strides = [1, 1]} : vector<16x256xf32> to vector<2x128xf32>
    %408 = tpu.concatenate %406, %407 in 0 : vector<2x128xf32>, vector<2x128xf32> -> vector<4x128xf32>
    %cst_95 = arith.constant dense<0.000000e+00> : vector<4x256xf32>
    %409 = tpu.matmul %401, %258, %cst_95 {dimension_numbers = #tpu.dot_dimension_numbers<[1], [0], [0], [1], [0, 0, 1, 1], [], []>} : vector<4x32xf32>, vector<32x256xf32>, vector<4x256xf32> -> vector<4x256xf32>
    %410 = vector.extract_strided_slice %409 {offsets = [0, 0], sizes = [4, 128], strides = [1, 1]} : vector<4x256xf32> to vector<4x128xf32>
    %411 = vector.extract_strided_slice %409 {offsets = [0, 128], sizes = [4, 128], strides = [1, 1]} : vector<4x256xf32> to vector<4x128xf32>
    %412 = vector.shape_cast %11 : vector<4x1xi1> to vector<4x1xi1>
    %413 = vector.broadcast %412 : vector<4x1xi1> to vector<4x128xi1>
    %414 = arith.select %413, %410, %411 : vector<4x128xi1>, vector<4x128xf32>
    %415 = arith.addf %408, %414 : vector<4x128xf32>
    %416 = arith.negf %415 : vector<4x128xf32>
    %417 = math.exp %416 : vector<4x128xf32>
    %cst_96 = arith.constant 1.000000e+00 : f32
    %418 = vector.broadcast %cst_96 : f32 to vector<4x128xf32>
    %419 = arith.addf %418, %417 : vector<4x128xf32>
    %420 = arith.divf %418, %419 : vector<4x128xf32>
    %421 = vector.extract_strided_slice %420 {offsets = [0, 0], sizes = [4, 32], strides = [1, 1]} : vector<4x128xf32> to vector<4x32xf32>
    %422 = vector.extract_strided_slice %420 {offsets = [0, 32], sizes = [4, 32], strides = [1, 1]} : vector<4x128xf32> to vector<4x32xf32>
    %423 = vector.extract_strided_slice %420 {offsets = [0, 96], sizes = [4, 32], strides = [1, 1]} : vector<4x128xf32> to vector<4x32xf32>
    %424 = vector.extract_strided_slice %415 {offsets = [0, 64], sizes = [4, 32], strides = [1, 1]} : vector<4x128xf32> to vector<4x32xf32>
    %425 = math.tanh %424 : vector<4x32xf32>
    %426 = arith.mulf %422, %399 : vector<4x32xf32>
    %427 = arith.mulf %421, %425 : vector<4x32xf32>
    %428 = arith.addf %426, %427 : vector<4x32xf32>
    %429 = math.tanh %428 : vector<4x32xf32>
    %430 = arith.mulf %423, %429 : vector<4x32xf32>
    %431 = vector.extract_strided_slice %430 {offsets = [0, 0], sizes = [2, 32], strides = [1, 1]} : vector<4x32xf32> to vector<2x32xf32>
    %c10_97 = arith.constant 10 : index
    %c64_98 = arith.constant 64 : index
    %432 = vector.load %arg16[%c10_97, %c64_98] : memref<16x128xf32, #tpu.memory_space<vmem>>, vector<2x32xf32>
    tpu.vector_store %arg16[%c10_97, %c64_98], %431 {strides = array<i32>} : memref<16x128xf32, #tpu.memory_space<vmem>>, vector<2x32xf32>,
    %433 = vector.extract_strided_slice %430 {offsets = [2, 0], sizes = [2, 32], strides = [1, 1]} : vector<4x32xf32> to vector<2x32xf32>
    %c4_99 = arith.constant 4 : index
    %c96_100 = arith.constant 96 : index
    %434 = vector.load %arg16[%c4_99, %c96_100] : memref<16x128xf32, #tpu.memory_space<vmem>>, vector<2x32xf32>
    tpu.vector_store %arg16[%c4_99, %c96_100], %433 {strides = array<i32>} : memref<16x128xf32, #tpu.memory_space<vmem>>, vector<2x32xf32>,
    %435 = vector.extract_strided_slice %257 {offsets = [12, 0], sizes = [2, 128], strides = [1, 1]} : vector<16x256xf32> to vector<2x128xf32>
    %436 = vector.extract_strided_slice %257 {offsets = [2, 128], sizes = [2, 128], strides = [1, 1]} : vector<16x256xf32> to vector<2x128xf32>
    %437 = tpu.concatenate %435, %436 in 0 : vector<2x128xf32>, vector<2x128xf32> -> vector<4x128xf32>
    %cst_101 = arith.constant dense<0.000000e+00> : vector<4x256xf32>
    %438 = tpu.matmul %430, %258, %cst_101 {dimension_numbers = #tpu.dot_dimension_numbers<[1], [0], [0], [1], [0, 0, 1, 1], [], []>} : vector<4x32xf32>, vector<32x256xf32>, vector<4x256xf32> -> vector<4x256xf32>
    %439 = vector.extract_strided_slice %438 {offsets = [0, 0], sizes = [4, 128], strides = [1, 1]} : vector<4x256xf32> to vector<4x128xf32>
    %440 = vector.extract_strided_slice %438 {offsets = [0, 128], sizes = [4, 128], strides = [1, 1]} : vector<4x256xf32> to vector<4x128xf32>
    %441 = vector.shape_cast %11 : vector<4x1xi1> to vector<4x1xi1>
    %442 = vector.broadcast %441 : vector<4x1xi1> to vector<4x128xi1>
    %443 = arith.select %442, %439, %440 : vector<4x128xi1>, vector<4x128xf32>
    %444 = arith.addf %437, %443 : vector<4x128xf32>
    %445 = arith.negf %444 : vector<4x128xf32>
    %446 = math.exp %445 : vector<4x128xf32>
    %cst_102 = arith.constant 1.000000e+00 : f32
    %447 = vector.broadcast %cst_102 : f32 to vector<4x128xf32>
    %448 = arith.addf %447, %446 : vector<4x128xf32>
    %449 = arith.divf %447, %448 : vector<4x128xf32>
    %450 = vector.extract_strided_slice %449 {offsets = [0, 0], sizes = [4, 32], strides = [1, 1]} : vector<4x128xf32> to vector<4x32xf32>
    %451 = vector.extract_strided_slice %449 {offsets = [0, 32], sizes = [4, 32], strides = [1, 1]} : vector<4x128xf32> to vector<4x32xf32>
    %452 = vector.extract_strided_slice %449 {offsets = [0, 96], sizes = [4, 32], strides = [1, 1]} : vector<4x128xf32> to vector<4x32xf32>
    %453 = vector.extract_strided_slice %444 {offsets = [0, 64], sizes = [4, 32], strides = [1, 1]} : vector<4x128xf32> to vector<4x32xf32>
    %454 = math.tanh %453 : vector<4x32xf32>
    %455 = arith.mulf %451, %428 : vector<4x32xf32>
    %456 = arith.mulf %450, %454 : vector<4x32xf32>
    %457 = arith.addf %455, %456 : vector<4x32xf32>
    %458 = math.tanh %457 : vector<4x32xf32>
    %459 = arith.mulf %452, %458 : vector<4x32xf32>
    %460 = vector.extract_strided_slice %459 {offsets = [0, 0], sizes = [2, 32], strides = [1, 1]} : vector<4x32xf32> to vector<2x32xf32>
    %c12_103 = arith.constant 12 : index
    %c64_104 = arith.constant 64 : index
    %461 = vector.load %arg16[%c12_103, %c64_104] : memref<16x128xf32, #tpu.memory_space<vmem>>, vector<2x32xf32>
    tpu.vector_store %arg16[%c12_103, %c64_104], %460 {strides = array<i32>} : memref<16x128xf32, #tpu.memory_space<vmem>>, vector<2x32xf32>,
    %462 = vector.extract_strided_slice %459 {offsets = [2, 0], sizes = [2, 32], strides = [1, 1]} : vector<4x32xf32> to vector<2x32xf32>
    %c2_105 = arith.constant 2 : index
    %c96_106 = arith.constant 96 : index
    %463 = vector.load %arg16[%c2_105, %c96_106] : memref<16x128xf32, #tpu.memory_space<vmem>>, vector<2x32xf32>
    tpu.vector_store %arg16[%c2_105, %c96_106], %462 {strides = array<i32>} : memref<16x128xf32, #tpu.memory_space<vmem>>, vector<2x32xf32>,
    %464 = vector.extract_strided_slice %257 {offsets = [14, 0], sizes = [2, 128], strides = [1, 1]} : vector<16x256xf32> to vector<2x128xf32>
    %465 = vector.extract_strided_slice %257 {offsets = [0, 128], sizes = [2, 128], strides = [1, 1]} : vector<16x256xf32> to vector<2x128xf32>
    %466 = tpu.concatenate %464, %465 in 0 : vector<2x128xf32>, vector<2x128xf32> -> vector<4x128xf32>
    %cst_107 = arith.constant dense<0.000000e+00> : vector<4x256xf32>
    %467 = tpu.matmul %459, %258, %cst_107 {dimension_numbers = #tpu.dot_dimension_numbers<[1], [0], [0], [1], [0, 0, 1, 1], [], []>} : vector<4x32xf32>, vector<32x256xf32>, vector<4x256xf32> -> vector<4x256xf32>
    %468 = vector.extract_strided_slice %467 {offsets = [0, 0], sizes = [4, 128], strides = [1, 1]} : vector<4x256xf32> to vector<4x128xf32>
    %469 = vector.extract_strided_slice %467 {offsets = [0, 128], sizes = [4, 128], strides = [1, 1]} : vector<4x256xf32> to vector<4x128xf32>
    %470 = vector.shape_cast %11 : vector<4x1xi1> to vector<4x1xi1>
    %471 = vector.broadcast %470 : vector<4x1xi1> to vector<4x128xi1>
    %472 = arith.select %471, %468, %469 : vector<4x128xi1>, vector<4x128xf32>
    %473 = arith.addf %466, %472 : vector<4x128xf32>
    %474 = arith.negf %473 : vector<4x128xf32>
    %475 = math.exp %474 : vector<4x128xf32>
    %cst_108 = arith.constant 1.000000e+00 : f32
    %476 = vector.broadcast %cst_108 : f32 to vector<4x128xf32>
    %477 = arith.addf %476, %475 : vector<4x128xf32>
    %478 = arith.divf %476, %477 : vector<4x128xf32>
    %479 = vector.extract_strided_slice %478 {offsets = [0, 0], sizes = [4, 32], strides = [1, 1]} : vector<4x128xf32> to vector<4x32xf32>
    %480 = vector.extract_strided_slice %478 {offsets = [0, 32], sizes = [4, 32], strides = [1, 1]} : vector<4x128xf32> to vector<4x32xf32>
    %481 = vector.extract_strided_slice %478 {offsets = [0, 96], sizes = [4, 32], strides = [1, 1]} : vector<4x128xf32> to vector<4x32xf32>
    %482 = vector.extract_strided_slice %473 {offsets = [0, 64], sizes = [4, 32], strides = [1, 1]} : vector<4x128xf32> to vector<4x32xf32>
    %483 = math.tanh %482 : vector<4x32xf32>
    %484 = arith.mulf %480, %457 : vector<4x32xf32>
    %485 = arith.mulf %479, %483 : vector<4x32xf32>
    %486 = arith.addf %484, %485 : vector<4x32xf32>
    %487 = math.tanh %486 : vector<4x32xf32>
    %488 = arith.mulf %481, %487 : vector<4x32xf32>
    %489 = vector.extract_strided_slice %488 {offsets = [0, 0], sizes = [2, 32], strides = [1, 1]} : vector<4x32xf32> to vector<2x32xf32>
    %c14_109 = arith.constant 14 : index
    %c64_110 = arith.constant 64 : index
    %490 = vector.load %arg16[%c14_109, %c64_110] : memref<16x128xf32, #tpu.memory_space<vmem>>, vector<2x32xf32>
    tpu.vector_store %arg16[%c14_109, %c64_110], %489 {strides = array<i32>} : memref<16x128xf32, #tpu.memory_space<vmem>>, vector<2x32xf32>,
    %491 = vector.extract_strided_slice %488 {offsets = [2, 0], sizes = [2, 32], strides = [1, 1]} : vector<4x32xf32> to vector<2x32xf32>
    %c0_111 = arith.constant 0 : index
    %c96_112 = arith.constant 96 : index
    %492 = vector.load %arg16[%c0_111, %c96_112] : memref<16x128xf32, #tpu.memory_space<vmem>>, vector<2x32xf32>
    tpu.vector_store %arg16[%c0_111, %c96_112], %491 {strides = array<i32>} : memref<16x128xf32, #tpu.memory_space<vmem>>, vector<2x32xf32>,
    %c0_113 = arith.constant 0 : index
    %c0_114 = arith.constant 0 : index
    %493 = vector.load %arg16[%c0_113, %c0_114] : memref<16x128xf32, #tpu.memory_space<vmem>>, vector<16x128xf32>
    %c0_115 = arith.constant 0 : index
    %c0_116 = arith.constant 0 : index
    %494 = vector.load %arg11[%c0_115, %c0_116] : memref<128x8xf32, #tpu.memory_space<vmem>>, vector<128x8xf32>
    %cst_117 = arith.constant dense<0.000000e+00> : vector<16x8xf32>
    %495 = tpu.matmul %493, %494, %cst_117 {dimension_numbers = #tpu.dot_dimension_numbers<[1], [0], [0], [1], [0, 0, 1, 1], [], []>} : vector<16x128xf32>, vector<128x8xf32>, vector<16x8xf32> -> vector<16x8xf32>
    %c0_118 = arith.constant 0 : index
    %c0_119 = arith.constant 0 : index
    %496 = vector.load %arg12[%c0_118, %c0_119] : memref<1x8xf32, #tpu.memory_space<vmem>>, vector<1x8xf32>
    %497 = vector.broadcast %496 : vector<1x8xf32> to vector<16x8xf32>
    %498 = arith.addf %495, %497 : vector<16x8xf32>
    %c0_120 = arith.constant 0 : index
    %c0_121 = arith.constant 0 : index
    %499 = vector.load %arg2[%c0_120, %c0_121] : memref<2x1xi32, #tpu.memory_space<vmem>>, vector<2x1xi32>
    %c0_122 = arith.constant 0 : index
    %c0_123 = arith.constant 0 : index
    %500 = vector.load %arg13[%c0_122, %c0_123] : memref<8x8xf32, #tpu.memory_space<vmem>>, vector<8x8xf32>
    %501 = vector.extract_strided_slice %498 {offsets = [0, 0], sizes = [2, 8], strides = [1, 1]} : vector<16x8xf32> to vector<2x8xf32>
    %502 = tpu.iota {dimensions = array<i32: 2>} : vector<2x8x8xi32>
    %503 = tpu.iota {dimensions = array<i32: 1>} : vector<2x8xi32>
    %504 = tpu.iota {dimensions = array<i32: 1>} : vector<2x8xi32>
    %505 = vector.shape_cast %501 : vector<2x8xf32> to vector<2x1x8xf32>
    %506 = vector.shape_cast %500 : vector<8x8xf32> to vector<1x8x8xf32>
    %507 = vector.broadcast %505 : vector<2x1x8xf32> to vector<2x8x8xf32>
    %508 = vector.broadcast %506 : vector<1x8x8xf32> to vector<2x8x8xf32>
    %509 = arith.addf %507, %508 : vector<2x8x8xf32>
    %cst_124 = arith.constant dense<0xFF800000> : vector<2x8xf32>
    %510 = vector.multi_reduction <maximumf>, %509, %cst_124 [2] : vector<2x8x8xf32> to vector<2x8xf32>
    %511 = vector.shape_cast %510 : vector<2x8xf32> to vector<2x8x1xf32>
    %512 = vector.broadcast %511 : vector<2x8x1xf32> to vector<2x8x8xf32>
    %513 = arith.cmpf oeq, %509, %512 : vector<2x8x8xf32>
    %c8_i32 = arith.constant 8 : i32
    %514 = vector.broadcast %c8_i32 : i32 to vector<2x8x8xi32>
    %515 = arith.select %513, %502, %514 : vector<2x8x8xi1>, vector<2x8x8xi32>
    %cst_125 = arith.constant dense<2147483647> : vector<2x8xi32>
    %516 = vector.multi_reduction <minsi>, %515, %cst_125 [2] : vector<2x8x8xi32> to vector<2x8xi32>
    %517 = vector.extract_strided_slice %498 {offsets = [2, 0], sizes = [2, 8], strides = [1, 1]} : vector<16x8xf32> to vector<2x8xf32>
    %518 = arith.addf %510, %517 : vector<2x8xf32>
    %c1_i32 = arith.constant 1 : i32
    %519 = vector.broadcast %c1_i32 : i32 to vector<2x1xi32>
    %520 = arith.cmpi sgt, %499, %519 : vector<2x1xi32>
    %521 = vector.shape_cast %520 : vector<2x1xi1> to vector<2x1xi1>
    %522 = vector.broadcast %521 : vector<2x1xi1> to vector<2x8xi1>
    %523 = arith.select %522, %518, %501 : vector<2x8xi1>, vector<2x8xf32>
    %524 = vector.shape_cast %523 : vector<2x8xf32> to vector<2x1x8xf32>
    %525 = vector.shape_cast %500 : vector<8x8xf32> to vector<1x8x8xf32>
    %526 = vector.broadcast %524 : vector<2x1x8xf32> to vector<2x8x8xf32>
    %527 = vector.broadcast %525 : vector<1x8x8xf32> to vector<2x8x8xf32>
    %528 = arith.addf %526, %527 : vector<2x8x8xf32>
    %cst_126 = arith.constant dense<0xFF800000> : vector<2x8xf32>
    %529 = vector.multi_reduction <maximumf>, %528, %cst_126 [2] : vector<2x8x8xf32> to vector<2x8xf32>
    %530 = vector.shape_cast %529 : vector<2x8xf32> to vector<2x8x1xf32>
    %531 = vector.broadcast %530 : vector<2x8x1xf32> to vector<2x8x8xf32>
    %532 = arith.cmpf oeq, %528, %531 : vector<2x8x8xf32>
    %c8_i32_127 = arith.constant 8 : i32
    %533 = vector.broadcast %c8_i32_127 : i32 to vector<2x8x8xi32>
    %534 = arith.select %532, %502, %533 : vector<2x8x8xi1>, vector<2x8x8xi32>
    %cst_128 = arith.constant dense<2147483647> : vector<2x8xi32>
    %535 = vector.multi_reduction <minsi>, %534, %cst_128 [2] : vector<2x8x8xi32> to vector<2x8xi32>
    %536 = vector.extract_strided_slice %498 {offsets = [4, 0], sizes = [2, 8], strides = [1, 1]} : vector<16x8xf32> to vector<2x8xf32>
    %537 = arith.addf %529, %536 : vector<2x8xf32>
    %c2_i32_129 = arith.constant 2 : i32
    %538 = vector.broadcast %c2_i32_129 : i32 to vector<2x1xi32>
    %539 = arith.cmpi sgt, %499, %538 : vector<2x1xi32>
    %540 = vector.shape_cast %539 : vector<2x1xi1> to vector<2x1xi1>
    %541 = vector.broadcast %540 : vector<2x1xi1> to vector<2x8xi1>
    %542 = arith.select %541, %537, %523 : vector<2x8xi1>, vector<2x8xf32>
    %543 = vector.shape_cast %542 : vector<2x8xf32> to vector<2x1x8xf32>
    %544 = vector.shape_cast %500 : vector<8x8xf32> to vector<1x8x8xf32>
    %545 = vector.broadcast %543 : vector<2x1x8xf32> to vector<2x8x8xf32>
    %546 = vector.broadcast %544 : vector<1x8x8xf32> to vector<2x8x8xf32>
    %547 = arith.addf %545, %546 : vector<2x8x8xf32>
    %cst_130 = arith.constant dense<0xFF800000> : vector<2x8xf32>
    %548 = vector.multi_reduction <maximumf>, %547, %cst_130 [2] : vector<2x8x8xf32> to vector<2x8xf32>
    %549 = vector.shape_cast %548 : vector<2x8xf32> to vector<2x8x1xf32>
    %550 = vector.broadcast %549 : vector<2x8x1xf32> to vector<2x8x8xf32>
    %551 = arith.cmpf oeq, %547, %550 : vector<2x8x8xf32>
    %c8_i32_131 = arith.constant 8 : i32
    %552 = vector.broadcast %c8_i32_131 : i32 to vector<2x8x8xi32>
    %553 = arith.select %551, %502, %552 : vector<2x8x8xi1>, vector<2x8x8xi32>
    %cst_132 = arith.constant dense<2147483647> : vector<2x8xi32>
    %554 = vector.multi_reduction <minsi>, %553, %cst_132 [2] : vector<2x8x8xi32> to vector<2x8xi32>
    %555 = vector.extract_strided_slice %498 {offsets = [6, 0], sizes = [2, 8], strides = [1, 1]} : vector<16x8xf32> to vector<2x8xf32>
    %556 = arith.addf %548, %555 : vector<2x8xf32>
    %c3_i32 = arith.constant 3 : i32
    %557 = vector.broadcast %c3_i32 : i32 to vector<2x1xi32>
    %558 = arith.cmpi sgt, %499, %557 : vector<2x1xi32>
    %559 = vector.shape_cast %558 : vector<2x1xi1> to vector<2x1xi1>
    %560 = vector.broadcast %559 : vector<2x1xi1> to vector<2x8xi1>
    %561 = arith.select %560, %556, %542 : vector<2x8xi1>, vector<2x8xf32>
    %562 = vector.shape_cast %561 : vector<2x8xf32> to vector<2x1x8xf32>
    %563 = vector.shape_cast %500 : vector<8x8xf32> to vector<1x8x8xf32>
    %564 = vector.broadcast %562 : vector<2x1x8xf32> to vector<2x8x8xf32>
    %565 = vector.broadcast %563 : vector<1x8x8xf32> to vector<2x8x8xf32>
    %566 = arith.addf %564, %565 : vector<2x8x8xf32>
    %cst_133 = arith.constant dense<0xFF800000> : vector<2x8xf32>
    %567 = vector.multi_reduction <maximumf>, %566, %cst_133 [2] : vector<2x8x8xf32> to vector<2x8xf32>
    %568 = vector.shape_cast %567 : vector<2x8xf32> to vector<2x8x1xf32>
    %569 = vector.broadcast %568 : vector<2x8x1xf32> to vector<2x8x8xf32>
    %570 = arith.cmpf oeq, %566, %569 : vector<2x8x8xf32>
    %c8_i32_134 = arith.constant 8 : i32
    %571 = vector.broadcast %c8_i32_134 : i32 to vector<2x8x8xi32>
    %572 = arith.select %570, %502, %571 : vector<2x8x8xi1>, vector<2x8x8xi32>
    %cst_135 = arith.constant dense<2147483647> : vector<2x8xi32>
    %573 = vector.multi_reduction <minsi>, %572, %cst_135 [2] : vector<2x8x8xi32> to vector<2x8xi32>
    %574 = vector.extract_strided_slice %498 {offsets = [8, 0], sizes = [2, 8], strides = [1, 1]} : vector<16x8xf32> to vector<2x8xf32>
    %575 = arith.addf %567, %574 : vector<2x8xf32>
    %c4_i32 = arith.constant 4 : i32
    %576 = vector.broadcast %c4_i32 : i32 to vector<2x1xi32>
    %577 = arith.cmpi sgt, %499, %576 : vector<2x1xi32>
    %578 = vector.shape_cast %577 : vector<2x1xi1> to vector<2x1xi1>
    %579 = vector.broadcast %578 : vector<2x1xi1> to vector<2x8xi1>
    %580 = arith.select %579, %575, %561 : vector<2x8xi1>, vector<2x8xf32>
    %581 = vector.shape_cast %580 : vector<2x8xf32> to vector<2x1x8xf32>
    %582 = vector.shape_cast %500 : vector<8x8xf32> to vector<1x8x8xf32>
    %583 = vector.broadcast %581 : vector<2x1x8xf32> to vector<2x8x8xf32>
    %584 = vector.broadcast %582 : vector<1x8x8xf32> to vector<2x8x8xf32>
    %585 = arith.addf %583, %584 : vector<2x8x8xf32>
    %cst_136 = arith.constant dense<0xFF800000> : vector<2x8xf32>
    %586 = vector.multi_reduction <maximumf>, %585, %cst_136 [2] : vector<2x8x8xf32> to vector<2x8xf32>
    %587 = vector.shape_cast %586 : vector<2x8xf32> to vector<2x8x1xf32>
    %588 = vector.broadcast %587 : vector<2x8x1xf32> to vector<2x8x8xf32>
    %589 = arith.cmpf oeq, %585, %588 : vector<2x8x8xf32>
    %c8_i32_137 = arith.constant 8 : i32
    %590 = vector.broadcast %c8_i32_137 : i32 to vector<2x8x8xi32>
    %591 = arith.select %589, %502, %590 : vector<2x8x8xi1>, vector<2x8x8xi32>
    %cst_138 = arith.constant dense<2147483647> : vector<2x8xi32>
    %592 = vector.multi_reduction <minsi>, %591, %cst_138 [2] : vector<2x8x8xi32> to vector<2x8xi32>
    %593 = vector.extract_strided_slice %498 {offsets = [10, 0], sizes = [2, 8], strides = [1, 1]} : vector<16x8xf32> to vector<2x8xf32>
    %594 = arith.addf %586, %593 : vector<2x8xf32>
    %c5_i32 = arith.constant 5 : i32
    %595 = vector.broadcast %c5_i32 : i32 to vector<2x1xi32>
    %596 = arith.cmpi sgt, %499, %595 : vector<2x1xi32>
    %597 = vector.shape_cast %596 : vector<2x1xi1> to vector<2x1xi1>
    %598 = vector.broadcast %597 : vector<2x1xi1> to vector<2x8xi1>
    %599 = arith.select %598, %594, %580 : vector<2x8xi1>, vector<2x8xf32>
    %600 = vector.shape_cast %599 : vector<2x8xf32> to vector<2x1x8xf32>
    %601 = vector.shape_cast %500 : vector<8x8xf32> to vector<1x8x8xf32>
    %602 = vector.broadcast %600 : vector<2x1x8xf32> to vector<2x8x8xf32>
    %603 = vector.broadcast %601 : vector<1x8x8xf32> to vector<2x8x8xf32>
    %604 = arith.addf %602, %603 : vector<2x8x8xf32>
    %cst_139 = arith.constant dense<0xFF800000> : vector<2x8xf32>
    %605 = vector.multi_reduction <maximumf>, %604, %cst_139 [2] : vector<2x8x8xf32> to vector<2x8xf32>
    %606 = vector.shape_cast %605 : vector<2x8xf32> to vector<2x8x1xf32>
    %607 = vector.broadcast %606 : vector<2x8x1xf32> to vector<2x8x8xf32>
    %608 = arith.cmpf oeq, %604, %607 : vector<2x8x8xf32>
    %c8_i32_140 = arith.constant 8 : i32
    %609 = vector.broadcast %c8_i32_140 : i32 to vector<2x8x8xi32>
    %610 = arith.select %608, %502, %609 : vector<2x8x8xi1>, vector<2x8x8xi32>
    %cst_141 = arith.constant dense<2147483647> : vector<2x8xi32>
    %611 = vector.multi_reduction <minsi>, %610, %cst_141 [2] : vector<2x8x8xi32> to vector<2x8xi32>
    %612 = vector.extract_strided_slice %498 {offsets = [12, 0], sizes = [2, 8], strides = [1, 1]} : vector<16x8xf32> to vector<2x8xf32>
    %613 = arith.addf %605, %612 : vector<2x8xf32>
    %c6_i32 = arith.constant 6 : i32
    %614 = vector.broadcast %c6_i32 : i32 to vector<2x1xi32>
    %615 = arith.cmpi sgt, %499, %614 : vector<2x1xi32>
    %616 = vector.shape_cast %615 : vector<2x1xi1> to vector<2x1xi1>
    %617 = vector.broadcast %616 : vector<2x1xi1> to vector<2x8xi1>
    %618 = arith.select %617, %613, %599 : vector<2x8xi1>, vector<2x8xf32>
    %619 = vector.shape_cast %618 : vector<2x8xf32> to vector<2x1x8xf32>
    %620 = vector.shape_cast %500 : vector<8x8xf32> to vector<1x8x8xf32>
    %621 = vector.broadcast %619 : vector<2x1x8xf32> to vector<2x8x8xf32>
    %622 = vector.broadcast %620 : vector<1x8x8xf32> to vector<2x8x8xf32>
    %623 = arith.addf %621, %622 : vector<2x8x8xf32>
    %cst_142 = arith.constant dense<0xFF800000> : vector<2x8xf32>
    %624 = vector.multi_reduction <maximumf>, %623, %cst_142 [2] : vector<2x8x8xf32> to vector<2x8xf32>
    %625 = vector.shape_cast %624 : vector<2x8xf32> to vector<2x8x1xf32>
    %626 = vector.broadcast %625 : vector<2x8x1xf32> to vector<2x8x8xf32>
    %627 = arith.cmpf oeq, %623, %626 : vector<2x8x8xf32>
    %c8_i32_143 = arith.constant 8 : i32
    %628 = vector.broadcast %c8_i32_143 : i32 to vector<2x8x8xi32>
    %629 = arith.select %627, %502, %628 : vector<2x8x8xi1>, vector<2x8x8xi32>
    %cst_144 = arith.constant dense<2147483647> : vector<2x8xi32>
    %630 = vector.multi_reduction <minsi>, %629, %cst_144 [2] : vector<2x8x8xi32> to vector<2x8xi32>
    %631 = vector.extract_strided_slice %498 {offsets = [14, 0], sizes = [2, 8], strides = [1, 1]} : vector<16x8xf32> to vector<2x8xf32>
    %632 = arith.addf %624, %631 : vector<2x8xf32>
    %c7_i32 = arith.constant 7 : i32
    %633 = vector.broadcast %c7_i32 : i32 to vector<2x1xi32>
    %634 = arith.cmpi sgt, %499, %633 : vector<2x1xi32>
    %635 = vector.shape_cast %634 : vector<2x1xi1> to vector<2x1xi1>
    %636 = vector.broadcast %635 : vector<2x1xi1> to vector<2x8xi1>
    %637 = arith.select %636, %632, %618 : vector<2x8xi1>, vector<2x8xf32>
    %cst_145 = arith.constant dense<0xFF800000> : vector<2xf32>
    %638 = vector.multi_reduction <maximumf>, %637, %cst_145 [1] : vector<2x8xf32> to vector<2xf32>
    %639 = vector.shape_cast %638 : vector<2xf32> to vector<2x1xf32>
    %640 = vector.broadcast %639 : vector<2x1xf32> to vector<2x8xf32>
    %641 = arith.cmpf oeq, %637, %640 : vector<2x8xf32>
    %c8_i32_146 = arith.constant 8 : i32
    %642 = vector.broadcast %c8_i32_146 : i32 to vector<2x8xi32>
    %643 = arith.select %641, %503, %642 : vector<2x8xi1>, vector<2x8xi32>
    %cst_147 = arith.constant dense<2147483647> : vector<2xi32>
    %644 = vector.multi_reduction <minsi>, %643, %cst_147 [1] : vector<2x8xi32> to vector<2xi32>
    %645 = vector.shape_cast %644 : vector<2xi32> to vector<2x1xi32>
    %c0_148 = arith.constant 0 : index
    %c0_149 = arith.constant 0 : index
    %646 = vector.load %arg15[%c0_148, %c0_149] : memref<2x1xf32, #tpu.memory_space<vmem>>, vector<2x1xf32>
    tpu.vector_store %arg15[%c0_148, %c0_149], %639 {strides = array<i32>} : memref<2x1xf32, #tpu.memory_space<vmem>>, vector<2x1xf32>,
    %c0_i32 = arith.constant 0 : i32
    %647 = vector.broadcast %c0_i32 : i32 to vector<2x8xi32>
    %648 = vector.broadcast %645 : vector<2x1xi32> to vector<2x8xi32>
    %649 = arith.cmpi eq, %503, %648 : vector<2x8xi32>
    %650 = arith.sitofp %630 : vector<2x8xi32> to vector<2x8xf32>
    %cst_150 = arith.constant 0.000000e+00 : f32
    %651 = vector.broadcast %cst_150 : f32 to vector<2x8xf32>
    %652 = arith.select %649, %650, %651 : vector<2x8xi1>, vector<2x8xf32>
    %cst_151 = arith.constant dense<0.000000e+00> : vector<2xf32>
    %653 = vector.multi_reduction <add>, %652, %cst_151 [1] : vector<2x8xf32> to vector<2xf32>
    %654 = vector.shape_cast %653 : vector<2xf32> to vector<2x1xf32>
    %655 = arith.fptosi %654 : vector<2x1xf32> to vector<2x1xi32>
    %c1_i32_152 = arith.constant 1 : i32
    %656 = vector.broadcast %c1_i32_152 : i32 to vector<2x1xi32>
    %657 = arith.subi %499, %656 : vector<2x1xi32>
    %c7_i32_153 = arith.constant 7 : i32
    %658 = vector.broadcast %c7_i32_153 : i32 to vector<2x1xi32>
    %659 = arith.cmpi eq, %657, %658 : vector<2x1xi32>
    %c1_i32_154 = arith.constant 1 : i32
    %660 = vector.broadcast %c1_i32_154 : i32 to vector<2x1xi32>
    %661 = arith.subi %499, %660 : vector<2x1xi32>
    %c7_i32_155 = arith.constant 7 : i32
    %662 = vector.broadcast %c7_i32_155 : i32 to vector<2x1xi32>
    %663 = arith.cmpi sgt, %661, %662 : vector<2x1xi32>
    %664 = arith.select %663, %655, %645 : vector<2x1xi1>, vector<2x1xi32>
    %665 = arith.select %659, %645, %664 : vector<2x1xi1>, vector<2x1xi32>
    %c7_i32_156 = arith.constant 7 : i32
    %666 = vector.broadcast %c7_i32_156 : i32 to vector<2x1xi32>
    %667 = arith.cmpi sgt, %499, %666 : vector<2x1xi32>
    %c0_i32_157 = arith.constant 0 : i32
    %668 = vector.broadcast %c0_i32_157 : i32 to vector<2x1xi32>
    %669 = arith.select %667, %665, %668 : vector<2x1xi1>, vector<2x1xi32>
    %c7_i32_158 = arith.constant 7 : i32
    %670 = vector.broadcast %c7_i32_158 : i32 to vector<2x8xi32>
    %671 = arith.cmpi eq, %504, %670 : vector<2x8xi32>
    %672 = vector.shape_cast %669 : vector<2x1xi32> to vector<2x1xi32>
    %673 = vector.broadcast %672 : vector<2x1xi32> to vector<2x8xi32>
    %674 = arith.select %671, %673, %647 : vector<2x8xi1>, vector<2x8xi32>
    %675 = vector.broadcast %665 : vector<2x1xi32> to vector<2x8xi32>
    %676 = arith.cmpi eq, %503, %675 : vector<2x8xi32>
    %677 = arith.sitofp %630 : vector<2x8xi32> to vector<2x8xf32>
    %cst_159 = arith.constant 0.000000e+00 : f32
    %678 = vector.broadcast %cst_159 : f32 to vector<2x8xf32>
    %679 = arith.select %676, %677, %678 : vector<2x8xi1>, vector<2x8xf32>
    %cst_160 = arith.constant dense<0.000000e+00> : vector<2xf32>
    %680 = vector.multi_reduction <add>, %679, %cst_160 [1] : vector<2x8xf32> to vector<2xf32>
    %681 = vector.shape_cast %680 : vector<2xf32> to vector<2x1xf32>
    %682 = arith.fptosi %681 : vector<2x1xf32> to vector<2x1xi32>
    %c1_i32_161 = arith.constant 1 : i32
    %683 = vector.broadcast %c1_i32_161 : i32 to vector<2x1xi32>
    %684 = arith.subi %499, %683 : vector<2x1xi32>
    %c6_i32_162 = arith.constant 6 : i32
    %685 = vector.broadcast %c6_i32_162 : i32 to vector<2x1xi32>
    %686 = arith.cmpi eq, %684, %685 : vector<2x1xi32>
    %c1_i32_163 = arith.constant 1 : i32
    %687 = vector.broadcast %c1_i32_163 : i32 to vector<2x1xi32>
    %688 = arith.subi %499, %687 : vector<2x1xi32>
    %c6_i32_164 = arith.constant 6 : i32
    %689 = vector.broadcast %c6_i32_164 : i32 to vector<2x1xi32>
    %690 = arith.cmpi sgt, %688, %689 : vector<2x1xi32>
    %691 = arith.select %690, %682, %665 : vector<2x1xi1>, vector<2x1xi32>
    %692 = arith.select %686, %645, %691 : vector<2x1xi1>, vector<2x1xi32>
    %c6_i32_165 = arith.constant 6 : i32
    %693 = vector.broadcast %c6_i32_165 : i32 to vector<2x1xi32>
    %694 = arith.cmpi sgt, %499, %693 : vector<2x1xi32>
    %c0_i32_166 = arith.constant 0 : i32
    %695 = vector.broadcast %c0_i32_166 : i32 to vector<2x1xi32>
    %696 = arith.select %694, %692, %695 : vector<2x1xi1>, vector<2x1xi32>
    %c6_i32_167 = arith.constant 6 : i32
    %697 = vector.broadcast %c6_i32_167 : i32 to vector<2x8xi32>
    %698 = arith.cmpi eq, %504, %697 : vector<2x8xi32>
    %699 = vector.shape_cast %696 : vector<2x1xi32> to vector<2x1xi32>
    %700 = vector.broadcast %699 : vector<2x1xi32> to vector<2x8xi32>
    %701 = arith.select %698, %700, %674 : vector<2x8xi1>, vector<2x8xi32>
    %702 = vector.broadcast %692 : vector<2x1xi32> to vector<2x8xi32>
    %703 = arith.cmpi eq, %503, %702 : vector<2x8xi32>
    %704 = arith.sitofp %611 : vector<2x8xi32> to vector<2x8xf32>
    %cst_168 = arith.constant 0.000000e+00 : f32
    %705 = vector.broadcast %cst_168 : f32 to vector<2x8xf32>
    %706 = arith.select %703, %704, %705 : vector<2x8xi1>, vector<2x8xf32>
    %cst_169 = arith.constant dense<0.000000e+00> : vector<2xf32>
    %707 = vector.multi_reduction <add>, %706, %cst_169 [1] : vector<2x8xf32> to vector<2xf32>
    %708 = vector.shape_cast %707 : vector<2xf32> to vector<2x1xf32>
    %709 = arith.fptosi %708 : vector<2x1xf32> to vector<2x1xi32>
    %c1_i32_170 = arith.constant 1 : i32
    %710 = vector.broadcast %c1_i32_170 : i32 to vector<2x1xi32>
    %711 = arith.subi %499, %710 : vector<2x1xi32>
    %c5_i32_171 = arith.constant 5 : i32
    %712 = vector.broadcast %c5_i32_171 : i32 to vector<2x1xi32>
    %713 = arith.cmpi eq, %711, %712 : vector<2x1xi32>
    %c1_i32_172 = arith.constant 1 : i32
    %714 = vector.broadcast %c1_i32_172 : i32 to vector<2x1xi32>
    %715 = arith.subi %499, %714 : vector<2x1xi32>
    %c5_i32_173 = arith.constant 5 : i32
    %716 = vector.broadcast %c5_i32_173 : i32 to vector<2x1xi32>
    %717 = arith.cmpi sgt, %715, %716 : vector<2x1xi32>
    %718 = arith.select %717, %709, %692 : vector<2x1xi1>, vector<2x1xi32>
    %719 = arith.select %713, %645, %718 : vector<2x1xi1>, vector<2x1xi32>
    %c5_i32_174 = arith.constant 5 : i32
    %720 = vector.broadcast %c5_i32_174 : i32 to vector<2x1xi32>
    %721 = arith.cmpi sgt, %499, %720 : vector<2x1xi32>
    %c0_i32_175 = arith.constant 0 : i32
    %722 = vector.broadcast %c0_i32_175 : i32 to vector<2x1xi32>
    %723 = arith.select %721, %719, %722 : vector<2x1xi1>, vector<2x1xi32>
    %c5_i32_176 = arith.constant 5 : i32
    %724 = vector.broadcast %c5_i32_176 : i32 to vector<2x8xi32>
    %725 = arith.cmpi eq, %504, %724 : vector<2x8xi32>
    %726 = vector.shape_cast %723 : vector<2x1xi32> to vector<2x1xi32>
    %727 = vector.broadcast %726 : vector<2x1xi32> to vector<2x8xi32>
    %728 = arith.select %725, %727, %701 : vector<2x8xi1>, vector<2x8xi32>
    %729 = vector.broadcast %719 : vector<2x1xi32> to vector<2x8xi32>
    %730 = arith.cmpi eq, %503, %729 : vector<2x8xi32>
    %731 = arith.sitofp %592 : vector<2x8xi32> to vector<2x8xf32>
    %cst_177 = arith.constant 0.000000e+00 : f32
    %732 = vector.broadcast %cst_177 : f32 to vector<2x8xf32>
    %733 = arith.select %730, %731, %732 : vector<2x8xi1>, vector<2x8xf32>
    %cst_178 = arith.constant dense<0.000000e+00> : vector<2xf32>
    %734 = vector.multi_reduction <add>, %733, %cst_178 [1] : vector<2x8xf32> to vector<2xf32>
    %735 = vector.shape_cast %734 : vector<2xf32> to vector<2x1xf32>
    %736 = arith.fptosi %735 : vector<2x1xf32> to vector<2x1xi32>
    %c1_i32_179 = arith.constant 1 : i32
    %737 = vector.broadcast %c1_i32_179 : i32 to vector<2x1xi32>
    %738 = arith.subi %499, %737 : vector<2x1xi32>
    %c4_i32_180 = arith.constant 4 : i32
    %739 = vector.broadcast %c4_i32_180 : i32 to vector<2x1xi32>
    %740 = arith.cmpi eq, %738, %739 : vector<2x1xi32>
    %c1_i32_181 = arith.constant 1 : i32
    %741 = vector.broadcast %c1_i32_181 : i32 to vector<2x1xi32>
    %742 = arith.subi %499, %741 : vector<2x1xi32>
    %c4_i32_182 = arith.constant 4 : i32
    %743 = vector.broadcast %c4_i32_182 : i32 to vector<2x1xi32>
    %744 = arith.cmpi sgt, %742, %743 : vector<2x1xi32>
    %745 = arith.select %744, %736, %719 : vector<2x1xi1>, vector<2x1xi32>
    %746 = arith.select %740, %645, %745 : vector<2x1xi1>, vector<2x1xi32>
    %c4_i32_183 = arith.constant 4 : i32
    %747 = vector.broadcast %c4_i32_183 : i32 to vector<2x1xi32>
    %748 = arith.cmpi sgt, %499, %747 : vector<2x1xi32>
    %c0_i32_184 = arith.constant 0 : i32
    %749 = vector.broadcast %c0_i32_184 : i32 to vector<2x1xi32>
    %750 = arith.select %748, %746, %749 : vector<2x1xi1>, vector<2x1xi32>
    %c4_i32_185 = arith.constant 4 : i32
    %751 = vector.broadcast %c4_i32_185 : i32 to vector<2x8xi32>
    %752 = arith.cmpi eq, %504, %751 : vector<2x8xi32>
    %753 = vector.shape_cast %750 : vector<2x1xi32> to vector<2x1xi32>
    %754 = vector.broadcast %753 : vector<2x1xi32> to vector<2x8xi32>
    %755 = arith.select %752, %754, %728 : vector<2x8xi1>, vector<2x8xi32>
    %756 = vector.broadcast %746 : vector<2x1xi32> to vector<2x8xi32>
    %757 = arith.cmpi eq, %503, %756 : vector<2x8xi32>
    %758 = arith.sitofp %573 : vector<2x8xi32> to vector<2x8xf32>
    %cst_186 = arith.constant 0.000000e+00 : f32
    %759 = vector.broadcast %cst_186 : f32 to vector<2x8xf32>
    %760 = arith.select %757, %758, %759 : vector<2x8xi1>, vector<2x8xf32>
    %cst_187 = arith.constant dense<0.000000e+00> : vector<2xf32>
    %761 = vector.multi_reduction <add>, %760, %cst_187 [1] : vector<2x8xf32> to vector<2xf32>
    %762 = vector.shape_cast %761 : vector<2xf32> to vector<2x1xf32>
    %763 = arith.fptosi %762 : vector<2x1xf32> to vector<2x1xi32>
    %c1_i32_188 = arith.constant 1 : i32
    %764 = vector.broadcast %c1_i32_188 : i32 to vector<2x1xi32>
    %765 = arith.subi %499, %764 : vector<2x1xi32>
    %c3_i32_189 = arith.constant 3 : i32
    %766 = vector.broadcast %c3_i32_189 : i32 to vector<2x1xi32>
    %767 = arith.cmpi eq, %765, %766 : vector<2x1xi32>
    %c1_i32_190 = arith.constant 1 : i32
    %768 = vector.broadcast %c1_i32_190 : i32 to vector<2x1xi32>
    %769 = arith.subi %499, %768 : vector<2x1xi32>
    %c3_i32_191 = arith.constant 3 : i32
    %770 = vector.broadcast %c3_i32_191 : i32 to vector<2x1xi32>
    %771 = arith.cmpi sgt, %769, %770 : vector<2x1xi32>
    %772 = arith.select %771, %763, %746 : vector<2x1xi1>, vector<2x1xi32>
    %773 = arith.select %767, %645, %772 : vector<2x1xi1>, vector<2x1xi32>
    %c3_i32_192 = arith.constant 3 : i32
    %774 = vector.broadcast %c3_i32_192 : i32 to vector<2x1xi32>
    %775 = arith.cmpi sgt, %499, %774 : vector<2x1xi32>
    %c0_i32_193 = arith.constant 0 : i32
    %776 = vector.broadcast %c0_i32_193 : i32 to vector<2x1xi32>
    %777 = arith.select %775, %773, %776 : vector<2x1xi1>, vector<2x1xi32>
    %c3_i32_194 = arith.constant 3 : i32
    %778 = vector.broadcast %c3_i32_194 : i32 to vector<2x8xi32>
    %779 = arith.cmpi eq, %504, %778 : vector<2x8xi32>
    %780 = vector.shape_cast %777 : vector<2x1xi32> to vector<2x1xi32>
    %781 = vector.broadcast %780 : vector<2x1xi32> to vector<2x8xi32>
    %782 = arith.select %779, %781, %755 : vector<2x8xi1>, vector<2x8xi32>
    %783 = vector.broadcast %773 : vector<2x1xi32> to vector<2x8xi32>
    %784 = arith.cmpi eq, %503, %783 : vector<2x8xi32>
    %785 = arith.sitofp %554 : vector<2x8xi32> to vector<2x8xf32>
    %cst_195 = arith.constant 0.000000e+00 : f32
    %786 = vector.broadcast %cst_195 : f32 to vector<2x8xf32>
    %787 = arith.select %784, %785, %786 : vector<2x8xi1>, vector<2x8xf32>
    %cst_196 = arith.constant dense<0.000000e+00> : vector<2xf32>
    %788 = vector.multi_reduction <add>, %787, %cst_196 [1] : vector<2x8xf32> to vector<2xf32>
    %789 = vector.shape_cast %788 : vector<2xf32> to vector<2x1xf32>
    %790 = arith.fptosi %789 : vector<2x1xf32> to vector<2x1xi32>
    %c1_i32_197 = arith.constant 1 : i32
    %791 = vector.broadcast %c1_i32_197 : i32 to vector<2x1xi32>
    %792 = arith.subi %499, %791 : vector<2x1xi32>
    %c2_i32_198 = arith.constant 2 : i32
    %793 = vector.broadcast %c2_i32_198 : i32 to vector<2x1xi32>
    %794 = arith.cmpi eq, %792, %793 : vector<2x1xi32>
    %c1_i32_199 = arith.constant 1 : i32
    %795 = vector.broadcast %c1_i32_199 : i32 to vector<2x1xi32>
    %796 = arith.subi %499, %795 : vector<2x1xi32>
    %c2_i32_200 = arith.constant 2 : i32
    %797 = vector.broadcast %c2_i32_200 : i32 to vector<2x1xi32>
    %798 = arith.cmpi sgt, %796, %797 : vector<2x1xi32>
    %799 = arith.select %798, %790, %773 : vector<2x1xi1>, vector<2x1xi32>
    %800 = arith.select %794, %645, %799 : vector<2x1xi1>, vector<2x1xi32>
    %c2_i32_201 = arith.constant 2 : i32
    %801 = vector.broadcast %c2_i32_201 : i32 to vector<2x1xi32>
    %802 = arith.cmpi sgt, %499, %801 : vector<2x1xi32>
    %c0_i32_202 = arith.constant 0 : i32
    %803 = vector.broadcast %c0_i32_202 : i32 to vector<2x1xi32>
    %804 = arith.select %802, %800, %803 : vector<2x1xi1>, vector<2x1xi32>
    %c2_i32_203 = arith.constant 2 : i32
    %805 = vector.broadcast %c2_i32_203 : i32 to vector<2x8xi32>
    %806 = arith.cmpi eq, %504, %805 : vector<2x8xi32>
    %807 = vector.shape_cast %804 : vector<2x1xi32> to vector<2x1xi32>
    %808 = vector.broadcast %807 : vector<2x1xi32> to vector<2x8xi32>
    %809 = arith.select %806, %808, %782 : vector<2x8xi1>, vector<2x8xi32>
    %810 = vector.broadcast %800 : vector<2x1xi32> to vector<2x8xi32>
    %811 = arith.cmpi eq, %503, %810 : vector<2x8xi32>
    %812 = arith.sitofp %535 : vector<2x8xi32> to vector<2x8xf32>
    %cst_204 = arith.constant 0.000000e+00 : f32
    %813 = vector.broadcast %cst_204 : f32 to vector<2x8xf32>
    %814 = arith.select %811, %812, %813 : vector<2x8xi1>, vector<2x8xf32>
    %cst_205 = arith.constant dense<0.000000e+00> : vector<2xf32>
    %815 = vector.multi_reduction <add>, %814, %cst_205 [1] : vector<2x8xf32> to vector<2xf32>
    %816 = vector.shape_cast %815 : vector<2xf32> to vector<2x1xf32>
    %817 = arith.fptosi %816 : vector<2x1xf32> to vector<2x1xi32>
    %c1_i32_206 = arith.constant 1 : i32
    %818 = vector.broadcast %c1_i32_206 : i32 to vector<2x1xi32>
    %819 = arith.subi %499, %818 : vector<2x1xi32>
    %c1_i32_207 = arith.constant 1 : i32
    %820 = vector.broadcast %c1_i32_207 : i32 to vector<2x1xi32>
    %821 = arith.cmpi eq, %819, %820 : vector<2x1xi32>
    %c1_i32_208 = arith.constant 1 : i32
    %822 = vector.broadcast %c1_i32_208 : i32 to vector<2x1xi32>
    %823 = arith.subi %499, %822 : vector<2x1xi32>
    %c1_i32_209 = arith.constant 1 : i32
    %824 = vector.broadcast %c1_i32_209 : i32 to vector<2x1xi32>
    %825 = arith.cmpi sgt, %823, %824 : vector<2x1xi32>
    %826 = arith.select %825, %817, %800 : vector<2x1xi1>, vector<2x1xi32>
    %827 = arith.select %821, %645, %826 : vector<2x1xi1>, vector<2x1xi32>
    %c1_i32_210 = arith.constant 1 : i32
    %828 = vector.broadcast %c1_i32_210 : i32 to vector<2x1xi32>
    %829 = arith.cmpi sgt, %499, %828 : vector<2x1xi32>
    %c0_i32_211 = arith.constant 0 : i32
    %830 = vector.broadcast %c0_i32_211 : i32 to vector<2x1xi32>
    %831 = arith.select %829, %827, %830 : vector<2x1xi1>, vector<2x1xi32>
    %c1_i32_212 = arith.constant 1 : i32
    %832 = vector.broadcast %c1_i32_212 : i32 to vector<2x8xi32>
    %833 = arith.cmpi eq, %504, %832 : vector<2x8xi32>
    %834 = vector.shape_cast %831 : vector<2x1xi32> to vector<2x1xi32>
    %835 = vector.broadcast %834 : vector<2x1xi32> to vector<2x8xi32>
    %836 = arith.select %833, %835, %809 : vector<2x8xi1>, vector<2x8xi32>
    %837 = vector.broadcast %827 : vector<2x1xi32> to vector<2x8xi32>
    %838 = arith.cmpi eq, %503, %837 : vector<2x8xi32>
    %839 = arith.sitofp %516 : vector<2x8xi32> to vector<2x8xf32>
    %cst_213 = arith.constant 0.000000e+00 : f32
    %840 = vector.broadcast %cst_213 : f32 to vector<2x8xf32>
    %841 = arith.select %838, %839, %840 : vector<2x8xi1>, vector<2x8xf32>
    %cst_214 = arith.constant dense<0.000000e+00> : vector<2xf32>
    %842 = vector.multi_reduction <add>, %841, %cst_214 [1] : vector<2x8xf32> to vector<2xf32>
    %843 = vector.shape_cast %842 : vector<2xf32> to vector<2x1xf32>
    %844 = arith.fptosi %843 : vector<2x1xf32> to vector<2x1xi32>
    %c1_i32_215 = arith.constant 1 : i32
    %845 = vector.broadcast %c1_i32_215 : i32 to vector<2x1xi32>
    %846 = arith.subi %499, %845 : vector<2x1xi32>
    %c0_i32_216 = arith.constant 0 : i32
    %847 = vector.broadcast %c0_i32_216 : i32 to vector<2x1xi32>
    %848 = arith.cmpi eq, %846, %847 : vector<2x1xi32>
    %c1_i32_217 = arith.constant 1 : i32
    %849 = vector.broadcast %c1_i32_217 : i32 to vector<2x1xi32>
    %850 = arith.subi %499, %849 : vector<2x1xi32>
    %c0_i32_218 = arith.constant 0 : i32
    %851 = vector.broadcast %c0_i32_218 : i32 to vector<2x1xi32>
    %852 = arith.cmpi sgt, %850, %851 : vector<2x1xi32>
    %853 = arith.select %852, %844, %827 : vector<2x1xi1>, vector<2x1xi32>
    %854 = arith.select %848, %645, %853 : vector<2x1xi1>, vector<2x1xi32>
    %c0_i32_219 = arith.constant 0 : i32
    %855 = vector.broadcast %c0_i32_219 : i32 to vector<2x1xi32>
    %856 = arith.cmpi sgt, %499, %855 : vector<2x1xi32>
    %c0_i32_220 = arith.constant 0 : i32
    %857 = vector.broadcast %c0_i32_220 : i32 to vector<2x1xi32>
    %858 = arith.select %856, %854, %857 : vector<2x1xi1>, vector<2x1xi32>
    %c0_i32_221 = arith.constant 0 : i32
    %859 = vector.broadcast %c0_i32_221 : i32 to vector<2x8xi32>
    %860 = arith.cmpi eq, %504, %859 : vector<2x8xi32>
    %861 = vector.shape_cast %858 : vector<2x1xi32> to vector<2x1xi32>
    %862 = vector.broadcast %861 : vector<2x1xi32> to vector<2x8xi32>
    %863 = arith.select %860, %862, %836 : vector<2x8xi1>, vector<2x8xi32>
    %c0_222 = arith.constant 0 : index
    %c0_223 = arith.constant 0 : index
    %864 = vector.load %arg14[%c0_222, %c0_223] : memref<2x8xi32, #tpu.memory_space<vmem>>, vector<2x8xi32>
    tpu.vector_store %arg14[%c0_222, %c0_223], %863 {strides = array<i32>} : memref<2x8xi32, #tpu.memory_space<vmem>>, vector<2x8xi32>,
    return
  }
}

</mosaic_0001>

<llo_original>
// kernel: tpu_custom_call.1
$region0: #{tpu_custom_call.1}
  #allocation0 [shape = 'u32[]', space=smem, size = 0x4, offset = 0x4, fixed_abs, tag = 'smem constant byte address 0x4 - core index']
  #allocation1 [shape = 'u32[144,128]{1,0:T(1,128)}', space=vmem, size = 0x12000, scoped, tag = 'internal scratch']
  #allocation2 [shape = 'f32[16,128]{1,0:T(8,128)}', space=vmem, size = 0x2000, scoped, tag = 'scratch operand']
  %s0 = inlined_call_operand.hbm [shape: f32[16,16], index: 0, kind: input, shape index: {}]
  %s1 = inlined_call_operand.vmem [shape: f32[16,1], index: 1, kind: input, shape index: {}]
  %s2 = inlined_call_operand.vmem [shape: s32[2,1], index: 2, kind: input, shape index: {}]
  %s3 = inlined_call_operand.hbm [shape: f32[16,16], index: 3, kind: input, shape index: {}]
  %s4 = inlined_call_operand.hbm [shape: f32[1,16], index: 4, kind: input, shape index: {}]
  %s5 = inlined_call_operand.hbm [shape: f32[16,256], index: 5, kind: input, shape index: {}]
  %s6 = inlined_call_operand.vmem [shape: f32[1,256], index: 6, kind: input, shape index: {}]
  %s7 = inlined_call_operand.hbm [shape: f32[32,256], index: 7, kind: input, shape index: {}]
  %s8 = inlined_call_operand.vmem [shape: f32[64,256], index: 8, kind: input, shape index: {}]
  %s9 = inlined_call_operand.hbm [shape: f32[1,256], index: 9, kind: input, shape index: {}]
  %s10 = inlined_call_operand.vmem [shape: f32[32,256], index: 10, kind: input, shape index: {}]
  %s11 = inlined_call_operand.vmem [shape: f32[128,8], index: 11, kind: input, shape index: {}]
  %s12 = inlined_call_operand.hbm [shape: f32[1,8], index: 12, kind: input, shape index: {}]
  %s13 = inlined_call_operand.vmem [shape: f32[8,8], index: 13, kind: input, shape index: {}]
  %s14 = inlined_call_operand.hbm [shape: s32[2,8], index: 14, kind: output, shape index: {0}]
  %s15 = inlined_call_operand.vmem [shape: f32[2,1], index: 15, kind: output, shape index: {1}]
  %16 = xla_tuple %s14, %s15
  %s17 = sld [smem:[#allocation0]]
  $region102: #{tpu_custom_call.1} parent=0
    _
  %s19 = ssub.s32 1, %s17
  %s20 = scalar_select 0, %s19, %s17
  $region1: #{tpu_custom_call.1} parent=0
    #allocation3 [shape = 'u8[8192]{0}', space=vmem, size = 0x2000, scoped, tag = 'input window, operand 0, single buffered']
    #allocation4 [shape = 's32[1]{0}', space=sflag, size = 0x4, scoped, tag = 'scoped memory for tpu_custom_call.1']
    #allocation5 [shape = 's32[1]{0}', space=sflag, size = 0x4, scoped, tag = 'scoped memory for tpu_custom_call.1']
    #allocation6 [shape = 'u8[8192]{0}', space=vmem, size = 0x2000, scoped, tag = 'input window, operand 3, single buffered']
    #allocation7 [shape = 's32[1]{0}', space=sflag, size = 0x4, scoped, tag = 'scoped memory for tpu_custom_call.1']
    #allocation8 [shape = 'u8[512]{0}', space=vmem, size = 0x400, scoped, tag = 'input window, operand 4, single buffered']
    #allocation9 [shape = 'u8[16384]{0}', space=vmem, size = 0x4000, scoped, tag = 'input window, operand 5, single buffered']
    #allocation10 [shape = 's32[1]{0}', space=sflag, size = 0x4, scoped, tag = 'scoped memory for tpu_custom_call.1']
    #allocation11 [shape = 'u8[32768]{0}', space=vmem, size = 0x8000, scoped, tag = 'input window, operand 7, single buffered']
    #allocation12 [shape = 'u8[1024]{0}', space=vmem, size = 0x400, scoped, tag = 'input window, operand 9, single buffered']
    #allocation13 [shape = 's32[1]{0}', space=sflag, size = 0x4, scoped, tag = 'scoped memory for tpu_custom_call.1']
    #allocation14 [shape = 'u8[512]{0}', space=vmem, size = 0x400, scoped, tag = 'input window, operand 12, single buffered']
    #allocation15 [shape = 'u8[1024]{0}', space=vmem, size = 0x400, scoped, tag = 'output window, operand 0, single buffered']
    %21 = vsyncpa [#allocation4], 0
    %22 = vsyncpa [#allocation7], 0
    %23 = vsyncpa [#allocation10], 0
    %24 = vsyncpa [#allocation13], 0
    %25 = vsyncpa [#allocation5], 0
    // Predicated region
    $region2: #{tpu_custom_call.1} parent=1 // pred_check
      _
    $region3: #{tpu_custom_call.1} parent=1 // pred_check_branch
      %27 = sbr.rel (0) target = $region5
    $region4: #{tpu_custom_call.1} parent=1 // pred_region
      %s29 = ssub.s32 256, 256
      %30 = vsyncadd [#allocation4], %s29
      %s31 = sshll.u32 [#allocation3], 4
      %s32 = int_to_ptr.vmem [resolvable:$true] %s31
      %37 = dma.hbm_to_vmem [thread:$0]  %s0, 256, %s32, [#allocation4], 128, 128, 8
    $region5: #{tpu_custom_call.1} parent=1 // pred_fallthru
      _
    // Predicated region
    $region6: #{tpu_custom_call.1} parent=1 // pred_check
      _
    $region7: #{tpu_custom_call.1} parent=1 // pred_check_branch
      %39 = sbr.rel (0) target = $region9
    $region8: #{tpu_custom_call.1} parent=1 // pred_region
      _
    $region9: #{tpu_custom_call.1} parent=1 // pred_fallthru
      _
    // Predicated region
    $region10: #{tpu_custom_call.1} parent=1 // pred_check
      _
    $region11: #{tpu_custom_call.1} parent=1 // pred_check_branch
      %41 = sbr.rel (0) target = $region13
    $region12: #{tpu_custom_call.1} parent=1 // pred_region
      _
    $region13: #{tpu_custom_call.1} parent=1 // pred_fallthru
      _
    // Predicated region
    $region14: #{tpu_custom_call.1} parent=1 // pred_check
      _
    $region15: #{tpu_custom_call.1} parent=1 // pred_check_branch
      %43 = sbr.rel (0) target = $region17
    $region16: #{tpu_custom_call.1} parent=1 // pred_region
      %s45 = ssub.s32 256, 256
      %46 = vsyncadd [#allocation7], %s45
      %s47 = sshll.u32 [#allocation6], 4
      %s48 = int_to_ptr.vmem [resolvable:$true] %s47
      %53 = dma.hbm_to_vmem [thread:$0]  %s3, 256, %s48, [#allocation7], 128, 128, 8
    $region17: #{tpu_custom_call.1} parent=1 // pred_fallthru
      _
    // Predicated region
    $region18: #{tpu_custom_call.1} parent=1 // pred_check
      _
    $region19: #{tpu_custom_call.1} parent=1 // pred_check_branch
      %55 = sbr.rel (0) target = $region21
    $region20: #{tpu_custom_call.1} parent=1 // pred_region
      %s57 = ssub.s32 16, 16
      %58 = vsyncadd [#allocation7], %s57
      %s60 = sshll.u32 [#allocation8], 4
      %s61 = int_to_ptr.vmem [resolvable:$true] %s60
      %63 = dma.hbm_to_vmem [thread:$0]  %s4, 16, %s61, [#allocation7]
    $region21: #{tpu_custom_call.1} parent=1 // pred_fallthru
      _
    // Predicated region
    $region22: #{tpu_custom_call.1} parent=1 // pred_check
      _
    $region23: #{tpu_custom_call.1} parent=1 // pred_check_branch
      %65 = sbr.rel (0) target = $region25
    $region24: #{tpu_custom_call.1} parent=1 // pred_region
      %s67 = ssub.s32 512, 512
      %68 = vsyncadd [#allocation10], %s67
      %s69 = sshll.u32 [#allocation9], 4
      %s70 = int_to_ptr.vmem [resolvable:$true] %s69
      %75 = dma.hbm_to_vmem [thread:$0]  %s5, 512, %s70, [#allocation10], 256, 256, 16
    $region25: #{tpu_custom_call.1} parent=1 // pred_fallthru
      _
    // Predicated region
    $region26: #{tpu_custom_call.1} parent=1 // pred_check
      _
    $region27: #{tpu_custom_call.1} parent=1 // pred_check_branch
      %77 = sbr.rel (0) target = $region29
    $region28: #{tpu_custom_call.1} parent=1 // pred_region
      _
    $region29: #{tpu_custom_call.1} parent=1 // pred_fallthru
      _
    // Predicated region
    $region30: #{tpu_custom_call.1} parent=1 // pred_check
      _
    $region31: #{tpu_custom_call.1} parent=1 // pred_check_branch
      %79 = sbr.rel (0) target = $region33
    $region32: #{tpu_custom_call.1} parent=1 // pred_region
      %s81 = ssub.s32 1024, 1024
      %82 = vsyncadd [#allocation10], %s81
      %s83 = sshll.u32 [#allocation11], 4
      %s84 = int_to_ptr.vmem [resolvable:$true] %s83
      %89 = dma.hbm_to_vmem [thread:$0]  %s7, 1024, %s84, [#allocation10], 256, 256, 16
    $region33: #{tpu_custom_call.1} parent=1 // pred_fallthru
      _
    // Predicated region
    $region34: #{tpu_custom_call.1} parent=1 // pred_check
      _
    $region35: #{tpu_custom_call.1} parent=1 // pred_check_branch
      %91 = sbr.rel (0) target = $region37
    $region36: #{tpu_custom_call.1} parent=1 // pred_region
      _
    $region37: #{tpu_custom_call.1} parent=1 // pred_fallthru
      _
    // Predicated region
    $region38: #{tpu_custom_call.1} parent=1 // pred_check
      _
    $region39: #{tpu_custom_call.1} parent=1 // pred_check_branch
      %93 = sbr.rel (0) target = $region41
    $region40: #{tpu_custom_call.1} parent=1 // pred_region
      %s95 = ssub.s32 32, 32
      %96 = vsyncadd [#allocation13], %s95
      %s98 = sshll.u32 [#allocation12], 4
      %s99 = int_to_ptr.vmem [resolvable:$true] %s98
      %101 = dma.hbm_to_vmem [thread:$0]  %s9, 32, %s99, [#allocation13]
    $region41: #{tpu_custom_call.1} parent=1 // pred_fallthru
      _
    // Predicated region
    $region42: #{tpu_custom_call.1} parent=1 // pred_check
      _
    $region43: #{tpu_custom_call.1} parent=1 // pred_check_branch
      %103 = sbr.rel (0) target = $region45
    $region44: #{tpu_custom_call.1} parent=1 // pred_region
      _
    $region45: #{tpu_custom_call.1} parent=1 // pred_fallthru
      _
    // Predicated region
    $region46: #{tpu_custom_call.1} parent=1 // pred_check
      _
    $region47: #{tpu_custom_call.1} parent=1 // pred_check_branch
      %105 = sbr.rel (0) target = $region49
    $region48: #{tpu_custom_call.1} parent=1 // pred_region
      _
    $region49: #{tpu_custom_call.1} parent=1 // pred_fallthru
      _
    // Predicated region
    $region50: #{tpu_custom_call.1} parent=1 // pred_check
      _
    $region51: #{tpu_custom_call.1} parent=1 // pred_check_branch
      %107 = sbr.rel (0) target = $region53
    $region52: #{tpu_custom_call.1} parent=1 // pred_region
      %s109 = ssub.s32 16, 16
      %110 = vsyncadd [#allocation13], %s109
      %s112 = sshll.u32 [#allocation14], 4
      %s113 = int_to_ptr.vmem [resolvable:$true] %s112
      %115 = dma.hbm_to_vmem [thread:$0]  %s12, 16, %s113, [#allocation13]
    $region53: #{tpu_custom_call.1} parent=1 // pred_fallthru
      _
    // Predicated region
    $region54: #{tpu_custom_call.1} parent=1 // pred_check
      _
    $region55: #{tpu_custom_call.1} parent=1 // pred_check_branch
      %117 = sbr.rel (0) target = $region57
    $region56: #{tpu_custom_call.1} parent=1 // pred_region
      _
    $region57: #{tpu_custom_call.1} parent=1 // pred_fallthru
      _
    // Predicated region
    $region58: #{tpu_custom_call.1} parent=1 // pred_check
      _
    $region59: #{tpu_custom_call.1} parent=1 // pred_check_branch
      %119 = sbr.rel (0) target = $region61
    $region60: #{tpu_custom_call.1} parent=1 // pred_region
      %120 = dma.done [#allocation4], 256
    $region61: #{tpu_custom_call.1} parent=1 // pred_fallthru
      _
    // Predicated region
    $region62: #{tpu_custom_call.1} parent=1 // pred_check
      _
    $region63: #{tpu_custom_call.1} parent=1 // pred_check_branch
      %122 = sbr.rel (0) target = $region65
    $region64: #{tpu_custom_call.1} parent=1 // pred_region
      %123 = dma.done [#allocation7], 256
    $region65: #{tpu_custom_call.1} parent=1 // pred_fallthru
      _
    // Predicated region
    $region66: #{tpu_custom_call.1} parent=1 // pred_check
      _
    $region67: #{tpu_custom_call.1} parent=1 // pred_check_branch
      %125 = sbr.rel (0) target = $region69
    $region68: #{tpu_custom_call.1} parent=1 // pred_region
      %126 = dma.done [#allocation7], 16
    $region69: #{tpu_custom_call.1} parent=1 // pred_fallthru
      _
    // Predicated region
    $region70: #{tpu_custom_call.1} parent=1 // pred_check
      _
    $region71: #{tpu_custom_call.1} parent=1 // pred_check_branch
      %128 = sbr.rel (0) target = $region73
    $region72: #{tpu_custom_call.1} parent=1 // pred_region
      %129 = dma.done [#allocation10], 512
    $region73: #{tpu_custom_call.1} parent=1 // pred_fallthru
      _
    // Predicated region
    $region74: #{tpu_custom_call.1} parent=1 // pred_check
      _
    $region75: #{tpu_custom_call.1} parent=1 // pred_check_branch
      %131 = sbr.rel (0) target = $region77
    $region76: #{tpu_custom_call.1} parent=1 // pred_region
      %132 = dma.done [#allocation10], 1024
    $region77: #{tpu_custom_call.1} parent=1 // pred_fallthru
      _
    // Predicated region
    $region78: #{tpu_custom_call.1} parent=1 // pred_check
      _
    $region79: #{tpu_custom_call.1} parent=1 // pred_check_branch
      %134 = sbr.rel (0) target = $region81
    $region80: #{tpu_custom_call.1} parent=1 // pred_region
      %135 = dma.done [#allocation13], 32
    $region81: #{tpu_custom_call.1} parent=1 // pred_fallthru
      _
    // Predicated region
    $region82: #{tpu_custom_call.1} parent=1 // pred_check
      _
    $region83: #{tpu_custom_call.1} parent=1 // pred_check_branch
      %137 = sbr.rel (0) target = $region85
    $region84: #{tpu_custom_call.1} parent=1 // pred_region
      %138 = dma.done [#allocation13], 16
    $region85: #{tpu_custom_call.1} parent=1 // pred_fallthru
      _
    %v139 = vld [vmem:[#allocation3] sm:$0xff]
    %v140 = vld [vmem:[#allocation3 + $0x8] sm:$0xff]
    %v141 = vld [vmem:[#allocation6] sm:$0xff]
    %v142 = vld [vmem:[#allocation6 + $0x8] sm:$0xff]
    %v143 = vld [vmem:[#allocation8] sm:$0x1]
    %v145 = vlaneseq
    %v146 = vshrl.u32 %v145, 7
    %v147 = vsub.s32 0, %v146
    %v148 = vrot.slane %v143, %v147
    %vm150 = vcmask 130048
    %v152 = vsel %vm150, %v139, 0
    %v155 = vsel %vm150, %v140, 0
    %157 = vmatprep.subr.mxu0 0.0
    %158 = vmatpush1.msra.mxu0 %v141
    %159 = vmatprep.subr.mxu0 0.0
    %160 = vmatpush1.msra.mxu0 %v142
    %161 = vmatprep.subr.mxu0 0.0
    %162 = vmatpush1.msra.mxu0 0.0
    %163 = vmatprep.subr.mxu0 0.0
    %164 = vmatpush1.msra.mxu0 0.0
    %165 = vmatprep.subr.mxu0 0.0
    %166 = vmatpush1.msra.mxu0 0.0
    %167 = vmatprep.subr.mxu0 0.0
    %168 = vmatpush1.msra.mxu0 0.0
    %169 = vmatprep.subr.mxu0 0.0
    %170 = vmatpush1.msra.mxu0 0.0
    %171 = vmatprep.subr.mxu0 0.0
    %172 = vmatpush1.msra.mxu0 0.0
    %173 = vmatprep.subr.mxu0 0.0
    %174 = vmatpush1.msra.mxu0 0.0
    %175 = vmatprep.subr.mxu0 0.0
    %176 = vmatpush1.msra.mxu0 0.0
    %177 = vmatprep.subr.mxu0 0.0
    %178 = vmatpush1.msra.mxu0 0.0
    %179 = vmatprep.subr.mxu0 0.0
    %180 = vmatpush1.msra.mxu0 0.0
    %181 = vmatprep.subr.mxu0 0.0
    %182 = vmatpush1.msra.mxu0 0.0
    %183 = vmatprep.subr.mxu0 0.0
    %184 = vmatpush1.msra.mxu0 0.0
    %185 = vmatprep.subr.mxu0 0.0
    %186 = vmatpush1.msra.mxu0 0.0
    %187 = vmatprep.subr.mxu0 0.0
    %188 = vmatpush1.msra.mxu0 0.0
    %189 = vmatprep.subr.mxu0 0.0
    %190 = vmatpush1.msra.mxu0 0.0
    %191 = vmatprep.subr.mxu0 0.0
    %192 = vmatpush1.msra.mxu0 0.0
    %193 = vmatprep.subr.mxu0 0.0
    %194 = vmatpush1.msra.mxu0 0.0
    %195 = vmatprep.subr.mxu0 0.0
    %196 = vmatpush1.msra.mxu0 0.0
    %197 = vmatprep.subr.mxu0 0.0
    %198 = vmatpush1.msra.mxu0 0.0
    %199 = vmatprep.subr.mxu0 0.0
    %200 = vmatpush1.msra.mxu0 0.0
    %201 = vmatprep.subr.mxu0 0.0
    %202 = vmatpush1.msra.mxu0 0.0
    %203 = vmatprep.subr.mxu0 0.0
    %204 = vmatpush1.msra.mxu0 0.0
    %205 = vmatprep.subr.mxu0 0.0
    %206 = vmatpush1.msra.mxu0 0.0
    %207 = vmatprep.subr.mxu0 0.0
    %208 = vmatpush1.msra.mxu0 0.0
    %209 = vmatprep.subr.mxu0 0.0
    %210 = vmatpush1.msra.mxu0 0.0
    %211 = vmatprep.subr.mxu0 0.0
    %212 = vmatpush1.msra.mxu0 0.0
    %213 = vmatprep.subr.mxu0 0.0
    %214 = vmatpush1.msra.mxu0 0.0
    %215 = vmatprep.subr.mxu0 0.0
    %216 = vmatpush1.msra.mxu0 0.0
    %217 = vmatprep.subr.mxu0 0.0
    %218 = vmatpush1.msra.mxu0 0.0
    %219 = vmatprep.subr.mxu0 0.0
    %220 = vmatpush1.msra.mxu0 0.0
    %221 = vmatprep.mubr.f32.mxu0 0.0
    %222 = vmatmul.mubr.f32.gmra.mrb[0].mxu0 %v152
    %v223 = vpop.f32.mrb[0].mxu0
    %v224 = vadd.f32 %v148, %v223
    %v225 = vpop.f32.mrb[0].mxu0
    %226 = vmatprep.mubr.f32.mxu0 0.0
    %227 = vmatmul.mubr.f32.gmra.mrb[0].mxu0 %v155
    %v228 = vpop.f32.mrb[0].mxu0
    %v229 = vadd.f32 %v148, %v228
    %v230 = vpop.f32.mrb[0].mxu0
    %231 = vdwg.mxu0
    %v232 = vld [vmem:[%s1] sm:$0xff]
    %v233 = vld [vmem:[%s1 + $0x8] sm:$0xff]
    %235 = vset.pattern.permute.xlu0 0
    %236 = vperm.xlu0 %235, %v232
    %v237 = vpop.permute.xlu0 %236
    %240 = vset.pattern.permute.xlu0 0
    %241 = vperm.xlu0 %240, %v233
    %v242 = vpop.permute.xlu0 %241
    %v244 = vmul.f32 %v224, %v237
    %v245 = vmul.f32 %v229, %v242
    %v246 = vlaneseq
    %v247 = vshrl.u32 %v246, 7
    %vm248 = vcmp.lt.s32.totalorder %v247, 2
    %v249 = vld [vmem:[#allocation9] sm:$0xff]
    %v250 = vld [vmem:[#allocation9 + $0x8] sm:$0xff]
    %v251 = vld [vmem:[#allocation9 + $0x10] sm:$0xff]
    %v252 = vld [vmem:[#allocation9 + $0x18] sm:$0xff]
    %v253 = vld [vmem:[%s6] sm:$0x3]
    %v255 = vlaneseq
    %v256 = vshrl.u32 %v255, 7
    %v257 = vsub.s32 0, %v256
    %v258 = vrot.slane %v253, %v257
    %v259 = vlaneseq
    %v260 = vshrl.u32 %v259, 7
    %v261 = vsub.s32 1, %v260
    %v262 = vrot.slane %v253, %v261
    %v266 = vsel %vm150, %v244, 0
    %v269 = vsel %vm150, %v245, 0
    %271 = vmatprep.subr.mxu0 %v250
    %272 = vmatpush1.msra.mxu0 %v249
    %273 = vmatprep.subr.mxu0 %v252
    %274 = vmatpush1.msra.mxu0 %v251
    %275 = vmatprep.subr.mxu0 0.0
    %276 = vmatpush1.msra.mxu0 0.0
    %277 = vmatprep.subr.mxu0 0.0
    %278 = vmatpush1.msra.mxu0 0.0
    %279 = vmatprep.subr.mxu0 0.0
    %280 = vmatpush1.msra.mxu0 0.0
    %281 = vmatprep.subr.mxu0 0.0
    %282 = vmatpush1.msra.mxu0 0.0
    %283 = vmatprep.subr.mxu0 0.0
    %284 = vmatpush1.msra.mxu0 0.0
    %285 = vmatprep.subr.mxu0 0.0
    %286 = vmatpush1.msra.mxu0 0.0
    %287 = vmatprep.subr.mxu0 0.0
    %288 = vmatpush1.msra.mxu0 0.0
    %289 = vmatprep.subr.mxu0 0.0
    %290 = vmatpush1.msra.mxu0 0.0
    %291 = vmatprep.subr.mxu0 0.0
    %292 = vmatpush1.msra.mxu0 0.0
    %293 = vmatprep.subr.mxu0 0.0
    %294 = vmatpush1.msra.mxu0 0.0
    %295 = vmatprep.subr.mxu0 0.0
    %296 = vmatpush1.msra.mxu0 0.0
    %297 = vmatprep.subr.mxu0 0.0
    %298 = vmatpush1.msra.mxu0 0.0
    %299 = vmatprep.subr.mxu0 0.0
    %300 = vmatpush1.msra.mxu0 0.0
    %301 = vmatprep.subr.mxu0 0.0
    %302 = vmatpush1.msra.mxu0 0.0
    %303 = vmatprep.subr.mxu0 0.0
    %304 = vmatpush1.msra.mxu0 0.0
    %305 = vmatprep.subr.mxu0 0.0
    %306 = vmatpush1.msra.mxu0 0.0
    %307 = vmatprep.subr.mxu0 0.0
    %308 = vmatpush1.msra.mxu0 0.0
    %309 = vmatprep.subr.mxu0 0.0
    %310 = vmatpush1.msra.mxu0 0.0
    %311 = vmatprep.subr.mxu0 0.0
    %312 = vmatpush1.msra.mxu0 0.0
    %313 = vmatprep.subr.mxu0 0.0
    %314 = vmatpush1.msra.mxu0 0.0
    %315 = vmatprep.subr.mxu0 0.0
    %316 = vmatpush1.msra.mxu0 0.0
    %317 = vmatprep.subr.mxu0 0.0
    %318 = vmatpush1.msra.mxu0 0.0
    %319 = vmatprep.subr.mxu0 0.0
    %320 = vmatpush1.msra.mxu0 0.0
    %321 = vmatprep.subr.mxu0 0.0
    %322 = vmatpush1.msra.mxu0 0.0
    %323 = vmatprep.subr.mxu0 0.0
    %324 = vmatpush1.msra.mxu0 0.0
    %325 = vmatprep.subr.mxu0 0.0
    %326 = vmatpush1.msra.mxu0 0.0
    %327 = vmatprep.subr.mxu0 0.0
    %328 = vmatpush1.msra.mxu0 0.0
    %329 = vmatprep.subr.mxu0 0.0
    %330 = vmatpush1.msra.mxu0 0.0
    %331 = vmatprep.subr.mxu0 0.0
    %332 = vmatpush1.msra.mxu0 0.0
    %333 = vmatprep.subr.mxu0 0.0
    %334 = vmatpush1.msra.mxu0 0.0
    %335 = vmatprep.mubr.f32.mxu0 0.0
    %336 = vmatmul.mubr.f32.gmra.mrb[0].mxu0 %v266
    %v337 = vpop.f32.mrb[0].mxu0
    %v338 = vadd.f32 %v258, %v337
    %v339 = vpop.f32.mrb[0].mxu0
    %v340 = vadd.f32 %v262, %v339
    %341 = vmatprep.mubr.f32.mxu0 0.0
    %342 = vmatmul.mubr.f32.gmra.mrb[0].mxu0 %v269
    %v343 = vpop.f32.mrb[0].mxu0
    %v344 = vadd.f32 %v258, %v343
    %v345 = vpop.f32.mrb[0].mxu0
    %v346 = vadd.f32 %v262, %v345
    %347 = vdwg.mxu0
    %v348 = vld [vmem:[#allocation11] sm:$0xff]
    %v349 = vld [vmem:[#allocation11 + $0x8] sm:$0xff]
    %v350 = vld [vmem:[#allocation11 + $0x10] sm:$0xff]
    %v351 = vld [vmem:[#allocation11 + $0x18] sm:$0xff]
    %v352 = vld [vmem:[#allocation11 + $0x20] sm:$0xff]
    %v353 = vld [vmem:[#allocation11 + $0x28] sm:$0xff]
    %v354 = vld [vmem:[#allocation11 + $0x30] sm:$0xff]
    %v355 = vld [vmem:[#allocation11 + $0x38] sm:$0xff]
    %v357 = vrot.slane %v346, 4
    %vm359 = vcmask 1041408
    %v360 = vsel %vm359, %v338, %v357
    %vm361 = vcmask 261120
    %v363 = vsel %vm361, 0.0, 0
    %365 = vmatprep.subr.mxu0 %v349
    %366 = vmatpush1.msra.mxu0 %v348
    %367 = vmatprep.subr.mxu0 %v351
    %368 = vmatpush1.msra.mxu0 %v350
    %369 = vmatprep.subr.mxu0 %v353
    %370 = vmatpush1.msra.mxu0 %v352
    %371 = vmatprep.subr.mxu0 %v355
    %372 = vmatpush1.msra.mxu0 %v354
    %373 = vmatprep.subr.mxu0 0.0
    %374 = vmatpush1.msra.mxu0 0.0
    %375 = vmatprep.subr.mxu0 0.0
    %376 = vmatpush1.msra.mxu0 0.0
    %377 = vmatprep.subr.mxu0 0.0
    %378 = vmatpush1.msra.mxu0 0.0
    %379 = vmatprep.subr.mxu0 0.0
    %380 = vmatpush1.msra.mxu0 0.0
    %381 = vmatprep.subr.mxu0 0.0
    %382 = vmatpush1.msra.mxu0 0.0
    %383 = vmatprep.subr.mxu0 0.0
    %384 = vmatpush1.msra.mxu0 0.0
    %385 = vmatprep.subr.mxu0 0.0
    %386 = vmatpush1.msra.mxu0 0.0
    %387 = vmatprep.subr.mxu0 0.0
    %388 = vmatpush1.msra.mxu0 0.0
    %389 = vmatprep.subr.mxu0 0.0
    %390 = vmatpush1.msra.mxu0 0.0
    %391 = vmatprep.subr.mxu0 0.0
    %392 = vmatpush1.msra.mxu0 0.0
    %393 = vmatprep.subr.mxu0 0.0
    %394 = vmatpush1.msra.mxu0 0.0
    %395 = vmatprep.subr.mxu0 0.0
    %396 = vmatpush1.msra.mxu0 0.0
    %397 = vmatprep.subr.mxu0 0.0
    %398 = vmatpush1.msra.mxu0 0.0
    %399 = vmatprep.subr.mxu0 0.0
    %400 = vmatpush1.msra.mxu0 0.0
    %401 = vmatprep.subr.mxu0 0.0
    %402 = vmatpush1.msra.mxu0 0.0
    %403 = vmatprep.subr.mxu0 0.0
    %404 = vmatpush1.msra.mxu0 0.0
    %405 = vmatprep.subr.mxu0 0.0
    %406 = vmatpush1.msra.mxu0 0.0
    %407 = vmatprep.subr.mxu0 0.0
    %408 = vmatpush1.msra.mxu0 0.0
    %409 = vmatprep.subr.mxu0 0.0
    %410 = vmatpush1.msra.mxu0 0.0
    %411 = vmatprep.subr.mxu0 0.0
    %412 = vmatpush1.msra.mxu0 0.0
    %413 = vmatprep.subr.mxu0 0.0
    %414 = vmatpush1.msra.mxu0 0.0
    %415 = vmatprep.subr.mxu0 0.0
    %416 = vmatpush1.msra.mxu0 0.0
    %417 = vmatprep.subr.mxu0 0.0
    %418 = vmatpush1.msra.mxu0 0.0
    %419 = vmatprep.subr.mxu0 0.0
    %420 = vmatpush1.msra.mxu0 0.0
    %421 = vmatprep.subr.mxu0 0.0
    %422 = vmatpush1.msra.mxu0 0.0
    %423 = vmatprep.subr.mxu0 0.0
    %424 = vmatpush1.msra.mxu0 0.0
    %425 = vmatprep.subr.mxu0 0.0
    %426 = vmatpush1.msra.mxu0 0.0
    %427 = vmatprep.subr.mxu0 0.0
    %428 = vmatpush1.msra.mxu0 0.0
    %429 = vmatprep.mubr.f32.mxu0 0.0
    %430 = vmatmul.mubr.f32.gmra.mrb[0].mxu0 %v363
    %v431 = vpop.f32.mrb[0].mxu0
    %v432 = vadd.f32 0.0, %v431
    %v433 = vpop.f32.mrb[0].mxu0
    %v434 = vadd.f32 0.0, %v433
    %435 = vdwg.mxu0
    %v436 = vsel %vm248, 1, 0
    %vm437 = vcmp.eq.s32.totalorder %v436, 1
    %v438 = vsel %vm437, %v432, %v434
    %v439 = vadd.f32 %v360, %v438
    %v440 = vxor.u32 %v439, 2147483648
    %v441 = vmul.f32 %v440, 1.442695
    %v442 = vpow.pop %v441
    %v443 = vadd.f32 %v442, 1.0
    %v444 = vrcp.pop %v443
    %v445 = vmul.f32 1.0, %v444
    %v446 = vtanh.pop %v439
    %v447 = vmul.f32 %v445, 0.0
    %449 = vrot.lane.b32.xlu0 %v446, 64
    %v450 = vpop.permute.xlu0 %449
    %v452 = vmul.f32 %v445, %v450
    %454 = vrot.lane.b32.xlu0 %v452, 32
    %v455 = vpop.permute.xlu0 %454
    %v457 = vadd.f32 %v447, %v455
    %v458 = vtanh.pop %v457
    %460 = vrot.lane.b32.xlu0 %v458, 64
    %v461 = vpop.permute.xlu0 %460
    %v463 = vmul.f32 %v445, %v461
    %465 = vrot.lane.b32.xlu0 %v463, 32
    %v466 = vpop.permute.xlu0 %465
    %vm468 = vcmask 254976
    %469 = vst.msk [vmem:[#allocation2] sm:$0x3] %vm468, %v466
    %470 = vrot.lane.b32.xlu0 %v463, 64
    %v471 = vpop.permute.xlu0 %470
    %vm473 = vcmask 519426
    %474 = vst.msk [vmem:[#allocation2 + $0xc] sm:$0xc] %vm473, %v471
    %v476 = vrot.slane %v338, 2
    %v478 = vrot.slane %v346, 2
    %v480 = vsel %vm359, %v476, %v478
    %v481 = vsel %vm361, %v466, 0
    %483 = vmatprep.subr.mxu0 %v349
    %484 = vmatpush1.msra.mxu0 %v348
    %485 = vmatprep.subr.mxu0 %v351
    %486 = vmatpush1.msra.mxu0 %v350
    %487 = vmatprep.subr.mxu0 %v353
    %488 = vmatpush1.msra.mxu0 %v352
    %489 = vmatprep.subr.mxu0 %v355
    %490 = vmatpush1.msra.mxu0 %v354
    %491 = vmatprep.subr.mxu0 0.0
    %492 = vmatpush1.msra.mxu0 0.0
    %493 = vmatprep.subr.mxu0 0.0
    %494 = vmatpush1.msra.mxu0 0.0
    %495 = vmatprep.subr.mxu0 0.0
    %496 = vmatpush1.msra.mxu0 0.0
    %497 = vmatprep.subr.mxu0 0.0
    %498 = vmatpush1.msra.mxu0 0.0
    %499 = vmatprep.subr.mxu0 0.0
    %500 = vmatpush1.msra.mxu0 0.0
    %501 = vmatprep.subr.mxu0 0.0
    %502 = vmatpush1.msra.mxu0 0.0
    %503 = vmatprep.subr.mxu0 0.0
    %504 = vmatpush1.msra.mxu0 0.0
    %505 = vmatprep.subr.mxu0 0.0
    %506 = vmatpush1.msra.mxu0 0.0
    %507 = vmatprep.subr.mxu0 0.0
    %508 = vmatpush1.msra.mxu0 0.0
    %509 = vmatprep.subr.mxu0 0.0
    %510 = vmatpush1.msra.mxu0 0.0
    %511 = vmatprep.subr.mxu0 0.0
    %512 = vmatpush1.msra.mxu0 0.0
    %513 = vmatprep.subr.mxu0 0.0
    %514 = vmatpush1.msra.mxu0 0.0
    %515 = vmatprep.subr.mxu0 0.0
    %516 = vmatpush1.msra.mxu0 0.0
    %517 = vmatprep.subr.mxu0 0.0
    %518 = vmatpush1.msra.mxu0 0.0
    %519 = vmatprep.subr.mxu0 0.0
    %520 = vmatpush1.msra.mxu0 0.0
    %521 = vmatprep.subr.mxu0 0.0
    %522 = vmatpush1.msra.mxu0 0.0
    %523 = vmatprep.subr.mxu0 0.0
    %524 = vmatpush1.msra.mxu0 0.0
    %525 = vmatprep.subr.mxu0 0.0
    %526 = vmatpush1.msra.mxu0 0.0
    %527 = vmatprep.subr.mxu0 0.0
    %528 = vmatpush1.msra.mxu0 0.0
    %529 = vmatprep.subr.mxu0 0.0
    %530 = vmatpush1.msra.mxu0 0.0
    %531 = vmatprep.subr.mxu0 0.0
    %532 = vmatpush1.msra.mxu0 0.0
    %533 = vmatprep.subr.mxu0 0.0
    %534 = vmatpush1.msra.mxu0 0.0
    %535 = vmatprep.subr.mxu0 0.0
    %536 = vmatpush1.msra.mxu0 0.0
    %537 = vmatprep.subr.mxu0 0.0
    %538 = vmatpush1.msra.mxu0 0.0
    %539 = vmatprep.subr.mxu0 0.0
    %540 = vmatpush1.msra.mxu0 0.0
    %541 = vmatprep.subr.mxu0 0.0
    %542 = vmatpush1.msra.mxu0 0.0
    %543 = vmatprep.subr.mxu0 0.0
    %544 = vmatpush1.msra.mxu0 0.0
    %545 = vmatprep.subr.mxu0 0.0
    %546 = vmatpush1.msra.mxu0 0.0
    %547 = vmatprep.mubr.f32.mxu0 0.0
    %548 = vmatmul.mubr.f32.gmra.mrb[0].mxu0 %v481
    %v549 = vpop.f32.mrb[0].mxu0
    %v550 = vadd.f32 0.0, %v549
    %v551 = vpop.f32.mrb[0].mxu0
    %v552 = vadd.f32 0.0, %v551
    %553 = vdwg.mxu0
    %v554 = vsel %vm437, %v550, %v552
    %v555 = vadd.f32 %v480, %v554
    %v556 = vxor.u32 %v555, 2147483648
    %v557 = vmul.f32 %v556, 1.442695
    %v558 = vpow.pop %v557
    %v559 = vadd.f32 %v558, 1.0
    %v560 = vrcp.pop %v559
    %v561 = vmul.f32 1.0, %v560
    %v562 = vtanh.pop %v555
    %v563 = vmul.f32 %v561, %v457
    %565 = vrot.lane.b32.xlu0 %v562, 64
    %v566 = vpop.permute.xlu0 %565
    %v568 = vmul.f32 %v561, %v566
    %570 = vrot.lane.b32.xlu0 %v568, 32
    %v571 = vpop.permute.xlu0 %570
    %v573 = vadd.f32 %v563, %v571
    %v574 = vtanh.pop %v573
    %576 = vrot.lane.b32.xlu0 %v574, 64
    %v577 = vpop.permute.xlu0 %576
    %v579 = vmul.f32 %v561, %v577
    %581 = vrot.lane.b32.xlu0 %v579, 32
    %v582 = vpop.permute.xlu0 %581
    %584 = vst.msk [vmem:[#allocation2 + $0x2] sm:$0x3] %vm468, %v582
    %585 = vrot.lane.b32.xlu0 %v579, 64
    %v586 = vpop.permute.xlu0 %585
    %588 = vst.msk [vmem:[#allocation2 + $0xa] sm:$0xc] %vm473, %v586
    %v589 = vrot.slane %v338, 4
    %v591 = vsel %vm359, %v589, %v346
    %v592 = vsel %vm361, %v582, 0
    %594 = vmatprep.subr.mxu0 %v349
    %595 = vmatpush1.msra.mxu0 %v348
    %596 = vmatprep.subr.mxu0 %v351
    %597 = vmatpush1.msra.mxu0 %v350
    %598 = vmatprep.subr.mxu0 %v353
    %599 = vmatpush1.msra.mxu0 %v352
    %600 = vmatprep.subr.mxu0 %v355
    %601 = vmatpush1.msra.mxu0 %v354
    %602 = vmatprep.subr.mxu0 0.0
    %603 = vmatpush1.msra.mxu0 0.0
    %604 = vmatprep.subr.mxu0 0.0
    %605 = vmatpush1.msra.mxu0 0.0
    %606 = vmatprep.subr.mxu0 0.0
    %607 = vmatpush1.msra.mxu0 0.0
    %608 = vmatprep.subr.mxu0 0.0
    %609 = vmatpush1.msra.mxu0 0.0
    %610 = vmatprep.subr.mxu0 0.0
    %611 = vmatpush1.msra.mxu0 0.0
    %612 = vmatprep.subr.mxu0 0.0
    %613 = vmatpush1.msra.mxu0 0.0
    %614 = vmatprep.subr.mxu0 0.0
    %615 = vmatpush1.msra.mxu0 0.0
    %616 = vmatprep.subr.mxu0 0.0
    %617 = vmatpush1.msra.mxu0 0.0
    %618 = vmatprep.subr.mxu0 0.0
    %619 = vmatpush1.msra.mxu0 0.0
    %620 = vmatprep.subr.mxu0 0.0
    %621 = vmatpush1.msra.mxu0 0.0
    %622 = vmatprep.subr.mxu0 0.0
    %623 = vmatpush1.msra.mxu0 0.0
    %624 = vmatprep.subr.mxu0 0.0
    %625 = vmatpush1.msra.mxu0 0.0
    %626 = vmatprep.subr.mxu0 0.0
    %627 = vmatpush1.msra.mxu0 0.0
    %628 = vmatprep.subr.mxu0 0.0
    %629 = vmatpush1.msra.mxu0 0.0
    %630 = vmatprep.subr.mxu0 0.0
    %631 = vmatpush1.msra.mxu0 0.0
    %632 = vmatprep.subr.mxu0 0.0
    %633 = vmatpush1.msra.mxu0 0.0
    %634 = vmatprep.subr.mxu0 0.0
    %635 = vmatpush1.msra.mxu0 0.0
    %636 = vmatprep.subr.mxu0 0.0
    %637 = vmatpush1.msra.mxu0 0.0
    %638 = vmatprep.subr.mxu0 0.0
    %639 = vmatpush1.msra.mxu0 0.0
    %640 = vmatprep.subr.mxu0 0.0
    %641 = vmatpush1.msra.mxu0 0.0
    %642 = vmatprep.subr.mxu0 0.0
    %643 = vmatpush1.msra.mxu0 0.0
    %644 = vmatprep.subr.mxu0 0.0
    %645 = vmatpush1.msra.mxu0 0.0
    %646 = vmatprep.subr.mxu0 0.0
    %647 = vmatpush1.msra.mxu0 0.0
    %648 = vmatprep.subr.mxu0 0.0
    %649 = vmatpush1.msra.mxu0 0.0
    %650 = vmatprep.subr.mxu0 0.0
    %651 = vmatpush1.msra.mxu0 0.0
    %652 = vmatprep.subr.mxu0 0.0
    %653 = vmatpush1.msra.mxu0 0.0
    %654 = vmatprep.subr.mxu0 0.0
    %655 = vmatpush1.msra.mxu0 0.0
    %656 = vmatprep.subr.mxu0 0.0
    %657 = vmatpush1.msra.mxu0 0.0
    %658 = vmatprep.mubr.f32.mxu0 0.0
    %659 = vmatmul.mubr.f32.gmra.mrb[0].mxu0 %v592
    %v660 = vpop.f32.mrb[0].mxu0
    %v661 = vadd.f32 0.0, %v660
    %v662 = vpop.f32.mrb[0].mxu0
    %v663 = vadd.f32 0.0, %v662
    %664 = vdwg.mxu0
    %v665 = vsel %vm437, %v661, %v663
    %v666 = vadd.f32 %v591, %v665
    %v667 = vxor.u32 %v666, 2147483648
    %v668 = vmul.f32 %v667, 1.442695
    %v669 = vpow.pop %v668
    %v670 = vadd.f32 %v669, 1.0
    %v671 = vrcp.pop %v670
    %v672 = vmul.f32 1.0, %v671
    %v673 = vtanh.pop %v666
    %v674 = vmul.f32 %v672, %v573
    %676 = vrot.lane.b32.xlu0 %v673, 64
    %v677 = vpop.permute.xlu0 %676
    %v679 = vmul.f32 %v672, %v677
    %681 = vrot.lane.b32.xlu0 %v679, 32
    %v682 = vpop.permute.xlu0 %681
    %v684 = vadd.f32 %v674, %v682
    %v685 = vtanh.pop %v684
    %687 = vrot.lane.b32.xlu0 %v685, 64
    %v688 = vpop.permute.xlu0 %687
    %v690 = vmul.f32 %v672, %v688
    %692 = vrot.lane.b32.xlu0 %v690, 32
    %v693 = vpop.permute.xlu0 %692
    %695 = vst.msk [vmem:[#allocation2 + $0x4] sm:$0x3] %vm468, %v693
    %696 = vrot.lane.b32.xlu0 %v690, 64
    %v697 = vpop.permute.xlu0 %696
    %699 = vst.msk [vmem:[#allocation2 + $0x8] sm:$0xc] %vm473, %v697
    %v700 = vrot.slane %v338, 6
    %v702 = vrot.slane %v346, 6
    %v704 = vsel %vm359, %v700, %v702
    %v705 = vsel %vm361, %v693, 0
    %707 = vmatprep.subr.mxu0 %v349
    %708 = vmatpush1.msra.mxu0 %v348
    %709 = vmatprep.subr.mxu0 %v351
    %710 = vmatpush1.msra.mxu0 %v350
    %711 = vmatprep.subr.mxu0 %v353
    %712 = vmatpush1.msra.mxu0 %v352
    %713 = vmatprep.subr.mxu0 %v355
    %714 = vmatpush1.msra.mxu0 %v354
    %715 = vmatprep.subr.mxu0 0.0
    %716 = vmatpush1.msra.mxu0 0.0
    %717 = vmatprep.subr.mxu0 0.0
    %718 = vmatpush1.msra.mxu0 0.0
    %719 = vmatprep.subr.mxu0 0.0
    %720 = vmatpush1.msra.mxu0 0.0
    %721 = vmatprep.subr.mxu0 0.0
    %722 = vmatpush1.msra.mxu0 0.0
    %723 = vmatprep.subr.mxu0 0.0
    %724 = vmatpush1.msra.mxu0 0.0
    %725 = vmatprep.subr.mxu0 0.0
    %726 = vmatpush1.msra.mxu0 0.0
    %727 = vmatprep.subr.mxu0 0.0
    %728 = vmatpush1.msra.mxu0 0.0
    %729 = vmatprep.subr.mxu0 0.0
    %730 = vmatpush1.msra.mxu0 0.0
    %731 = vmatprep.subr.mxu0 0.0
    %732 = vmatpush1.msra.mxu0 0.0
    %733 = vmatprep.subr.mxu0 0.0
    %734 = vmatpush1.msra.mxu0 0.0
    %735 = vmatprep.subr.mxu0 0.0
    %736 = vmatpush1.msra.mxu0 0.0
    %737 = vmatprep.subr.mxu0 0.0
    %738 = vmatpush1.msra.mxu0 0.0
    %739 = vmatprep.subr.mxu0 0.0
    %740 = vmatpush1.msra.mxu0 0.0
    %741 = vmatprep.subr.mxu0 0.0
    %742 = vmatpush1.msra.mxu0 0.0
    %743 = vmatprep.subr.mxu0 0.0
    %744 = vmatpush1.msra.mxu0 0.0
    %745 = vmatprep.subr.mxu0 0.0
    %746 = vmatpush1.msra.mxu0 0.0
    %747 = vmatprep.subr.mxu0 0.0
    %748 = vmatpush1.msra.mxu0 0.0
    %749 = vmatprep.subr.mxu0 0.0
    %750 = vmatpush1.msra.mxu0 0.0
    %751 = vmatprep.subr.mxu0 0.0
    %752 = vmatpush1.msra.mxu0 0.0
    %753 = vmatprep.subr.mxu0 0.0
    %754 = vmatpush1.msra.mxu0 0.0
    %755 = vmatprep.subr.mxu0 0.0
    %756 = vmatpush1.msra.mxu0 0.0
    %757 = vmatprep.subr.mxu0 0.0
    %758 = vmatpush1.msra.mxu0 0.0
    %759 = vmatprep.subr.mxu0 0.0
    %760 = vmatpush1.msra.mxu0 0.0
    %761 = vmatprep.subr.mxu0 0.0
    %762 = vmatpush1.msra.mxu0 0.0
    %763 = vmatprep.subr.mxu0 0.0
    %764 = vmatpush1.msra.mxu0 0.0
    %765 = vmatprep.subr.mxu0 0.0
    %766 = vmatpush1.msra.mxu0 0.0
    %767 = vmatprep.subr.mxu0 0.0
    %768 = vmatpush1.msra.mxu0 0.0
    %769 = vmatprep.subr.mxu0 0.0
    %770 = vmatpush1.msra.mxu0 0.0
    %771 = vmatprep.mubr.f32.mxu0 0.0
    %772 = vmatmul.mubr.f32.gmra.mrb[0].mxu0 %v705
    %v773 = vpop.f32.mrb[0].mxu0
    %v774 = vadd.f32 0.0, %v773
    %v775 = vpop.f32.mrb[0].mxu0
    %v776 = vadd.f32 0.0, %v775
    %777 = vdwg.mxu0
    %v778 = vsel %vm437, %v774, %v776
    %v779 = vadd.f32 %v704, %v778
    %v780 = vxor.u32 %v779, 2147483648
    %v781 = vmul.f32 %v780, 1.442695
    %v782 = vpow.pop %v781
    %v783 = vadd.f32 %v782, 1.0
    %v784 = vrcp.pop %v783
    %v785 = vmul.f32 1.0, %v784
    %v786 = vtanh.pop %v779
    %v787 = vmul.f32 %v785, %v684
    %789 = vrot.lane.b32.xlu0 %v786, 64
    %v790 = vpop.permute.xlu0 %789
    %v792 = vmul.f32 %v785, %v790
    %794 = vrot.lane.b32.xlu0 %v792, 32
    %v795 = vpop.permute.xlu0 %794
    %v797 = vadd.f32 %v787, %v795
    %v798 = vtanh.pop %v797
    %800 = vrot.lane.b32.xlu0 %v798, 64
    %v801 = vpop.permute.xlu0 %800
    %v803 = vmul.f32 %v785, %v801
    %805 = vrot.lane.b32.xlu0 %v803, 32
    %v806 = vpop.permute.xlu0 %805
    %808 = vst.msk [vmem:[#allocation2 + $0x6] sm:$0x3] %vm468, %v806
    %809 = vrot.lane.b32.xlu0 %v803, 64
    %v810 = vpop.permute.xlu0 %809
    %812 = vst.msk [vmem:[#allocation2 + $0x6] sm:$0xc] %vm473, %v810
    %v814 = vrot.slane %v340, 4
    %v816 = vsel %vm359, %v344, %v814
    %v817 = vsel %vm361, %v806, 0
    %819 = vmatprep.subr.mxu0 %v349
    %820 = vmatpush1.msra.mxu0 %v348
    %821 = vmatprep.subr.mxu0 %v351
    %822 = vmatpush1.msra.mxu0 %v350
    %823 = vmatprep.subr.mxu0 %v353
    %824 = vmatpush1.msra.mxu0 %v352
    %825 = vmatprep.subr.mxu0 %v355
    %826 = vmatpush1.msra.mxu0 %v354
    %827 = vmatprep.subr.mxu0 0.0
    %828 = vmatpush1.msra.mxu0 0.0
    %829 = vmatprep.subr.mxu0 0.0
    %830 = vmatpush1.msra.mxu0 0.0
    %831 = vmatprep.subr.mxu0 0.0
    %832 = vmatpush1.msra.mxu0 0.0
    %833 = vmatprep.subr.mxu0 0.0
    %834 = vmatpush1.msra.mxu0 0.0
    %835 = vmatprep.subr.mxu0 0.0
    %836 = vmatpush1.msra.mxu0 0.0
    %837 = vmatprep.subr.mxu0 0.0
    %838 = vmatpush1.msra.mxu0 0.0
    %839 = vmatprep.subr.mxu0 0.0
    %840 = vmatpush1.msra.mxu0 0.0
    %841 = vmatprep.subr.mxu0 0.0
    %842 = vmatpush1.msra.mxu0 0.0
    %843 = vmatprep.subr.mxu0 0.0
    %844 = vmatpush1.msra.mxu0 0.0
    %845 = vmatprep.subr.mxu0 0.0
    %846 = vmatpush1.msra.mxu0 0.0
    %847 = vmatprep.subr.mxu0 0.0
    %848 = vmatpush1.msra.mxu0 0.0
    %849 = vmatprep.subr.mxu0 0.0
    %850 = vmatpush1.msra.mxu0 0.0
    %851 = vmatprep.subr.mxu0 0.0
    %852 = vmatpush1.msra.mxu0 0.0
    %853 = vmatprep.subr.mxu0 0.0
    %854 = vmatpush1.msra.mxu0 0.0
    %855 = vmatprep.subr.mxu0 0.0
    %856 = vmatpush1.msra.mxu0 0.0
    %857 = vmatprep.subr.mxu0 0.0
    %858 = vmatpush1.msra.mxu0 0.0
    %859 = vmatprep.subr.mxu0 0.0
    %860 = vmatpush1.msra.mxu0 0.0
    %861 = vmatprep.subr.mxu0 0.0
    %862 = vmatpush1.msra.mxu0 0.0
    %863 = vmatprep.subr.mxu0 0.0
    %864 = vmatpush1.msra.mxu0 0.0
    %865 = vmatprep.subr.mxu0 0.0
    %866 = vmatpush1.msra.mxu0 0.0
    %867 = vmatprep.subr.mxu0 0.0
    %868 = vmatpush1.msra.mxu0 0.0
    %869 = vmatprep.subr.mxu0 0.0
    %870 = vmatpush1.msra.mxu0 0.0
    %871 = vmatprep.subr.mxu0 0.0
    %872 = vmatpush1.msra.mxu0 0.0
    %873 = vmatprep.subr.mxu0 0.0
    %874 = vmatpush1.msra.mxu0 0.0
    %875 = vmatprep.subr.mxu0 0.0
    %876 = vmatpush1.msra.mxu0 0.0
    %877 = vmatprep.subr.mxu0 0.0
    %878 = vmatpush1.msra.mxu0 0.0
    %879 = vmatprep.subr.mxu0 0.0
    %880 = vmatpush1.msra.mxu0 0.0
    %881 = vmatprep.subr.mxu0 0.0
    %882 = vmatpush1.msra.mxu0 0.0
    %883 = vmatprep.mubr.f32.mxu0 0.0
    %884 = vmatmul.mubr.f32.gmra.mrb[0].mxu0 %v817
    %v885 = vpop.f32.mrb[0].mxu0
    %v886 = vadd.f32 0.0, %v885
    %v887 = vpop.f32.mrb[0].mxu0
    %v888 = vadd.f32 0.0, %v887
    %889 = vdwg.mxu0
    %v890 = vsel %vm437, %v886, %v888
    %v891 = vadd.f32 %v816, %v890
    %v892 = vxor.u32 %v891, 2147483648
    %v893 = vmul.f32 %v892, 1.442695
    %v894 = vpow.pop %v893
    %v895 = vadd.f32 %v894, 1.0
    %v896 = vrcp.pop %v895
    %v897 = vmul.f32 1.0, %v896
    %v898 = vtanh.pop %v891
    %v899 = vmul.f32 %v897, %v797
    %901 = vrot.lane.b32.xlu0 %v898, 64
    %v902 = vpop.permute.xlu0 %901
    %v904 = vmul.f32 %v897, %v902
    %906 = vrot.lane.b32.xlu0 %v904, 32
    %v907 = vpop.permute.xlu0 %906
    %v909 = vadd.f32 %v899, %v907
    %v910 = vtanh.pop %v909
    %912 = vrot.lane.b32.xlu0 %v910, 64
    %v913 = vpop.permute.xlu0 %912
    %v915 = vmul.f32 %v897, %v913
    %917 = vrot.lane.b32.xlu0 %v915, 32
    %v918 = vpop.permute.xlu0 %917
    %920 = vst.msk [vmem:[#allocation2 + $0x8] sm:$0x3] %vm468, %v918
    %921 = vrot.lane.b32.xlu0 %v915, 64
    %v922 = vpop.permute.xlu0 %921
    %924 = vst.msk [vmem:[#allocation2 + $0x4] sm:$0xc] %vm473, %v922
    %v926 = vrot.slane %v344, 2
    %v928 = vrot.slane %v340, 2
    %v930 = vsel %vm359, %v926, %v928
    %v931 = vsel %vm361, %v918, 0
    %933 = vmatprep.subr.mxu0 %v349
    %934 = vmatpush1.msra.mxu0 %v348
    %935 = vmatprep.subr.mxu0 %v351
    %936 = vmatpush1.msra.mxu0 %v350
    %937 = vmatprep.subr.mxu0 %v353
    %938 = vmatpush1.msra.mxu0 %v352
    %939 = vmatprep.subr.mxu0 %v355
    %940 = vmatpush1.msra.mxu0 %v354
    %941 = vmatprep.subr.mxu0 0.0
    %942 = vmatpush1.msra.mxu0 0.0
    %943 = vmatprep.subr.mxu0 0.0
    %944 = vmatpush1.msra.mxu0 0.0
    %945 = vmatprep.subr.mxu0 0.0
    %946 = vmatpush1.msra.mxu0 0.0
    %947 = vmatprep.subr.mxu0 0.0
    %948 = vmatpush1.msra.mxu0 0.0
    %949 = vmatprep.subr.mxu0 0.0
    %950 = vmatpush1.msra.mxu0 0.0
    %951 = vmatprep.subr.mxu0 0.0
    %952 = vmatpush1.msra.mxu0 0.0
    %953 = vmatprep.subr.mxu0 0.0
    %954 = vmatpush1.msra.mxu0 0.0
    %955 = vmatprep.subr.mxu0 0.0
    %956 = vmatpush1.msra.mxu0 0.0
    %957 = vmatprep.subr.mxu0 0.0
    %958 = vmatpush1.msra.mxu0 0.0
    %959 = vmatprep.subr.mxu0 0.0
    %960 = vmatpush1.msra.mxu0 0.0
    %961 = vmatprep.subr.mxu0 0.0
    %962 = vmatpush1.msra.mxu0 0.0
    %963 = vmatprep.subr.mxu0 0.0
    %964 = vmatpush1.msra.mxu0 0.0
    %965 = vmatprep.subr.mxu0 0.0
    %966 = vmatpush1.msra.mxu0 0.0
    %967 = vmatprep.subr.mxu0 0.0
    %968 = vmatpush1.msra.mxu0 0.0
    %969 = vmatprep.subr.mxu0 0.0
    %970 = vmatpush1.msra.mxu0 0.0
    %971 = vmatprep.subr.mxu0 0.0
    %972 = vmatpush1.msra.mxu0 0.0
    %973 = vmatprep.subr.mxu0 0.0
    %974 = vmatpush1.msra.mxu0 0.0
    %975 = vmatprep.subr.mxu0 0.0
    %976 = vmatpush1.msra.mxu0 0.0
    %977 = vmatprep.subr.mxu0 0.0
    %978 = vmatpush1.msra.mxu0 0.0
    %979 = vmatprep.subr.mxu0 0.0
    %980 = vmatpush1.msra.mxu0 0.0
    %981 = vmatprep.subr.mxu0 0.0
    %982 = vmatpush1.msra.mxu0 0.0
    %983 = vmatprep.subr.mxu0 0.0
    %984 = vmatpush1.msra.mxu0 0.0
    %985 = vmatprep.subr.mxu0 0.0
    %986 = vmatpush1.msra.mxu0 0.0
    %987 = vmatprep.subr.mxu0 0.0
    %988 = vmatpush1.msra.mxu0 0.0
    %989 = vmatprep.subr.mxu0 0.0
    %990 = vmatpush1.msra.mxu0 0.0
    %991 = vmatprep.subr.mxu0 0.0
    %992 = vmatpush1.msra.mxu0 0.0
    %993 = vmatprep.subr.mxu0 0.0
    %994 = vmatpush1.msra.mxu0 0.0
    %995 = vmatprep.subr.mxu0 0.0
    %996 = vmatpush1.msra.mxu0 0.0
    %997 = vmatprep.mubr.f32.mxu0 0.0
    %998 = vmatmul.mubr.f32.gmra.mrb[0].mxu0 %v931
    %v999 = vpop.f32.mrb[0].mxu0
    %v1000 = vadd.f32 0.0, %v999
    %v1001 = vpop.f32.mrb[0].mxu0
    %v1002 = vadd.f32 0.0, %v1001
    %1003 = vdwg.mxu0
    %v1004 = vsel %vm437, %v1000, %v1002
    %v1005 = vadd.f32 %v930, %v1004
    %v1006 = vxor.u32 %v1005, 2147483648
    %v1007 = vmul.f32 %v1006, 1.442695
    %v1008 = vpow.pop %v1007
    %v1009 = vadd.f32 %v1008, 1.0
    %v1010 = vrcp.pop %v1009
    %v1011 = vmul.f32 1.0, %v1010
    %v1012 = vtanh.pop %v1005
    %v1013 = vmul.f32 %v1011, %v909
    %1015 = vrot.lane.b32.xlu0 %v1012, 64
    %v1016 = vpop.permute.xlu0 %1015
    %v1018 = vmul.f32 %v1011, %v1016
    %1020 = vrot.lane.b32.xlu0 %v1018, 32
    %v1021 = vpop.permute.xlu0 %1020
    %v1023 = vadd.f32 %v1013, %v1021
    %v1024 = vtanh.pop %v1023
    %1026 = vrot.lane.b32.xlu0 %v1024, 64
    %v1027 = vpop.permute.xlu0 %1026
    %v1029 = vmul.f32 %v1011, %v1027
    %1031 = vrot.lane.b32.xlu0 %v1029, 32
    %v1032 = vpop.permute.xlu0 %1031
    %1034 = vst.msk [vmem:[#allocation2 + $0xa] sm:$0x3] %vm468, %v1032
    %1035 = vrot.lane.b32.xlu0 %v1029, 64
    %v1036 = vpop.permute.xlu0 %1035
    %1038 = vst.msk [vmem:[#allocation2 + $0x2] sm:$0xc] %vm473, %v1036
    %v1039 = vrot.slane %v344, 4
    %v1041 = vsel %vm359, %v1039, %v340
    %v1042 = vsel %vm361, %v1032, 0
    %1044 = vmatprep.subr.mxu0 %v349
    %1045 = vmatpush1.msra.mxu0 %v348
    %1046 = vmatprep.subr.mxu0 %v351
    %1047 = vmatpush1.msra.mxu0 %v350
    %1048 = vmatprep.subr.mxu0 %v353
    %1049 = vmatpush1.msra.mxu0 %v352
    %1050 = vmatprep.subr.mxu0 %v355
    %1051 = vmatpush1.msra.mxu0 %v354
    %1052 = vmatprep.subr.mxu0 0.0
    %1053 = vmatpush1.msra.mxu0 0.0
    %1054 = vmatprep.subr.mxu0 0.0
    %1055 = vmatpush1.msra.mxu0 0.0
    %1056 = vmatprep.subr.mxu0 0.0
    %1057 = vmatpush1.msra.mxu0 0.0
    %1058 = vmatprep.subr.mxu0 0.0
    %1059 = vmatpush1.msra.mxu0 0.0
    %1060 = vmatprep.subr.mxu0 0.0
    %1061 = vmatpush1.msra.mxu0 0.0
    %1062 = vmatprep.subr.mxu0 0.0
    %1063 = vmatpush1.msra.mxu0 0.0
    %1064 = vmatprep.subr.mxu0 0.0
    %1065 = vmatpush1.msra.mxu0 0.0
    %1066 = vmatprep.subr.mxu0 0.0
    %1067 = vmatpush1.msra.mxu0 0.0
    %1068 = vmatprep.subr.mxu0 0.0
    %1069 = vmatpush1.msra.mxu0 0.0
    %1070 = vmatprep.subr.mxu0 0.0
    %1071 = vmatpush1.msra.mxu0 0.0
    %1072 = vmatprep.subr.mxu0 0.0
    %1073 = vmatpush1.msra.mxu0 0.0
    %1074 = vmatprep.subr.mxu0 0.0
    %1075 = vmatpush1.msra.mxu0 0.0
    %1076 = vmatprep.subr.mxu0 0.0
    %1077 = vmatpush1.msra.mxu0 0.0
    %1078 = vmatprep.subr.mxu0 0.0
    %1079 = vmatpush1.msra.mxu0 0.0
    %1080 = vmatprep.subr.mxu0 0.0
    %1081 = vmatpush1.msra.mxu0 0.0
    %1082 = vmatprep.subr.mxu0 0.0
    %1083 = vmatpush1.msra.mxu0 0.0
    %1084 = vmatprep.subr.mxu0 0.0
    %1085 = vmatpush1.msra.mxu0 0.0
    %1086 = vmatprep.subr.mxu0 0.0
    %1087 = vmatpush1.msra.mxu0 0.0
    %1088 = vmatprep.subr.mxu0 0.0
    %1089 = vmatpush1.msra.mxu0 0.0
    %1090 = vmatprep.subr.mxu0 0.0
    %1091 = vmatpush1.msra.mxu0 0.0
    %1092 = vmatprep.subr.mxu0 0.0
    %1093 = vmatpush1.msra.mxu0 0.0
    %1094 = vmatprep.subr.mxu0 0.0
    %1095 = vmatpush1.msra.mxu0 0.0
    %1096 = vmatprep.subr.mxu0 0.0
    %1097 = vmatpush1.msra.mxu0 0.0
    %1098 = vmatprep.subr.mxu0 0.0
    %1099 = vmatpush1.msra.mxu0 0.0
    %1100 = vmatprep.subr.mxu0 0.0
    %1101 = vmatpush1.msra.mxu0 0.0
    %1102 = vmatprep.subr.mxu0 0.0
    %1103 = vmatpush1.msra.mxu0 0.0
    %1104 = vmatprep.subr.mxu0 0.0
    %1105 = vmatpush1.msra.mxu0 0.0
    %1106 = vmatprep.subr.mxu0 0.0
    %1107 = vmatpush1.msra.mxu0 0.0
    %1108 = vmatprep.mubr.f32.mxu0 0.0
    %1109 = vmatmul.mubr.f32.gmra.mrb[0].mxu0 %v1042
    %v1110 = vpop.f32.mrb[0].mxu0
    %v1111 = vadd.f32 0.0, %v1110
    %v1112 = vpop.f32.mrb[0].mxu0
    %v1113 = vadd.f32 0.0, %v1112
    %1114 = vdwg.mxu0
    %v1115 = vsel %vm437, %v1111, %v1113
    %v1116 = vadd.f32 %v1041, %v1115
    %v1117 = vxor.u32 %v1116, 2147483648
    %v1118 = vmul.f32 %v1117, 1.442695
    %v1119 = vpow.pop %v1118
    %v1120 = vadd.f32 %v1119, 1.0
    %v1121 = vrcp.pop %v1120
    %v1122 = vmul.f32 1.0, %v1121
    %v1123 = vtanh.pop %v1116
    %v1124 = vmul.f32 %v1122, %v1023
    %1126 = vrot.lane.b32.xlu0 %v1123, 64
    %v1127 = vpop.permute.xlu0 %1126
    %v1129 = vmul.f32 %v1122, %v1127
    %1131 = vrot.lane.b32.xlu0 %v1129, 32
    %v1132 = vpop.permute.xlu0 %1131
    %v1134 = vadd.f32 %v1124, %v1132
    %v1135 = vtanh.pop %v1134
    %1137 = vrot.lane.b32.xlu0 %v1135, 64
    %v1138 = vpop.permute.xlu0 %1137
    %v1140 = vmul.f32 %v1122, %v1138
    %1142 = vrot.lane.b32.xlu0 %v1140, 32
    %v1143 = vpop.permute.xlu0 %1142
    %1145 = vst.msk [vmem:[#allocation2 + $0xc] sm:$0x3] %vm468, %v1143
    %1146 = vrot.lane.b32.xlu0 %v1140, 64
    %v1147 = vpop.permute.xlu0 %1146
    %1149 = vst.msk [vmem:[#allocation2] sm:$0xc] %vm473, %v1147
    %v1150 = vrot.slane %v344, 6
    %v1152 = vrot.slane %v340, 6
    %v1154 = vsel %vm359, %v1150, %v1152
    %v1155 = vsel %vm361, %v1143, 0
    %1157 = vmatprep.subr.mxu0 %v349
    %1158 = vmatpush1.msra.mxu0 %v348
    %1159 = vmatprep.subr.mxu0 %v351
    %1160 = vmatpush1.msra.mxu0 %v350
    %1161 = vmatprep.subr.mxu0 %v353
    %1162 = vmatpush1.msra.mxu0 %v352
    %1163 = vmatprep.subr.mxu0 %v355
    %1164 = vmatpush1.msra.mxu0 %v354
    %1165 = vmatprep.subr.mxu0 0.0
    %1166 = vmatpush1.msra.mxu0 0.0
    %1167 = vmatprep.subr.mxu0 0.0
    %1168 = vmatpush1.msra.mxu0 0.0
    %1169 = vmatprep.subr.mxu0 0.0
    %1170 = vmatpush1.msra.mxu0 0.0
    %1171 = vmatprep.subr.mxu0 0.0
    %1172 = vmatpush1.msra.mxu0 0.0
    %1173 = vmatprep.subr.mxu0 0.0
    %1174 = vmatpush1.msra.mxu0 0.0
    %1175 = vmatprep.subr.mxu0 0.0
    %1176 = vmatpush1.msra.mxu0 0.0
    %1177 = vmatprep.subr.mxu0 0.0
    %1178 = vmatpush1.msra.mxu0 0.0
    %1179 = vmatprep.subr.mxu0 0.0
    %1180 = vmatpush1.msra.mxu0 0.0
    %1181 = vmatprep.subr.mxu0 0.0
    %1182 = vmatpush1.msra.mxu0 0.0
    %1183 = vmatprep.subr.mxu0 0.0
    %1184 = vmatpush1.msra.mxu0 0.0
    %1185 = vmatprep.subr.mxu0 0.0
    %1186 = vmatpush1.msra.mxu0 0.0
    %1187 = vmatprep.subr.mxu0 0.0
    %1188 = vmatpush1.msra.mxu0 0.0
    %1189 = vmatprep.subr.mxu0 0.0
    %1190 = vmatpush1.msra.mxu0 0.0
    %1191 = vmatprep.subr.mxu0 0.0
    %1192 = vmatpush1.msra.mxu0 0.0
    %1193 = vmatprep.subr.mxu0 0.0
    %1194 = vmatpush1.msra.mxu0 0.0
    %1195 = vmatprep.subr.mxu0 0.0
    %1196 = vmatpush1.msra.mxu0 0.0
    %1197 = vmatprep.subr.mxu0 0.0
    %1198 = vmatpush1.msra.mxu0 0.0
    %1199 = vmatprep.subr.mxu0 0.0
    %1200 = vmatpush1.msra.mxu0 0.0
    %1201 = vmatprep.subr.mxu0 0.0
    %1202 = vmatpush1.msra.mxu0 0.0
    %1203 = vmatprep.subr.mxu0 0.0
    %1204 = vmatpush1.msra.mxu0 0.0
    %1205 = vmatprep.subr.mxu0 0.0
    %1206 = vmatpush1.msra.mxu0 0.0
    %1207 = vmatprep.subr.mxu0 0.0
    %1208 = vmatpush1.msra.mxu0 0.0
    %1209 = vmatprep.subr.mxu0 0.0
    %1210 = vmatpush1.msra.mxu0 0.0
    %1211 = vmatprep.subr.mxu0 0.0
    %1212 = vmatpush1.msra.mxu0 0.0
    %1213 = vmatprep.subr.mxu0 0.0
    %1214 = vmatpush1.msra.mxu0 0.0
    %1215 = vmatprep.subr.mxu0 0.0
    %1216 = vmatpush1.msra.mxu0 0.0
    %1217 = vmatprep.subr.mxu0 0.0
    %1218 = vmatpush1.msra.mxu0 0.0
    %1219 = vmatprep.subr.mxu0 0.0
    %1220 = vmatpush1.msra.mxu0 0.0
    %1221 = vmatprep.mubr.f32.mxu0 0.0
    %1222 = vmatmul.mubr.f32.gmra.mrb[0].mxu0 %v1155
    %v1223 = vpop.f32.mrb[0].mxu0
    %v1224 = vadd.f32 0.0, %v1223
    %v1225 = vpop.f32.mrb[0].mxu0
    %v1226 = vadd.f32 0.0, %v1225
    %1227 = vdwg.mxu0
    %v1228 = vsel %vm437, %v1224, %v1226
    %v1229 = vadd.f32 %v1154, %v1228
    %v1230 = vxor.u32 %v1229, 2147483648
    %v1231 = vmul.f32 %v1230, 1.442695
    %v1232 = vpow.pop %v1231
    %v1233 = vadd.f32 %v1232, 1.0
    %v1234 = vrcp.pop %v1233
    %v1235 = vmul.f32 1.0, %v1234
    %v1236 = vtanh.pop %v1229
    %v1237 = vmul.f32 %v1235, %v1134
    %1239 = vrot.lane.b32.xlu0 %v1236, 64
    %v1240 = vpop.permute.xlu0 %1239
    %v1242 = vmul.f32 %v1235, %v1240
    %1244 = vrot.lane.b32.xlu0 %v1242, 32
    %v1245 = vpop.permute.xlu0 %1244
    %v1247 = vadd.f32 %v1237, %v1245
    %v1248 = vtanh.pop %v1247
    %1250 = vrot.lane.b32.xlu0 %v1248, 64
    %v1251 = vpop.permute.xlu0 %1250
    %v1253 = vmul.f32 %v1235, %v1251
    %1255 = vrot.lane.b32.xlu0 %v1253, 32
    %v1256 = vpop.permute.xlu0 %1255
    %1258 = vst.msk [vmem:[#allocation2 + $0xe] sm:$0x3] %vm468, %v1256
    %1259 = vrot.lane.b32.xlu0 %v1253, 64
    %v1260 = vpop.permute.xlu0 %1259
    %1262 = vst.msk [vmem:[#allocation2 - $0x2] sm:$0xc] %vm473, %v1260
    %v1263 = vld [vmem:[#allocation2] sm:$0xff]
    %v1264 = vld [vmem:[#allocation2 + $0x8] sm:$0xff]
    %v1265 = vld [vmem:[%s8] sm:$0xff]
    %v1266 = vld [vmem:[%s8 + $0x8] sm:$0xff]
    %v1267 = vld [vmem:[%s8 + $0x10] sm:$0xff]
    %v1268 = vld [vmem:[%s8 + $0x18] sm:$0xff]
    %v1269 = vld [vmem:[%s8 + $0x20] sm:$0xff]
    %v1270 = vld [vmem:[%s8 + $0x28] sm:$0xff]
    %v1271 = vld [vmem:[%s8 + $0x30] sm:$0xff]
    %v1272 = vld [vmem:[%s8 + $0x38] sm:$0xff]
    %v1273 = vld [vmem:[%s8 + $0x40] sm:$0xff]
    %v1274 = vld [vmem:[%s8 + $0x48] sm:$0xff]
    %v1275 = vld [vmem:[%s8 + $0x50] sm:$0xff]
    %v1276 = vld [vmem:[%s8 + $0x58] sm:$0xff]
    %v1277 = vld [vmem:[%s8 + $0x60] sm:$0xff]
    %v1278 = vld [vmem:[%s8 + $0x68] sm:$0xff]
    %v1279 = vld [vmem:[%s8 + $0x70] sm:$0xff]
    %v1280 = vld [vmem:[%s8 + $0x78] sm:$0xff]
    %v1281 = vld [vmem:[#allocation12] sm:$0x3]
    %v1283 = vlaneseq
    %v1284 = vshrl.u32 %v1283, 7
    %v1285 = vsub.s32 0, %v1284
    %v1286 = vrot.slane %v1281, %v1285
    %v1287 = vlaneseq
    %v1288 = vshrl.u32 %v1287, 7
    %v1289 = vsub.s32 1, %v1288
    %v1290 = vrot.slane %v1281, %v1289
    %vm1293 = vcmask 523264
    %v1295 = vsel %vm1293, %v1263, 0
    %v1298 = vsel %vm1293, %v1264, 0
    %1300 = vmatprep.subr.mxu0 %v1266
    %1301 = vmatpush1.msra.mxu0 %v1265
    %1302 = vmatprep.subr.mxu0 %v1268
    %1303 = vmatpush1.msra.mxu0 %v1267
    %1304 = vmatprep.subr.mxu0 %v1270
    %1305 = vmatpush1.msra.mxu0 %v1269
    %1306 = vmatprep.subr.mxu0 %v1272
    %1307 = vmatpush1.msra.mxu0 %v1271
    %1308 = vmatprep.subr.mxu0 %v1274
    %1309 = vmatpush1.msra.mxu0 %v1273
    %1310 = vmatprep.subr.mxu0 %v1276
    %1311 = vmatpush1.msra.mxu0 %v1275
    %1312 = vmatprep.subr.mxu0 %v1278
    %1313 = vmatpush1.msra.mxu0 %v1277
    %1314 = vmatprep.subr.mxu0 %v1280
    %1315 = vmatpush1.msra.mxu0 %v1279
    %1316 = vmatprep.subr.mxu0 0.0
    %1317 = vmatpush1.msra.mxu0 0.0
    %1318 = vmatprep.subr.mxu0 0.0
    %1319 = vmatpush1.msra.mxu0 0.0
    %1320 = vmatprep.subr.mxu0 0.0
    %1321 = vmatpush1.msra.mxu0 0.0
    %1322 = vmatprep.subr.mxu0 0.0
    %1323 = vmatpush1.msra.mxu0 0.0
    %1324 = vmatprep.subr.mxu0 0.0
    %1325 = vmatpush1.msra.mxu0 0.0
    %1326 = vmatprep.subr.mxu0 0.0
    %1327 = vmatpush1.msra.mxu0 0.0
    %1328 = vmatprep.subr.mxu0 0.0
    %1329 = vmatpush1.msra.mxu0 0.0
    %1330 = vmatprep.subr.mxu0 0.0
    %1331 = vmatpush1.msra.mxu0 0.0
    %1332 = vmatprep.subr.mxu0 0.0
    %1333 = vmatpush1.msra.mxu0 0.0
    %1334 = vmatprep.subr.mxu0 0.0
    %1335 = vmatpush1.msra.mxu0 0.0
    %1336 = vmatprep.subr.mxu0 0.0
    %1337 = vmatpush1.msra.mxu0 0.0
    %1338 = vmatprep.subr.mxu0 0.0
    %1339 = vmatpush1.msra.mxu0 0.0
    %1340 = vmatprep.subr.mxu0 0.0
    %1341 = vmatpush1.msra.mxu0 0.0
    %1342 = vmatprep.subr.mxu0 0.0
    %1343 = vmatpush1.msra.mxu0 0.0
    %1344 = vmatprep.subr.mxu0 0.0
    %1345 = vmatpush1.msra.mxu0 0.0
    %1346 = vmatprep.subr.mxu0 0.0
    %1347 = vmatpush1.msra.mxu0 0.0
    %1348 = vmatprep.subr.mxu0 0.0
    %1349 = vmatpush1.msra.mxu0 0.0
    %1350 = vmatprep.subr.mxu0 0.0
    %1351 = vmatpush1.msra.mxu0 0.0
    %1352 = vmatprep.subr.mxu0 0.0
    %1353 = vmatpush1.msra.mxu0 0.0
    %1354 = vmatprep.subr.mxu0 0.0
    %1355 = vmatpush1.msra.mxu0 0.0
    %1356 = vmatprep.subr.mxu0 0.0
    %1357 = vmatpush1.msra.mxu0 0.0
    %1358 = vmatprep.subr.mxu0 0.0
    %1359 = vmatpush1.msra.mxu0 0.0
    %1360 = vmatprep.subr.mxu0 0.0
    %1361 = vmatpush1.msra.mxu0 0.0
    %1362 = vmatprep.subr.mxu0 0.0
    %1363 = vmatpush1.msra.mxu0 0.0
    %1364 = vmatprep.mubr.f32.mxu0 0.0
    %1365 = vmatmul.mubr.f32.gmra.mrb[0].mxu0 %v1295
    %v1366 = vpop.f32.mrb[0].mxu0
    %v1367 = vadd.f32 %v1286, %v1366
    %v1368 = vpop.f32.mrb[0].mxu0
    %v1369 = vadd.f32 %v1290, %v1368
    %1370 = vmatprep.mubr.f32.mxu0 0.0
    %1371 = vmatmul.mubr.f32.gmra.mrb[0].mxu0 %v1298
    %v1372 = vpop.f32.mrb[0].mxu0
    %v1373 = vadd.f32 %v1286, %v1372
    %v1374 = vpop.f32.mrb[0].mxu0
    %v1375 = vadd.f32 %v1290, %v1374
    %1376 = vdwg.mxu0
    %v1377 = vld [vmem:[%s10] sm:$0xff]
    %v1378 = vld [vmem:[%s10 + $0x8] sm:$0xff]
    %v1379 = vld [vmem:[%s10 + $0x10] sm:$0xff]
    %v1380 = vld [vmem:[%s10 + $0x18] sm:$0xff]
    %v1381 = vld [vmem:[%s10 + $0x20] sm:$0xff]
    %v1382 = vld [vmem:[%s10 + $0x28] sm:$0xff]
    %v1383 = vld [vmem:[%s10 + $0x30] sm:$0xff]
    %v1384 = vld [vmem:[%s10 + $0x38] sm:$0xff]
    %v1386 = vrot.slane %v1375, 4
    %v1388 = vsel %vm359, %v1367, %v1386
    %1389 = vmatprep.subr.mxu0 %v1378
    %1390 = vmatpush1.msra.mxu0 %v1377
    %1391 = vmatprep.subr.mxu0 %v1380
    %1392 = vmatpush1.msra.mxu0 %v1379
    %1393 = vmatprep.subr.mxu0 %v1382
    %1394 = vmatpush1.msra.mxu0 %v1381
    %1395 = vmatprep.subr.mxu0 %v1384
    %1396 = vmatpush1.msra.mxu0 %v1383
    %1397 = vmatprep.subr.mxu0 0.0
    %1398 = vmatpush1.msra.mxu0 0.0
    %1399 = vmatprep.subr.mxu0 0.0
    %1400 = vmatpush1.msra.mxu0 0.0
    %1401 = vmatprep.subr.mxu0 0.0
    %1402 = vmatpush1.msra.mxu0 0.0
    %1403 = vmatprep.subr.mxu0 0.0
    %1404 = vmatpush1.msra.mxu0 0.0
    %1405 = vmatprep.subr.mxu0 0.0
    %1406 = vmatpush1.msra.mxu0 0.0
    %1407 = vmatprep.subr.mxu0 0.0
    %1408 = vmatpush1.msra.mxu0 0.0
    %1409 = vmatprep.subr.mxu0 0.0
    %1410 = vmatpush1.msra.mxu0 0.0
    %1411 = vmatprep.subr.mxu0 0.0
    %1412 = vmatpush1.msra.mxu0 0.0
    %1413 = vmatprep.subr.mxu0 0.0
    %1414 = vmatpush1.msra.mxu0 0.0
    %1415 = vmatprep.subr.mxu0 0.0
    %1416 = vmatpush1.msra.mxu0 0.0
    %1417 = vmatprep.subr.mxu0 0.0
    %1418 = vmatpush1.msra.mxu0 0.0
    %1419 = vmatprep.subr.mxu0 0.0
    %1420 = vmatpush1.msra.mxu0 0.0
    %1421 = vmatprep.subr.mxu0 0.0
    %1422 = vmatpush1.msra.mxu0 0.0
    %1423 = vmatprep.subr.mxu0 0.0
    %1424 = vmatpush1.msra.mxu0 0.0
    %1425 = vmatprep.subr.mxu0 0.0
    %1426 = vmatpush1.msra.mxu0 0.0
    %1427 = vmatprep.subr.mxu0 0.0
    %1428 = vmatpush1.msra.mxu0 0.0
    %1429 = vmatprep.subr.mxu0 0.0
    %1430 = vmatpush1.msra.mxu0 0.0
    %1431 = vmatprep.subr.mxu0 0.0
    %1432 = vmatpush1.msra.mxu0 0.0
    %1433 = vmatprep.subr.mxu0 0.0
    %1434 = vmatpush1.msra.mxu0 0.0
    %1435 = vmatprep.subr.mxu0 0.0
    %1436 = vmatpush1.msra.mxu0 0.0
    %1437 = vmatprep.subr.mxu0 0.0
    %1438 = vmatpush1.msra.mxu0 0.0
    %1439 = vmatprep.subr.mxu0 0.0
    %1440 = vmatpush1.msra.mxu0 0.0
    %1441 = vmatprep.subr.mxu0 0.0
    %1442 = vmatpush1.msra.mxu0 0.0
    %1443 = vmatprep.subr.mxu0 0.0
    %1444 = vmatpush1.msra.mxu0 0.0
    %1445 = vmatprep.subr.mxu0 0.0
    %1446 = vmatpush1.msra.mxu0 0.0
    %1447 = vmatprep.subr.mxu0 0.0
    %1448 = vmatpush1.msra.mxu0 0.0
    %1449 = vmatprep.subr.mxu0 0.0
    %1450 = vmatpush1.msra.mxu0 0.0
    %1451 = vmatprep.subr.mxu0 0.0
    %1452 = vmatpush1.msra.mxu0 0.0
    %1453 = vmatprep.mubr.f32.mxu0 0.0
    %1454 = vmatmul.mubr.f32.gmra.mrb[0].mxu0 %v363
    %v1455 = vpop.f32.mrb[0].mxu0
    %v1456 = vadd.f32 0.0, %v1455
    %v1457 = vpop.f32.mrb[0].mxu0
    %v1458 = vadd.f32 0.0, %v1457
    %1459 = vdwg.mxu0
    %v1460 = vsel %vm437, %v1456, %v1458
    %v1461 = vadd.f32 %v1388, %v1460
    %v1462 = vxor.u32 %v1461, 2147483648
    %v1463 = vmul.f32 %v1462, 1.442695
    %v1464 = vpow.pop %v1463
    %v1465 = vadd.f32 %v1464, 1.0
    %v1466 = vrcp.pop %v1465
    %v1467 = vmul.f32 1.0, %v1466
    %v1468 = vtanh.pop %v1461
    %v1469 = vmul.f32 %v1467, 0.0
    %1471 = vrot.lane.b32.xlu0 %v1468, 64
    %v1472 = vpop.permute.xlu0 %1471
    %v1474 = vmul.f32 %v1467, %v1472
    %1476 = vrot.lane.b32.xlu0 %v1474, 32
    %v1477 = vpop.permute.xlu0 %1476
    %v1479 = vadd.f32 %v1469, %v1477
    %v1480 = vtanh.pop %v1479
    %1482 = vrot.lane.b32.xlu0 %v1480, 64
    %v1483 = vpop.permute.xlu0 %1482
    %v1485 = vmul.f32 %v1467, %v1483
    %1487 = vrot.lane.b32.xlu0 %v1485, 96
    %v1488 = vpop.permute.xlu0 %1487
    %vm1490 = vcmask 779776
    %1491 = vst.msk [vmem:[#allocation2] sm:$0x3] %vm1490, %v1488
    %vm1492 = vcmask 1044226
    %1493 = vst.msk [vmem:[#allocation2 + $0xc] sm:$0xc] %vm1492, %v1485
    %v1495 = vrot.slane %v1367, 2
    %v1497 = vrot.slane %v1375, 2
    %v1499 = vsel %vm359, %v1495, %v1497
    %1500 = vrot.lane.b32.xlu0 %v1485, 32
    %v1501 = vpop.permute.xlu0 %1500
    %v1502 = vsel %vm361, %v1501, 0
    %1504 = vmatprep.subr.mxu0 %v1378
    %1505 = vmatpush1.msra.mxu0 %v1377
    %1506 = vmatprep.subr.mxu0 %v1380
    %1507 = vmatpush1.msra.mxu0 %v1379
    %1508 = vmatprep.subr.mxu0 %v1382
    %1509 = vmatpush1.msra.mxu0 %v1381
    %1510 = vmatprep.subr.mxu0 %v1384
    %1511 = vmatpush1.msra.mxu0 %v1383
    %1512 = vmatprep.subr.mxu0 0.0
    %1513 = vmatpush1.msra.mxu0 0.0
    %1514 = vmatprep.subr.mxu0 0.0
    %1515 = vmatpush1.msra.mxu0 0.0
    %1516 = vmatprep.subr.mxu0 0.0
    %1517 = vmatpush1.msra.mxu0 0.0
    %1518 = vmatprep.subr.mxu0 0.0
    %1519 = vmatpush1.msra.mxu0 0.0
    %1520 = vmatprep.subr.mxu0 0.0
    %1521 = vmatpush1.msra.mxu0 0.0
    %1522 = vmatprep.subr.mxu0 0.0
    %1523 = vmatpush1.msra.mxu0 0.0
    %1524 = vmatprep.subr.mxu0 0.0
    %1525 = vmatpush1.msra.mxu0 0.0
    %1526 = vmatprep.subr.mxu0 0.0
    %1527 = vmatpush1.msra.mxu0 0.0
    %1528 = vmatprep.subr.mxu0 0.0
    %1529 = vmatpush1.msra.mxu0 0.0
    %1530 = vmatprep.subr.mxu0 0.0
    %1531 = vmatpush1.msra.mxu0 0.0
    %1532 = vmatprep.subr.mxu0 0.0
    %1533 = vmatpush1.msra.mxu0 0.0
    %1534 = vmatprep.subr.mxu0 0.0
    %1535 = vmatpush1.msra.mxu0 0.0
    %1536 = vmatprep.subr.mxu0 0.0
    %1537 = vmatpush1.msra.mxu0 0.0
    %1538 = vmatprep.subr.mxu0 0.0
    %1539 = vmatpush1.msra.mxu0 0.0
    %1540 = vmatprep.subr.mxu0 0.0
    %1541 = vmatpush1.msra.mxu0 0.0
    %1542 = vmatprep.subr.mxu0 0.0
    %1543 = vmatpush1.msra.mxu0 0.0
    %1544 = vmatprep.subr.mxu0 0.0
    %1545 = vmatpush1.msra.mxu0 0.0
    %1546 = vmatprep.subr.mxu0 0.0
    %1547 = vmatpush1.msra.mxu0 0.0
    %1548 = vmatprep.subr.mxu0 0.0
    %1549 = vmatpush1.msra.mxu0 0.0
    %1550 = vmatprep.subr.mxu0 0.0
    %1551 = vmatpush1.msra.mxu0 0.0
    %1552 = vmatprep.subr.mxu0 0.0
    %1553 = vmatpush1.msra.mxu0 0.0
    %1554 = vmatprep.subr.mxu0 0.0
    %1555 = vmatpush1.msra.mxu0 0.0
    %1556 = vmatprep.subr.mxu0 0.0
    %1557 = vmatpush1.msra.mxu0 0.0
    %1558 = vmatprep.subr.mxu0 0.0
    %1559 = vmatpush1.msra.mxu0 0.0
    %1560 = vmatprep.subr.mxu0 0.0
    %1561 = vmatpush1.msra.mxu0 0.0
    %1562 = vmatprep.subr.mxu0 0.0
    %1563 = vmatpush1.msra.mxu0 0.0
    %1564 = vmatprep.subr.mxu0 0.0
    %1565 = vmatpush1.msra.mxu0 0.0
    %1566 = vmatprep.subr.mxu0 0.0
    %1567 = vmatpush1.msra.mxu0 0.0
    %1568 = vmatprep.mubr.f32.mxu0 0.0
    %1569 = vmatmul.mubr.f32.gmra.mrb[0].mxu0 %v1502
    %v1570 = vpop.f32.mrb[0].mxu0
    %v1571 = vadd.f32 0.0, %v1570
    %v1572 = vpop.f32.mrb[0].mxu0
    %v1573 = vadd.f32 0.0, %v1572
    %1574 = vdwg.mxu0
    %v1575 = vsel %vm437, %v1571, %v1573
    %v1576 = vadd.f32 %v1499, %v1575
    %v1577 = vxor.u32 %v1576, 2147483648
    %v1578 = vmul.f32 %v1577, 1.442695
    %v1579 = vpow.pop %v1578
    %v1580 = vadd.f32 %v1579, 1.0
    %v1581 = vrcp.pop %v1580
    %v1582 = vmul.f32 1.0, %v1581
    %v1583 = vtanh.pop %v1576
    %v1584 = vmul.f32 %v1582, %v1479
    %1586 = vrot.lane.b32.xlu0 %v1583, 64
    %v1587 = vpop.permute.xlu0 %1586
    %v1589 = vmul.f32 %v1582, %v1587
    %1591 = vrot.lane.b32.xlu0 %v1589, 32
    %v1592 = vpop.permute.xlu0 %1591
    %v1594 = vadd.f32 %v1584, %v1592
    %v1595 = vtanh.pop %v1594
    %1597 = vrot.lane.b32.xlu0 %v1595, 64
    %v1598 = vpop.permute.xlu0 %1597
    %v1600 = vmul.f32 %v1582, %v1598
    %1602 = vrot.lane.b32.xlu0 %v1600, 96
    %v1603 = vpop.permute.xlu0 %1602
    %1605 = vst.msk [vmem:[#allocation2 + $0x2] sm:$0x3] %vm1490, %v1603
    %1606 = vst.msk [vmem:[#allocation2 + $0xa] sm:$0xc] %vm1492, %v1600
    %v1607 = vrot.slane %v1367, 4
    %v1609 = vsel %vm359, %v1607, %v1375
    %1610 = vrot.lane.b32.xlu0 %v1600, 32
    %v1611 = vpop.permute.xlu0 %1610
    %v1612 = vsel %vm361, %v1611, 0
    %1614 = vmatprep.subr.mxu0 %v1378
    %1615 = vmatpush1.msra.mxu0 %v1377
    %1616 = vmatprep.subr.mxu0 %v1380
    %1617 = vmatpush1.msra.mxu0 %v1379
    %1618 = vmatprep.subr.mxu0 %v1382
    %1619 = vmatpush1.msra.mxu0 %v1381
    %1620 = vmatprep.subr.mxu0 %v1384
    %1621 = vmatpush1.msra.mxu0 %v1383
    %1622 = vmatprep.subr.mxu0 0.0
    %1623 = vmatpush1.msra.mxu0 0.0
    %1624 = vmatprep.subr.mxu0 0.0
    %1625 = vmatpush1.msra.mxu0 0.0
    %1626 = vmatprep.subr.mxu0 0.0
    %1627 = vmatpush1.msra.mxu0 0.0
    %1628 = vmatprep.subr.mxu0 0.0
    %1629 = vmatpush1.msra.mxu0 0.0
    %1630 = vmatprep.subr.mxu0 0.0
    %1631 = vmatpush1.msra.mxu0 0.0
    %1632 = vmatprep.subr.mxu0 0.0
    %1633 = vmatpush1.msra.mxu0 0.0
    %1634 = vmatprep.subr.mxu0 0.0
    %1635 = vmatpush1.msra.mxu0 0.0
    %1636 = vmatprep.subr.mxu0 0.0
    %1637 = vmatpush1.msra.mxu0 0.0
    %1638 = vmatprep.subr.mxu0 0.0
    %1639 = vmatpush1.msra.mxu0 0.0
    %1640 = vmatprep.subr.mxu0 0.0
    %1641 = vmatpush1.msra.mxu0 0.0
    %1642 = vmatprep.subr.mxu0 0.0
    %1643 = vmatpush1.msra.mxu0 0.0
    %1644 = vmatprep.subr.mxu0 0.0
    %1645 = vmatpush1.msra.mxu0 0.0
    %1646 = vmatprep.subr.mxu0 0.0
    %1647 = vmatpush1.msra.mxu0 0.0
    %1648 = vmatprep.subr.mxu0 0.0
    %1649 = vmatpush1.msra.mxu0 0.0
    %1650 = vmatprep.subr.mxu0 0.0
    %1651 = vmatpush1.msra.mxu0 0.0
    %1652 = vmatprep.subr.mxu0 0.0
    %1653 = vmatpush1.msra.mxu0 0.0
    %1654 = vmatprep.subr.mxu0 0.0
    %1655 = vmatpush1.msra.mxu0 0.0
    %1656 = vmatprep.subr.mxu0 0.0
    %1657 = vmatpush1.msra.mxu0 0.0
    %1658 = vmatprep.subr.mxu0 0.0
    %1659 = vmatpush1.msra.mxu0 0.0
    %1660 = vmatprep.subr.mxu0 0.0
    %1661 = vmatpush1.msra.mxu0 0.0
    %1662 = vmatprep.subr.mxu0 0.0
    %1663 = vmatpush1.msra.mxu0 0.0
    %1664 = vmatprep.subr.mxu0 0.0
    %1665 = vmatpush1.msra.mxu0 0.0
    %1666 = vmatprep.subr.mxu0 0.0
    %1667 = vmatpush1.msra.mxu0 0.0
    %1668 = vmatprep.subr.mxu0 0.0
    %1669 = vmatpush1.msra.mxu0 0.0
    %1670 = vmatprep.subr.mxu0 0.0
    %1671 = vmatpush1.msra.mxu0 0.0
    %1672 = vmatprep.subr.mxu0 0.0
    %1673 = vmatpush1.msra.mxu0 0.0
    %1674 = vmatprep.subr.mxu0 0.0
    %1675 = vmatpush1.msra.mxu0 0.0
    %1676 = vmatprep.subr.mxu0 0.0
    %1677 = vmatpush1.msra.mxu0 0.0
    %1678 = vmatprep.mubr.f32.mxu0 0.0
    %1679 = vmatmul.mubr.f32.gmra.mrb[0].mxu0 %v1612
    %v1680 = vpop.f32.mrb[0].mxu0
    %v1681 = vadd.f32 0.0, %v1680
    %v1682 = vpop.f32.mrb[0].mxu0
    %v1683 = vadd.f32 0.0, %v1682
    %1684 = vdwg.mxu0
    %v1685 = vsel %vm437, %v1681, %v1683
    %v1686 = vadd.f32 %v1609, %v1685
    %v1687 = vxor.u32 %v1686, 2147483648
    %v1688 = vmul.f32 %v1687, 1.442695
    %v1689 = vpow.pop %v1688
    %v1690 = vadd.f32 %v1689, 1.0
    %v1691 = vrcp.pop %v1690
    %v1692 = vmul.f32 1.0, %v1691
    %v1693 = vtanh.pop %v1686
    %v1694 = vmul.f32 %v1692, %v1594
    %1696 = vrot.lane.b32.xlu0 %v1693, 64
    %v1697 = vpop.permute.xlu0 %1696
    %v1699 = vmul.f32 %v1692, %v1697
    %1701 = vrot.lane.b32.xlu0 %v1699, 32
    %v1702 = vpop.permute.xlu0 %1701
    %v1704 = vadd.f32 %v1694, %v1702
    %v1705 = vtanh.pop %v1704
    %1707 = vrot.lane.b32.xlu0 %v1705, 64
    %v1708 = vpop.permute.xlu0 %1707
    %v1710 = vmul.f32 %v1692, %v1708
    %1712 = vrot.lane.b32.xlu0 %v1710, 96
    %v1713 = vpop.permute.xlu0 %1712
    %1715 = vst.msk [vmem:[#allocation2 + $0x4] sm:$0x3] %vm1490, %v1713
    %1716 = vst.msk [vmem:[#allocation2 + $0x8] sm:$0xc] %vm1492, %v1710
    %v1717 = vrot.slane %v1367, 6
    %v1719 = vrot.slane %v1375, 6
    %v1721 = vsel %vm359, %v1717, %v1719
    %1722 = vrot.lane.b32.xlu0 %v1710, 32
    %v1723 = vpop.permute.xlu0 %1722
    %v1724 = vsel %vm361, %v1723, 0
    %1726 = vmatprep.subr.mxu0 %v1378
    %1727 = vmatpush1.msra.mxu0 %v1377
    %1728 = vmatprep.subr.mxu0 %v1380
    %1729 = vmatpush1.msra.mxu0 %v1379
    %1730 = vmatprep.subr.mxu0 %v1382
    %1731 = vmatpush1.msra.mxu0 %v1381
    %1732 = vmatprep.subr.mxu0 %v1384
    %1733 = vmatpush1.msra.mxu0 %v1383
    %1734 = vmatprep.subr.mxu0 0.0
    %1735 = vmatpush1.msra.mxu0 0.0
    %1736 = vmatprep.subr.mxu0 0.0
    %1737 = vmatpush1.msra.mxu0 0.0
    %1738 = vmatprep.subr.mxu0 0.0
    %1739 = vmatpush1.msra.mxu0 0.0
    %1740 = vmatprep.subr.mxu0 0.0
    %1741 = vmatpush1.msra.mxu0 0.0
    %1742 = vmatprep.subr.mxu0 0.0
    %1743 = vmatpush1.msra.mxu0 0.0
    %1744 = vmatprep.subr.mxu0 0.0
    %1745 = vmatpush1.msra.mxu0 0.0
    %1746 = vmatprep.subr.mxu0 0.0
    %1747 = vmatpush1.msra.mxu0 0.0
    %1748 = vmatprep.subr.mxu0 0.0
    %1749 = vmatpush1.msra.mxu0 0.0
    %1750 = vmatprep.subr.mxu0 0.0
    %1751 = vmatpush1.msra.mxu0 0.0
    %1752 = vmatprep.subr.mxu0 0.0
    %1753 = vmatpush1.msra.mxu0 0.0
    %1754 = vmatprep.subr.mxu0 0.0
    %1755 = vmatpush1.msra.mxu0 0.0
    %1756 = vmatprep.subr.mxu0 0.0
    %1757 = vmatpush1.msra.mxu0 0.0
    %1758 = vmatprep.subr.mxu0 0.0
    %1759 = vmatpush1.msra.mxu0 0.0
    %1760 = vmatprep.subr.mxu0 0.0
    %1761 = vmatpush1.msra.mxu0 0.0
    %1762 = vmatprep.subr.mxu0 0.0
    %1763 = vmatpush1.msra.mxu0 0.0
    %1764 = vmatprep.subr.mxu0 0.0
    %1765 = vmatpush1.msra.mxu0 0.0
    %1766 = vmatprep.subr.mxu0 0.0
    %1767 = vmatpush1.msra.mxu0 0.0
    %1768 = vmatprep.subr.mxu0 0.0
    %1769 = vmatpush1.msra.mxu0 0.0
    %1770 = vmatprep.subr.mxu0 0.0
    %1771 = vmatpush1.msra.mxu0 0.0
    %1772 = vmatprep.subr.mxu0 0.0
    %1773 = vmatpush1.msra.mxu0 0.0
    %1774 = vmatprep.subr.mxu0 0.0
    %1775 = vmatpush1.msra.mxu0 0.0
    %1776 = vmatprep.subr.mxu0 0.0
    %1777 = vmatpush1.msra.mxu0 0.0
    %1778 = vmatprep.subr.mxu0 0.0
    %1779 = vmatpush1.msra.mxu0 0.0
    %1780 = vmatprep.subr.mxu0 0.0
    %1781 = vmatpush1.msra.mxu0 0.0
    %1782 = vmatprep.subr.mxu0 0.0
    %1783 = vmatpush1.msra.mxu0 0.0
    %1784 = vmatprep.subr.mxu0 0.0
    %1785 = vmatpush1.msra.mxu0 0.0
    %1786 = vmatprep.subr.mxu0 0.0
    %1787 = vmatpush1.msra.mxu0 0.0
    %1788 = vmatprep.subr.mxu0 0.0
    %1789 = vmatpush1.msra.mxu0 0.0
    %1790 = vmatprep.mubr.f32.mxu0 0.0
    %1791 = vmatmul.mubr.f32.gmra.mrb[0].mxu0 %v1724
    %v1792 = vpop.f32.mrb[0].mxu0
    %v1793 = vadd.f32 0.0, %v1792
    %v1794 = vpop.f32.mrb[0].mxu0
    %v1795 = vadd.f32 0.0, %v1794
    %1796 = vdwg.mxu0
    %v1797 = vsel %vm437, %v1793, %v1795
    %v1798 = vadd.f32 %v1721, %v1797
    %v1799 = vxor.u32 %v1798, 2147483648
    %v1800 = vmul.f32 %v1799, 1.442695
    %v1801 = vpow.pop %v1800
    %v1802 = vadd.f32 %v1801, 1.0
    %v1803 = vrcp.pop %v1802
    %v1804 = vmul.f32 1.0, %v1803
    %v1805 = vtanh.pop %v1798
    %v1806 = vmul.f32 %v1804, %v1704
    %1808 = vrot.lane.b32.xlu0 %v1805, 64
    %v1809 = vpop.permute.xlu0 %1808
    %v1811 = vmul.f32 %v1804, %v1809
    %1813 = vrot.lane.b32.xlu0 %v1811, 32
    %v1814 = vpop.permute.xlu0 %1813
    %v1816 = vadd.f32 %v1806, %v1814
    %v1817 = vtanh.pop %v1816
    %1819 = vrot.lane.b32.xlu0 %v1817, 64
    %v1820 = vpop.permute.xlu0 %1819
    %v1822 = vmul.f32 %v1804, %v1820
    %1824 = vrot.lane.b32.xlu0 %v1822, 96
    %v1825 = vpop.permute.xlu0 %1824
    %1827 = vst.msk [vmem:[#allocation2 + $0x6] sm:$0x3] %vm1490, %v1825
    %1828 = vst.msk [vmem:[#allocation2 + $0x6] sm:$0xc] %vm1492, %v1822
    %v1830 = vrot.slane %v1369, 4
    %v1832 = vsel %vm359, %v1373, %v1830
    %1833 = vrot.lane.b32.xlu0 %v1822, 32
    %v1834 = vpop.permute.xlu0 %1833
    %v1835 = vsel %vm361, %v1834, 0
    %1837 = vmatprep.subr.mxu0 %v1378
    %1838 = vmatpush1.msra.mxu0 %v1377
    %1839 = vmatprep.subr.mxu0 %v1380
    %1840 = vmatpush1.msra.mxu0 %v1379
    %1841 = vmatprep.subr.mxu0 %v1382
    %1842 = vmatpush1.msra.mxu0 %v1381
    %1843 = vmatprep.subr.mxu0 %v1384
    %1844 = vmatpush1.msra.mxu0 %v1383
    %1845 = vmatprep.subr.mxu0 0.0
    %1846 = vmatpush1.msra.mxu0 0.0
    %1847 = vmatprep.subr.mxu0 0.0
    %1848 = vmatpush1.msra.mxu0 0.0
    %1849 = vmatprep.subr.mxu0 0.0
    %1850 = vmatpush1.msra.mxu0 0.0
    %1851 = vmatprep.subr.mxu0 0.0
    %1852 = vmatpush1.msra.mxu0 0.0
    %1853 = vmatprep.subr.mxu0 0.0
    %1854 = vmatpush1.msra.mxu0 0.0
    %1855 = vmatprep.subr.mxu0 0.0
    %1856 = vmatpush1.msra.mxu0 0.0
    %1857 = vmatprep.subr.mxu0 0.0
    %1858 = vmatpush1.msra.mxu0 0.0
    %1859 = vmatprep.subr.mxu0 0.0
    %1860 = vmatpush1.msra.mxu0 0.0
    %1861 = vmatprep.subr.mxu0 0.0
    %1862 = vmatpush1.msra.mxu0 0.0
    %1863 = vmatprep.subr.mxu0 0.0
    %1864 = vmatpush1.msra.mxu0 0.0
    %1865 = vmatprep.subr.mxu0 0.0
    %1866 = vmatpush1.msra.mxu0 0.0
    %1867 = vmatprep.subr.mxu0 0.0
    %1868 = vmatpush1.msra.mxu0 0.0
    %1869 = vmatprep.subr.mxu0 0.0
    %1870 = vmatpush1.msra.mxu0 0.0
    %1871 = vmatprep.subr.mxu0 0.0
    %1872 = vmatpush1.msra.mxu0 0.0
    %1873 = vmatprep.subr.mxu0 0.0
    %1874 = vmatpush1.msra.mxu0 0.0
    %1875 = vmatprep.subr.mxu0 0.0
    %1876 = vmatpush1.msra.mxu0 0.0
    %1877 = vmatprep.subr.mxu0 0.0
    %1878 = vmatpush1.msra.mxu0 0.0
    %1879 = vmatprep.subr.mxu0 0.0
    %1880 = vmatpush1.msra.mxu0 0.0
    %1881 = vmatprep.subr.mxu0 0.0
    %1882 = vmatpush1.msra.mxu0 0.0
    %1883 = vmatprep.subr.mxu0 0.0
    %1884 = vmatpush1.msra.mxu0 0.0
    %1885 = vmatprep.subr.mxu0 0.0
    %1886 = vmatpush1.msra.mxu0 0.0
    %1887 = vmatprep.subr.mxu0 0.0
    %1888 = vmatpush1.msra.mxu0 0.0
    %1889 = vmatprep.subr.mxu0 0.0
    %1890 = vmatpush1.msra.mxu0 0.0
    %1891 = vmatprep.subr.mxu0 0.0
    %1892 = vmatpush1.msra.mxu0 0.0
    %1893 = vmatprep.subr.mxu0 0.0
    %1894 = vmatpush1.msra.mxu0 0.0
    %1895 = vmatprep.subr.mxu0 0.0
    %1896 = vmatpush1.msra.mxu0 0.0
    %1897 = vmatprep.subr.mxu0 0.0
    %1898 = vmatpush1.msra.mxu0 0.0
    %1899 = vmatprep.subr.mxu0 0.0
    %1900 = vmatpush1.msra.mxu0 0.0
    %1901 = vmatprep.mubr.f32.mxu0 0.0
    %1902 = vmatmul.mubr.f32.gmra.mrb[0].mxu0 %v1835
    %v1903 = vpop.f32.mrb[0].mxu0
    %v1904 = vadd.f32 0.0, %v1903
    %v1905 = vpop.f32.mrb[0].mxu0
    %v1906 = vadd.f32 0.0, %v1905
    %1907 = vdwg.mxu0
    %v1908 = vsel %vm437, %v1904, %v1906
    %v1909 = vadd.f32 %v1832, %v1908
    %v1910 = vxor.u32 %v1909, 2147483648
    %v1911 = vmul.f32 %v1910, 1.442695
    %v1912 = vpow.pop %v1911
    %v1913 = vadd.f32 %v1912, 1.0
    %v1914 = vrcp.pop %v1913
    %v1915 = vmul.f32 1.0, %v1914
    %v1916 = vtanh.pop %v1909
    %v1917 = vmul.f32 %v1915, %v1816
    %1919 = vrot.lane.b32.xlu0 %v1916, 64
    %v1920 = vpop.permute.xlu0 %1919
    %v1922 = vmul.f32 %v1915, %v1920
    %1924 = vrot.lane.b32.xlu0 %v1922, 32
    %v1925 = vpop.permute.xlu0 %1924
    %v1927 = vadd.f32 %v1917, %v1925
    %v1928 = vtanh.pop %v1927
    %1930 = vrot.lane.b32.xlu0 %v1928, 64
    %v1931 = vpop.permute.xlu0 %1930
    %v1933 = vmul.f32 %v1915, %v1931
    %1935 = vrot.lane.b32.xlu0 %v1933, 96
    %v1936 = vpop.permute.xlu0 %1935
    %1938 = vst.msk [vmem:[#allocation2 + $0x8] sm:$0x3] %vm1490, %v1936
    %1939 = vst.msk [vmem:[#allocation2 + $0x4] sm:$0xc] %vm1492, %v1933
    %v1941 = vrot.slane %v1373, 2
    %v1943 = vrot.slane %v1369, 2
    %v1945 = vsel %vm359, %v1941, %v1943
    %1946 = vrot.lane.b32.xlu0 %v1933, 32
    %v1947 = vpop.permute.xlu0 %1946
    %v1948 = vsel %vm361, %v1947, 0
    %1950 = vmatprep.subr.mxu0 %v1378
    %1951 = vmatpush1.msra.mxu0 %v1377
    %1952 = vmatprep.subr.mxu0 %v1380
    %1953 = vmatpush1.msra.mxu0 %v1379
    %1954 = vmatprep.subr.mxu0 %v1382
    %1955 = vmatpush1.msra.mxu0 %v1381
    %1956 = vmatprep.subr.mxu0 %v1384
    %1957 = vmatpush1.msra.mxu0 %v1383
    %1958 = vmatprep.subr.mxu0 0.0
    %1959 = vmatpush1.msra.mxu0 0.0
    %1960 = vmatprep.subr.mxu0 0.0
    %1961 = vmatpush1.msra.mxu0 0.0
    %1962 = vmatprep.subr.mxu0 0.0
    %1963 = vmatpush1.msra.mxu0 0.0
    %1964 = vmatprep.subr.mxu0 0.0
    %1965 = vmatpush1.msra.mxu0 0.0
    %1966 = vmatprep.subr.mxu0 0.0
    %1967 = vmatpush1.msra.mxu0 0.0
    %1968 = vmatprep.subr.mxu0 0.0
    %1969 = vmatpush1.msra.mxu0 0.0
    %1970 = vmatprep.subr.mxu0 0.0
    %1971 = vmatpush1.msra.mxu0 0.0
    %1972 = vmatprep.subr.mxu0 0.0
    %1973 = vmatpush1.msra.mxu0 0.0
    %1974 = vmatprep.subr.mxu0 0.0
    %1975 = vmatpush1.msra.mxu0 0.0
    %1976 = vmatprep.subr.mxu0 0.0
    %1977 = vmatpush1.msra.mxu0 0.0
    %1978 = vmatprep.subr.mxu0 0.0
    %1979 = vmatpush1.msra.mxu0 0.0
    %1980 = vmatprep.subr.mxu0 0.0
    %1981 = vmatpush1.msra.mxu0 0.0
    %1982 = vmatprep.subr.mxu0 0.0
    %1983 = vmatpush1.msra.mxu0 0.0
    %1984 = vmatprep.subr.mxu0 0.0
    %1985 = vmatpush1.msra.mxu0 0.0
    %1986 = vmatprep.subr.mxu0 0.0
    %1987 = vmatpush1.msra.mxu0 0.0
    %1988 = vmatprep.subr.mxu0 0.0
    %1989 = vmatpush1.msra.mxu0 0.0
    %1990 = vmatprep.subr.mxu0 0.0
    %1991 = vmatpush1.msra.mxu0 0.0
    %1992 = vmatprep.subr.mxu0 0.0
    %1993 = vmatpush1.msra.mxu0 0.0
    %1994 = vmatprep.subr.mxu0 0.0
    %1995 = vmatpush1.msra.mxu0 0.0
    %1996 = vmatprep.subr.mxu0 0.0
    %1997 = vmatpush1.msra.mxu0 0.0
    %1998 = vmatprep.subr.mxu0 0.0
    %1999 = vmatpush1.msra.mxu0 0.0
    %2000 = vmatprep.subr.mxu0 0.0
    %2001 = vmatpush1.msra.mxu0 0.0
    %2002 = vmatprep.subr.mxu0 0.0
    %2003 = vmatpush1.msra.mxu0 0.0
    %2004 = vmatprep.subr.mxu0 0.0
    %2005 = vmatpush1.msra.mxu0 0.0
    %2006 = vmatprep.subr.mxu0 0.0
    %2007 = vmatpush1.msra.mxu0 0.0
    %2008 = vmatprep.subr.mxu0 0.0
    %2009 = vmatpush1.msra.mxu0 0.0
    %2010 = vmatprep.subr.mxu0 0.0
    %2011 = vmatpush1.msra.mxu0 0.0
    %2012 = vmatprep.subr.mxu0 0.0
    %2013 = vmatpush1.msra.mxu0 0.0
    %2014 = vmatprep.mubr.f32.mxu0 0.0
    %2015 = vmatmul.mubr.f32.gmra.mrb[0].mxu0 %v1948
    %v2016 = vpop.f32.mrb[0].mxu0
    %v2017 = vadd.f32 0.0, %v2016
    %v2018 = vpop.f32.mrb[0].mxu0
    %v2019 = vadd.f32 0.0, %v2018
    %2020 = vdwg.mxu0
    %v2021 = vsel %vm437, %v2017, %v2019
    %v2022 = vadd.f32 %v1945, %v2021
    %v2023 = vxor.u32 %v2022, 2147483648
    %v2024 = vmul.f32 %v2023, 1.442695
    %v2025 = vpow.pop %v2024
    %v2026 = vadd.f32 %v2025, 1.0
    %v2027 = vrcp.pop %v2026
    %v2028 = vmul.f32 1.0, %v2027
    %v2029 = vtanh.pop %v2022
    %v2030 = vmul.f32 %v2028, %v1927
    %2032 = vrot.lane.b32.xlu0 %v2029, 64
    %v2033 = vpop.permute.xlu0 %2032
    %v2035 = vmul.f32 %v2028, %v2033
    %2037 = vrot.lane.b32.xlu0 %v2035, 32
    %v2038 = vpop.permute.xlu0 %2037
    %v2040 = vadd.f32 %v2030, %v2038
    %v2041 = vtanh.pop %v2040
    %2043 = vrot.lane.b32.xlu0 %v2041, 64
    %v2044 = vpop.permute.xlu0 %2043
    %v2046 = vmul.f32 %v2028, %v2044
    %2048 = vrot.lane.b32.xlu0 %v2046, 96
    %v2049 = vpop.permute.xlu0 %2048
    %2051 = vst.msk [vmem:[#allocation2 + $0xa] sm:$0x3] %vm1490, %v2049
    %2052 = vst.msk [vmem:[#allocation2 + $0x2] sm:$0xc] %vm1492, %v2046
    %v2053 = vrot.slane %v1373, 4
    %v2055 = vsel %vm359, %v2053, %v1369
    %2056 = vrot.lane.b32.xlu0 %v2046, 32
    %v2057 = vpop.permute.xlu0 %2056
    %v2058 = vsel %vm361, %v2057, 0
    %2060 = vmatprep.subr.mxu0 %v1378
    %2061 = vmatpush1.msra.mxu0 %v1377
    %2062 = vmatprep.subr.mxu0 %v1380
    %2063 = vmatpush1.msra.mxu0 %v1379
    %2064 = vmatprep.subr.mxu0 %v1382
    %2065 = vmatpush1.msra.mxu0 %v1381
    %2066 = vmatprep.subr.mxu0 %v1384
    %2067 = vmatpush1.msra.mxu0 %v1383
    %2068 = vmatprep.subr.mxu0 0.0
    %2069 = vmatpush1.msra.mxu0 0.0
    %2070 = vmatprep.subr.mxu0 0.0
    %2071 = vmatpush1.msra.mxu0 0.0
    %2072 = vmatprep.subr.mxu0 0.0
    %2073 = vmatpush1.msra.mxu0 0.0
    %2074 = vmatprep.subr.mxu0 0.0
    %2075 = vmatpush1.msra.mxu0 0.0
    %2076 = vmatprep.subr.mxu0 0.0
    %2077 = vmatpush1.msra.mxu0 0.0
    %2078 = vmatprep.subr.mxu0 0.0
    %2079 = vmatpush1.msra.mxu0 0.0
    %2080 = vmatprep.subr.mxu0 0.0
    %2081 = vmatpush1.msra.mxu0 0.0
    %2082 = vmatprep.subr.mxu0 0.0
    %2083 = vmatpush1.msra.mxu0 0.0
    %2084 = vmatprep.subr.mxu0 0.0
    %2085 = vmatpush1.msra.mxu0 0.0
    %2086 = vmatprep.subr.mxu0 0.0
    %2087 = vmatpush1.msra.mxu0 0.0
    %2088 = vmatprep.subr.mxu0 0.0
    %2089 = vmatpush1.msra.mxu0 0.0
    %2090 = vmatprep.subr.mxu0 0.0
    %2091 = vmatpush1.msra.mxu0 0.0
    %2092 = vmatprep.subr.mxu0 0.0
    %2093 = vmatpush1.msra.mxu0 0.0
    %2094 = vmatprep.subr.mxu0 0.0
    %2095 = vmatpush1.msra.mxu0 0.0
    %2096 = vmatprep.subr.mxu0 0.0
    %2097 = vmatpush1.msra.mxu0 0.0
    %2098 = vmatprep.subr.mxu0 0.0
    %2099 = vmatpush1.msra.mxu0 0.0
    %2100 = vmatprep.subr.mxu0 0.0
    %2101 = vmatpush1.msra.mxu0 0.0
    %2102 = vmatprep.subr.mxu0 0.0
    %2103 = vmatpush1.msra.mxu0 0.0
    %2104 = vmatprep.subr.mxu0 0.0
    %2105 = vmatpush1.msra.mxu0 0.0
    %2106 = vmatprep.subr.mxu0 0.0
    %2107 = vmatpush1.msra.mxu0 0.0
    %2108 = vmatprep.subr.mxu0 0.0
    %2109 = vmatpush1.msra.mxu0 0.0
    %2110 = vmatprep.subr.mxu0 0.0
    %2111 = vmatpush1.msra.mxu0 0.0
    %2112 = vmatprep.subr.mxu0 0.0
    %2113 = vmatpush1.msra.mxu0 0.0
    %2114 = vmatprep.subr.mxu0 0.0
    %2115 = vmatpush1.msra.mxu0 0.0
    %2116 = vmatprep.subr.mxu0 0.0
    %2117 = vmatpush1.msra.mxu0 0.0
    %2118 = vmatprep.subr.mxu0 0.0
    %2119 = vmatpush1.msra.mxu0 0.0
    %2120 = vmatprep.subr.mxu0 0.0
    %2121 = vmatpush1.msra.mxu0 0.0
    %2122 = vmatprep.subr.mxu0 0.0
    %2123 = vmatpush1.msra.mxu0 0.0
    %2124 = vmatprep.mubr.f32.mxu0 0.0
    %2125 = vmatmul.mubr.f32.gmra.mrb[0].mxu0 %v2058
    %v2126 = vpop.f32.mrb[0].mxu0
    %v2127 = vadd.f32 0.0, %v2126
    %v2128 = vpop.f32.mrb[0].mxu0
    %v2129 = vadd.f32 0.0, %v2128
    %2130 = vdwg.mxu0
    %v2131 = vsel %vm437, %v2127, %v2129
    %v2132 = vadd.f32 %v2055, %v2131
    %v2133 = vxor.u32 %v2132, 2147483648
    %v2134 = vmul.f32 %v2133, 1.442695
    %v2135 = vpow.pop %v2134
    %v2136 = vadd.f32 %v2135, 1.0
    %v2137 = vrcp.pop %v2136
    %v2138 = vmul.f32 1.0, %v2137
    %v2139 = vtanh.pop %v2132
    %v2140 = vmul.f32 %v2138, %v2040
    %2142 = vrot.lane.b32.xlu0 %v2139, 64
    %v2143 = vpop.permute.xlu0 %2142
    %v2145 = vmul.f32 %v2138, %v2143
    %2147 = vrot.lane.b32.xlu0 %v2145, 32
    %v2148 = vpop.permute.xlu0 %2147
    %v2150 = vadd.f32 %v2140, %v2148
    %v2151 = vtanh.pop %v2150
    %2153 = vrot.lane.b32.xlu0 %v2151, 64
    %v2154 = vpop.permute.xlu0 %2153
    %v2156 = vmul.f32 %v2138, %v2154
    %2158 = vrot.lane.b32.xlu0 %v2156, 96
    %v2159 = vpop.permute.xlu0 %2158
    %2161 = vst.msk [vmem:[#allocation2 + $0xc] sm:$0x3] %vm1490, %v2159
    %2162 = vst.msk [vmem:[#allocation2] sm:$0xc] %vm1492, %v2156
    %v2163 = vrot.slane %v1373, 6
    %v2165 = vrot.slane %v1369, 6
    %v2167 = vsel %vm359, %v2163, %v2165
    %2168 = vrot.lane.b32.xlu0 %v2156, 32
    %v2169 = vpop.permute.xlu0 %2168
    %v2170 = vsel %vm361, %v2169, 0
    %2172 = vmatprep.subr.mxu0 %v1378
    %2173 = vmatpush1.msra.mxu0 %v1377
    %2174 = vmatprep.subr.mxu0 %v1380
    %2175 = vmatpush1.msra.mxu0 %v1379
    %2176 = vmatprep.subr.mxu0 %v1382
    %2177 = vmatpush1.msra.mxu0 %v1381
    %2178 = vmatprep.subr.mxu0 %v1384
    %2179 = vmatpush1.msra.mxu0 %v1383
    %2180 = vmatprep.subr.mxu0 0.0
    %2181 = vmatpush1.msra.mxu0 0.0
    %2182 = vmatprep.subr.mxu0 0.0
    %2183 = vmatpush1.msra.mxu0 0.0
    %2184 = vmatprep.subr.mxu0 0.0
    %2185 = vmatpush1.msra.mxu0 0.0
    %2186 = vmatprep.subr.mxu0 0.0
    %2187 = vmatpush1.msra.mxu0 0.0
    %2188 = vmatprep.subr.mxu0 0.0
    %2189 = vmatpush1.msra.mxu0 0.0
    %2190 = vmatprep.subr.mxu0 0.0
    %2191 = vmatpush1.msra.mxu0 0.0
    %2192 = vmatprep.subr.mxu0 0.0
    %2193 = vmatpush1.msra.mxu0 0.0
    %2194 = vmatprep.subr.mxu0 0.0
    %2195 = vmatpush1.msra.mxu0 0.0
    %2196 = vmatprep.subr.mxu0 0.0
    %2197 = vmatpush1.msra.mxu0 0.0
    %2198 = vmatprep.subr.mxu0 0.0
    %2199 = vmatpush1.msra.mxu0 0.0
    %2200 = vmatprep.subr.mxu0 0.0
    %2201 = vmatpush1.msra.mxu0 0.0
    %2202 = vmatprep.subr.mxu0 0.0
    %2203 = vmatpush1.msra.mxu0 0.0
    %2204 = vmatprep.subr.mxu0 0.0
    %2205 = vmatpush1.msra.mxu0 0.0
    %2206 = vmatprep.subr.mxu0 0.0
    %2207 = vmatpush1.msra.mxu0 0.0
    %2208 = vmatprep.subr.mxu0 0.0
    %2209 = vmatpush1.msra.mxu0 0.0
    %2210 = vmatprep.subr.mxu0 0.0
    %2211 = vmatpush1.msra.mxu0 0.0
    %2212 = vmatprep.subr.mxu0 0.0
    %2213 = vmatpush1.msra.mxu0 0.0
    %2214 = vmatprep.subr.mxu0 0.0
    %2215 = vmatpush1.msra.mxu0 0.0
    %2216 = vmatprep.subr.mxu0 0.0
    %2217 = vmatpush1.msra.mxu0 0.0
    %2218 = vmatprep.subr.mxu0 0.0
    %2219 = vmatpush1.msra.mxu0 0.0
    %2220 = vmatprep.subr.mxu0 0.0
    %2221 = vmatpush1.msra.mxu0 0.0
    %2222 = vmatprep.subr.mxu0 0.0
    %2223 = vmatpush1.msra.mxu0 0.0
    %2224 = vmatprep.subr.mxu0 0.0
    %2225 = vmatpush1.msra.mxu0 0.0
    %2226 = vmatprep.subr.mxu0 0.0
    %2227 = vmatpush1.msra.mxu0 0.0
    %2228 = vmatprep.subr.mxu0 0.0
    %2229 = vmatpush1.msra.mxu0 0.0
    %2230 = vmatprep.subr.mxu0 0.0
    %2231 = vmatpush1.msra.mxu0 0.0
    %2232 = vmatprep.subr.mxu0 0.0
    %2233 = vmatpush1.msra.mxu0 0.0
    %2234 = vmatprep.subr.mxu0 0.0
    %2235 = vmatpush1.msra.mxu0 0.0
    %2236 = vmatprep.mubr.f32.mxu0 0.0
    %2237 = vmatmul.mubr.f32.gmra.mrb[0].mxu0 %v2170
    %v2238 = vpop.f32.mrb[0].mxu0
    %v2239 = vadd.f32 0.0, %v2238
    %v2240 = vpop.f32.mrb[0].mxu0
    %v2241 = vadd.f32 0.0, %v2240
    %2242 = vdwg.mxu0
    %v2243 = vsel %vm437, %v2239, %v2241
    %v2244 = vadd.f32 %v2167, %v2243
    %v2245 = vxor.u32 %v2244, 2147483648
    %v2246 = vmul.f32 %v2245, 1.442695
    %v2247 = vpow.pop %v2246
    %v2248 = vadd.f32 %v2247, 1.0
    %v2249 = vrcp.pop %v2248
    %v2250 = vmul.f32 1.0, %v2249
    %v2251 = vtanh.pop %v2244
    %v2252 = vmul.f32 %v2250, %v2150
    %2254 = vrot.lane.b32.xlu0 %v2251, 64
    %v2255 = vpop.permute.xlu0 %2254
    %v2257 = vmul.f32 %v2250, %v2255
    %2259 = vrot.lane.b32.xlu0 %v2257, 32
    %v2260 = vpop.permute.xlu0 %2259
    %v2262 = vadd.f32 %v2252, %v2260
    %v2263 = vtanh.pop %v2262
    %2265 = vrot.lane.b32.xlu0 %v2263, 64
    %v2266 = vpop.permute.xlu0 %2265
    %v2268 = vmul.f32 %v2250, %v2266
    %2270 = vrot.lane.b32.xlu0 %v2268, 96
    %v2271 = vpop.permute.xlu0 %2270
    %2273 = vst.msk [vmem:[#allocation2 + $0xe] sm:$0x3] %vm1490, %v2271
    %2274 = vst.msk [vmem:[#allocation2 - $0x2] sm:$0xc] %vm1492, %v2268
    %v2275 = vld [vmem:[#allocation2] sm:$0xff]
    %v2276 = vld [vmem:[#allocation2 + $0x8] sm:$0xff]
    %v2277 = vld [vmem:[%s11] sm:$0xff]
    %v2278 = vld [vmem:[%s11 + $0x8] sm:$0xff]
    %v2279 = vld [vmem:[%s11 + $0x10] sm:$0xff]
    %v2280 = vld [vmem:[%s11 + $0x18] sm:$0xff]
    %v2281 = vld [vmem:[%s11 + $0x20] sm:$0xff]
    %v2282 = vld [vmem:[%s11 + $0x28] sm:$0xff]
    %v2283 = vld [vmem:[%s11 + $0x30] sm:$0xff]
    %v2284 = vld [vmem:[%s11 + $0x38] sm:$0xff]
    %v2285 = vld [vmem:[%s11 + $0x40] sm:$0xff]
    %v2286 = vld [vmem:[%s11 + $0x48] sm:$0xff]
    %v2287 = vld [vmem:[%s11 + $0x50] sm:$0xff]
    %v2288 = vld [vmem:[%s11 + $0x58] sm:$0xff]
    %v2289 = vld [vmem:[%s11 + $0x60] sm:$0xff]
    %v2290 = vld [vmem:[%s11 + $0x68] sm:$0xff]
    %v2291 = vld [vmem:[%s11 + $0x70] sm:$0xff]
    %v2292 = vld [vmem:[%s11 + $0x78] sm:$0xff]
    %v2293 = vld [vmem:[#allocation14] sm:$0x1]
    %v2295 = vlaneseq
    %v2296 = vshrl.u32 %v2295, 7
    %v2297 = vsub.s32 0, %v2296
    %v2298 = vrot.slane %v2293, %v2297
    %2300 = vmatprep.subr.mxu0 0.0
    %2301 = vmatpush1.msra.mxu0 %v2277
    %2302 = vmatprep.subr.mxu0 0.0
    %2303 = vmatpush1.msra.mxu0 %v2278
    %2304 = vmatprep.subr.mxu0 0.0
    %2305 = vmatpush1.msra.mxu0 %v2279
    %2306 = vmatprep.subr.mxu0 0.0
    %2307 = vmatpush1.msra.mxu0 %v2280
    %2308 = vmatprep.subr.mxu0 0.0
    %2309 = vmatpush1.msra.mxu0 %v2281
    %2310 = vmatprep.subr.mxu0 0.0
    %2311 = vmatpush1.msra.mxu0 %v2282
    %2312 = vmatprep.subr.mxu0 0.0
    %2313 = vmatpush1.msra.mxu0 %v2283
    %2314 = vmatprep.subr.mxu0 0.0
    %2315 = vmatpush1.msra.mxu0 %v2284
    %2316 = vmatprep.subr.mxu0 0.0
    %2317 = vmatpush1.msra.mxu0 %v2285
    %2318 = vmatprep.subr.mxu0 0.0
    %2319 = vmatpush1.msra.mxu0 %v2286
    %2320 = vmatprep.subr.mxu0 0.0
    %2321 = vmatpush1.msra.mxu0 %v2287
    %2322 = vmatprep.subr.mxu0 0.0
    %2323 = vmatpush1.msra.mxu0 %v2288
    %2324 = vmatprep.subr.mxu0 0.0
    %2325 = vmatpush1.msra.mxu0 %v2289
    %2326 = vmatprep.subr.mxu0 0.0
    %2327 = vmatpush1.msra.mxu0 %v2290
    %2328 = vmatprep.subr.mxu0 0.0
    %2329 = vmatpush1.msra.mxu0 %v2291
    %2330 = vmatprep.subr.mxu0 0.0
    %2331 = vmatpush1.msra.mxu0 %v2292
    %2332 = vmatprep.subr.mxu0 0.0
    %2333 = vmatpush1.msra.mxu0 0.0
    %2334 = vmatprep.subr.mxu0 0.0
    %2335 = vmatpush1.msra.mxu0 0.0
    %2336 = vmatprep.subr.mxu0 0.0
    %2337 = vmatpush1.msra.mxu0 0.0
    %2338 = vmatprep.subr.mxu0 0.0
    %2339 = vmatpush1.msra.mxu0 0.0
    %2340 = vmatprep.subr.mxu0 0.0
    %2341 = vmatpush1.msra.mxu0 0.0
    %2342 = vmatprep.subr.mxu0 0.0
    %2343 = vmatpush1.msra.mxu0 0.0
    %2344 = vmatprep.subr.mxu0 0.0
    %2345 = vmatpush1.msra.mxu0 0.0
    %2346 = vmatprep.subr.mxu0 0.0
    %2347 = vmatpush1.msra.mxu0 0.0
    %2348 = vmatprep.subr.mxu0 0.0
    %2349 = vmatpush1.msra.mxu0 0.0
    %2350 = vmatprep.subr.mxu0 0.0
    %2351 = vmatpush1.msra.mxu0 0.0
    %2352 = vmatprep.subr.mxu0 0.0
    %2353 = vmatpush1.msra.mxu0 0.0
    %2354 = vmatprep.subr.mxu0 0.0
    %2355 = vmatpush1.msra.mxu0 0.0
    %2356 = vmatprep.subr.mxu0 0.0
    %2357 = vmatpush1.msra.mxu0 0.0
    %2358 = vmatprep.subr.mxu0 0.0
    %2359 = vmatpush1.msra.mxu0 0.0
    %2360 = vmatprep.subr.mxu0 0.0
    %2361 = vmatpush1.msra.mxu0 0.0
    %2362 = vmatprep.subr.mxu0 0.0
    %2363 = vmatpush1.msra.mxu0 0.0
    %2364 = vmatprep.mubr.f32.mxu0 0.0
    %2365 = vmatmul.mubr.f32.gmra.mrb[0].mxu0 %v2275
    %v2366 = vpop.f32.mrb[0].mxu0
    %v2367 = vadd.f32 %v2298, %v2366
    %v2368 = vpop.f32.mrb[0].mxu0
    %2369 = vmatprep.mubr.f32.mxu0 0.0
    %2370 = vmatmul.mubr.f32.gmra.mrb[0].mxu0 %v2276
    %v2371 = vpop.f32.mrb[0].mxu0
    %v2372 = vadd.f32 %v2298, %v2371
    %v2373 = vpop.f32.mrb[0].mxu0
    %2374 = vdwg.mxu0
    %v2375 = vld [vmem:[%s2] sm:$0x3]
    %v2376 = vld [vmem:[%s13] sm:$0xff]
    %v2377 = vlaneseq
    %v2378 = vand.u32 %v2377, 127
    %v2381 = vunpack.c.l.s4 1966171168
    %v2382 = vunpack.c.0.s8 %v2381
    %v2383 = vlaneseq
    %v2384 = vshrl.u32 %v2383, 7
    %v2385 = vsub.s32 %v2382, %v2384
    %v2386 = vrot.slane %v2367, %v2385
    %v2387 = vcombine.high %v2386, %v2386
    %v2389 = vunpack.c.l.s4 1966171168
    %v2390 = vunpack.c.0.s8 %v2389
    %v2391 = vlaneseq
    %v2392 = vshrl.u32 %v2391, 7
    %v2393 = vsub.s32 %v2390, %v2392
    %v2394 = vrot.slane %v2386, %v2393
    %v2396 = vunpack.c.l.s4 1966171168
    %v2397 = vunpack.c.0.s8 %v2396
    %v2398 = vlaneseq
    %v2399 = vshrl.u32 %v2398, 7
    %v2400 = vsub.s32 %v2397, %v2399
    %v2401 = vrot.slane %v2387, %v2400
    %v2402 = vlaneseq
    %v2403 = vshrl.u32 %v2402, 7
    %v2404 = vsub.s32 0, %v2403
    %v2405 = vrot.slane %v2394, %v2404
    %v2406 = vlaneseq
    %v2407 = vshrl.u32 %v2406, 7
    %v2408 = vsub.s32 0, %v2407
    %v2409 = vrot.slane %v2401, %v2408
    %v2412 = vadd.f32 %v2405, %v2376
    %v2413 = vadd.f32 %v2409, %v2376
    %vm2414 = vcmask 64512
    %v2415 = vsel %vm2414, %v2412, -inf
    %2416 = vmax.xlane.f32.xlu0 %v2415
    %v2417 = vpop.xlane.xlu0 %2416
    %v2418 = vsel %vm2414, %v2413, -inf
    %2419 = vmax.xlane.f32.xlu0 %v2418
    %v2420 = vpop.xlane.xlu0 %2419
    %vm2421 = vcmp.eq.f32.partialorder %v2412, %v2417
    %vm2422 = vcmp.eq.f32.partialorder %v2413, %v2420
    %v2423 = vsel %vm2421, %v2378, 8
    %v2424 = vsel %vm2422, %v2378, 8
    %v2425 = vsel %vm2414, %v2423, 2147483647
    %v2426 = vand.u32 %v2425, 65535
    %v2427 = vshra.s32 %v2425, 16
    %v2428 = vcvt.s32.f32 %v2426
    %v2429 = vcvt.s32.f32 %v2427
    %2430 = vmin.xlane.f32.xlu0 %v2429
    %v2431 = vpop.xlane.xlu0 %2430
    %vm2432 = vcmp.eq.f32.partialorder %v2429, %v2431
    %v2433 = vsel %vm2432, %v2428, inf
    %2434 = vmin.xlane.f32.xlu0 %v2433
    %v2435 = vpop.xlane.xlu0 %2434
    %v2436 = vcvt.f32.s32 %v2435
    %v2437 = vcvt.f32.s32 %v2431
    %v2438 = vshll.u32 %v2437, 16
    %v2439 = vadd.s32 %v2438, %v2436
    %v2440 = vsel %vm2414, %v2424, 2147483647
    %v2441 = vand.u32 %v2440, 65535
    %v2442 = vshra.s32 %v2440, 16
    %v2443 = vcvt.s32.f32 %v2441
    %v2444 = vcvt.s32.f32 %v2442
    %2445 = vmin.xlane.f32.xlu0 %v2444
    %v2446 = vpop.xlane.xlu0 %2445
    %vm2447 = vcmp.eq.f32.partialorder %v2444, %v2446
    %v2448 = vsel %vm2447, %v2443, inf
    %2449 = vmin.xlane.f32.xlu0 %v2448
    %v2450 = vpop.xlane.xlu0 %2449
    %v2451 = vcvt.f32.s32 %v2450
    %v2452 = vcvt.f32.s32 %v2446
    %v2453 = vshll.u32 %v2452, 16
    %v2454 = vadd.s32 %v2453, %v2451
    %v2455 = vlaneseq
    %v2456 = vshrl.u32 %v2455, 7
    %v2457 = vsub.s32 2, %v2456
    %v2458 = vrot.slane %v2367, %v2457
    %2460 = vbcast.lane.b32.xlu0 %v2458, 256
    %v2461 = vpop.permute.xlu0 %2460
    %v2462 = vlaneseq
    %v2463 = vshrl.u32 %v2462, 7
    %v2464 = vsub.s32 3, %v2463
    %v2465 = vrot.slane %v2367, %v2464
    %2467 = vbcast.lane.b32.xlu0 %v2465, 256
    %v2468 = vpop.permute.xlu0 %2467
    %v2471 = vadd.f32 %v2417, %v2461
    %v2472 = vadd.f32 %v2420, %v2468
    %vm2473 = vcmp.gt.s32.totalorder %v2375, 1
    %v2474 = vsel %vm2473, 1, 0
    %2475 = vset.pattern.permute.xlu0 0
    %2476 = vperm.xlu0 %2475, %v2474
    %v2477 = vpop.permute.xlu0 %2476
    %vm2478 = vcmp.eq.s32.totalorder %v2477, 1
    %2481 = vset.pattern.permute.xlu0 0
    %2482 = vperm.xlu0 %2481, %v2471
    %v2483 = vpop.permute.xlu0 %2482
    %2484 = vset.pattern.permute.xlu0 0
    %2485 = vperm.xlu0 %2484, %v2472
    %v2486 = vpop.permute.xlu0 %2485
    %v2487 = vlaneseq
    %v2488 = vshrl.u32 %v2487, 7
    %v2489 = vsub.s32 %v2378, %v2488
    %v2490 = vrot.slane %v2483, %v2489
    %v2491 = vlaneseq
    %v2492 = vshrl.u32 %v2491, 7
    %v2493 = vsub.s32 %v2378, %v2492
    %v2494 = vrot.slane %v2486, %v2493
    %vm2495 = vcmask 1041409
    %v2496 = vsel %vm2495, %v2494, %v2490
    %v2498 = vsel %vm2478, %v2496, %v2367
    %v2501 = vunpack.c.l.s4 1966171168
    %v2502 = vunpack.c.0.s8 %v2501
    %v2503 = vlaneseq
    %v2504 = vshrl.u32 %v2503, 7
    %v2505 = vsub.s32 %v2502, %v2504
    %v2506 = vrot.slane %v2498, %v2505
    %v2507 = vcombine.high %v2506, %v2506
    %v2509 = vunpack.c.l.s4 1966171168
    %v2510 = vunpack.c.0.s8 %v2509
    %v2511 = vlaneseq
    %v2512 = vshrl.u32 %v2511, 7
    %v2513 = vsub.s32 %v2510, %v2512
    %v2514 = vrot.slane %v2506, %v2513
    %v2516 = vunpack.c.l.s4 1966171168
    %v2517 = vunpack.c.0.s8 %v2516
    %v2518 = vlaneseq
    %v2519 = vshrl.u32 %v2518, 7
    %v2520 = vsub.s32 %v2517, %v2519
    %v2521 = vrot.slane %v2507, %v2520
    %v2522 = vlaneseq
    %v2523 = vshrl.u32 %v2522, 7
    %v2524 = vsub.s32 0, %v2523
    %v2525 = vrot.slane %v2514, %v2524
    %v2526 = vlaneseq
    %v2527 = vshrl.u32 %v2526, 7
    %v2528 = vsub.s32 0, %v2527
    %v2529 = vrot.slane %v2521, %v2528
    %v2532 = vadd.f32 %v2525, %v2376
    %v2533 = vadd.f32 %v2529, %v2376
    %v2534 = vsel %vm2414, %v2532, -inf
    %2535 = vmax.xlane.f32.xlu0 %v2534
    %v2536 = vpop.xlane.xlu0 %2535
    %v2537 = vsel %vm2414, %v2533, -inf
    %2538 = vmax.xlane.f32.xlu0 %v2537
    %v2539 = vpop.xlane.xlu0 %2538
    %vm2540 = vcmp.eq.f32.partialorder %v2532, %v2536
    %vm2541 = vcmp.eq.f32.partialorder %v2533, %v2539
    %v2542 = vsel %vm2540, %v2378, 8
    %v2543 = vsel %vm2541, %v2378, 8
    %v2544 = vsel %vm2414, %v2542, 2147483647
    %v2545 = vand.u32 %v2544, 65535
    %v2546 = vshra.s32 %v2544, 16
    %v2547 = vcvt.s32.f32 %v2545
    %v2548 = vcvt.s32.f32 %v2546
    %2549 = vmin.xlane.f32.xlu0 %v2548
    %v2550 = vpop.xlane.xlu0 %2549
    %vm2551 = vcmp.eq.f32.partialorder %v2548, %v2550
    %v2552 = vsel %vm2551, %v2547, inf
    %2553 = vmin.xlane.f32.xlu0 %v2552
    %v2554 = vpop.xlane.xlu0 %2553
    %v2555 = vcvt.f32.s32 %v2554
    %v2556 = vcvt.f32.s32 %v2550
    %v2557 = vshll.u32 %v2556, 16
    %v2558 = vadd.s32 %v2557, %v2555
    %v2559 = vsel %vm2414, %v2543, 2147483647
    %v2560 = vand.u32 %v2559, 65535
    %v2561 = vshra.s32 %v2559, 16
    %v2562 = vcvt.s32.f32 %v2560
    %v2563 = vcvt.s32.f32 %v2561
    %2564 = vmin.xlane.f32.xlu0 %v2563
    %v2565 = vpop.xlane.xlu0 %2564
    %vm2566 = vcmp.eq.f32.partialorder %v2563, %v2565
    %v2567 = vsel %vm2566, %v2562, inf
    %2568 = vmin.xlane.f32.xlu0 %v2567
    %v2569 = vpop.xlane.xlu0 %2568
    %v2570 = vcvt.f32.s32 %v2569
    %v2571 = vcvt.f32.s32 %v2565
    %v2572 = vshll.u32 %v2571, 16
    %v2573 = vadd.s32 %v2572, %v2570
    %v2574 = vlaneseq
    %v2575 = vshrl.u32 %v2574, 7
    %v2576 = vsub.s32 4, %v2575
    %v2577 = vrot.slane %v2367, %v2576
    %2579 = vbcast.lane.b32.xlu0 %v2577, 256
    %v2580 = vpop.permute.xlu0 %2579
    %v2581 = vlaneseq
    %v2582 = vshrl.u32 %v2581, 7
    %v2583 = vsub.s32 5, %v2582
    %v2584 = vrot.slane %v2367, %v2583
    %2586 = vbcast.lane.b32.xlu0 %v2584, 256
    %v2587 = vpop.permute.xlu0 %2586
    %v2590 = vadd.f32 %v2536, %v2580
    %v2591 = vadd.f32 %v2539, %v2587
    %vm2592 = vcmp.gt.s32.totalorder %v2375, 2
    %v2593 = vsel %vm2592, 1, 0
    %2594 = vset.pattern.permute.xlu0 0
    %2595 = vperm.xlu0 %2594, %v2593
    %v2596 = vpop.permute.xlu0 %2595
    %vm2597 = vcmp.eq.s32.totalorder %v2596, 1
    %2600 = vset.pattern.permute.xlu0 0
    %2601 = vperm.xlu0 %2600, %v2590
    %v2602 = vpop.permute.xlu0 %2601
    %2603 = vset.pattern.permute.xlu0 0
    %2604 = vperm.xlu0 %2603, %v2591
    %v2605 = vpop.permute.xlu0 %2604
    %v2606 = vlaneseq
    %v2607 = vshrl.u32 %v2606, 7
    %v2608 = vsub.s32 %v2378, %v2607
    %v2609 = vrot.slane %v2602, %v2608
    %v2610 = vlaneseq
    %v2611 = vshrl.u32 %v2610, 7
    %v2612 = vsub.s32 %v2378, %v2611
    %v2613 = vrot.slane %v2605, %v2612
    %v2614 = vsel %vm2495, %v2613, %v2609
    %v2616 = vsel %vm2597, %v2614, %v2498
    %v2619 = vunpack.c.l.s4 1966171168
    %v2620 = vunpack.c.0.s8 %v2619
    %v2621 = vlaneseq
    %v2622 = vshrl.u32 %v2621, 7
    %v2623 = vsub.s32 %v2620, %v2622
    %v2624 = vrot.slane %v2616, %v2623
    %v2625 = vcombine.high %v2624, %v2624
    %v2627 = vunpack.c.l.s4 1966171168
    %v2628 = vunpack.c.0.s8 %v2627
    %v2629 = vlaneseq
    %v2630 = vshrl.u32 %v2629, 7
    %v2631 = vsub.s32 %v2628, %v2630
    %v2632 = vrot.slane %v2624, %v2631
    %v2634 = vunpack.c.l.s4 1966171168
    %v2635 = vunpack.c.0.s8 %v2634
    %v2636 = vlaneseq
    %v2637 = vshrl.u32 %v2636, 7
    %v2638 = vsub.s32 %v2635, %v2637
    %v2639 = vrot.slane %v2625, %v2638
    %v2640 = vlaneseq
    %v2641 = vshrl.u32 %v2640, 7
    %v2642 = vsub.s32 0, %v2641
    %v2643 = vrot.slane %v2632, %v2642
    %v2644 = vlaneseq
    %v2645 = vshrl.u32 %v2644, 7
    %v2646 = vsub.s32 0, %v2645
    %v2647 = vrot.slane %v2639, %v2646
    %v2650 = vadd.f32 %v2643, %v2376
    %v2651 = vadd.f32 %v2647, %v2376
    %v2652 = vsel %vm2414, %v2650, -inf
    %2653 = vmax.xlane.f32.xlu0 %v2652
    %v2654 = vpop.xlane.xlu0 %2653
    %v2655 = vsel %vm2414, %v2651, -inf
    %2656 = vmax.xlane.f32.xlu0 %v2655
    %v2657 = vpop.xlane.xlu0 %2656
    %vm2658 = vcmp.eq.f32.partialorder %v2650, %v2654
    %vm2659 = vcmp.eq.f32.partialorder %v2651, %v2657
    %v2660 = vsel %vm2658, %v2378, 8
    %v2661 = vsel %vm2659, %v2378, 8
    %v2662 = vsel %vm2414, %v2660, 2147483647
    %v2663 = vand.u32 %v2662, 65535
    %v2664 = vshra.s32 %v2662, 16
    %v2665 = vcvt.s32.f32 %v2663
    %v2666 = vcvt.s32.f32 %v2664
    %2667 = vmin.xlane.f32.xlu0 %v2666
    %v2668 = vpop.xlane.xlu0 %2667
    %vm2669 = vcmp.eq.f32.partialorder %v2666, %v2668
    %v2670 = vsel %vm2669, %v2665, inf
    %2671 = vmin.xlane.f32.xlu0 %v2670
    %v2672 = vpop.xlane.xlu0 %2671
    %v2673 = vcvt.f32.s32 %v2672
    %v2674 = vcvt.f32.s32 %v2668
    %v2675 = vshll.u32 %v2674, 16
    %v2676 = vadd.s32 %v2675, %v2673
    %v2677 = vsel %vm2414, %v2661, 2147483647
    %v2678 = vand.u32 %v2677, 65535
    %v2679 = vshra.s32 %v2677, 16
    %v2680 = vcvt.s32.f32 %v2678
    %v2681 = vcvt.s32.f32 %v2679
    %2682 = vmin.xlane.f32.xlu0 %v2681
    %v2683 = vpop.xlane.xlu0 %2682
    %vm2684 = vcmp.eq.f32.partialorder %v2681, %v2683
    %v2685 = vsel %vm2684, %v2680, inf
    %2686 = vmin.xlane.f32.xlu0 %v2685
    %v2687 = vpop.xlane.xlu0 %2686
    %v2688 = vcvt.f32.s32 %v2687
    %v2689 = vcvt.f32.s32 %v2683
    %v2690 = vshll.u32 %v2689, 16
    %v2691 = vadd.s32 %v2690, %v2688
    %v2692 = vlaneseq
    %v2693 = vshrl.u32 %v2692, 7
    %v2694 = vsub.s32 6, %v2693
    %v2695 = vrot.slane %v2367, %v2694
    %2697 = vbcast.lane.b32.xlu0 %v2695, 256
    %v2698 = vpop.permute.xlu0 %2697
    %v2699 = vlaneseq
    %v2700 = vshrl.u32 %v2699, 7
    %v2701 = vsub.s32 7, %v2700
    %v2702 = vrot.slane %v2367, %v2701
    %2704 = vbcast.lane.b32.xlu0 %v2702, 256
    %v2705 = vpop.permute.xlu0 %2704
    %v2708 = vadd.f32 %v2654, %v2698
    %v2709 = vadd.f32 %v2657, %v2705
    %vm2710 = vcmp.gt.s32.totalorder %v2375, 3
    %v2711 = vsel %vm2710, 1, 0
    %2712 = vset.pattern.permute.xlu0 0
    %2713 = vperm.xlu0 %2712, %v2711
    %v2714 = vpop.permute.xlu0 %2713
    %vm2715 = vcmp.eq.s32.totalorder %v2714, 1
    %2718 = vset.pattern.permute.xlu0 0
    %2719 = vperm.xlu0 %2718, %v2708
    %v2720 = vpop.permute.xlu0 %2719
    %2721 = vset.pattern.permute.xlu0 0
    %2722 = vperm.xlu0 %2721, %v2709
    %v2723 = vpop.permute.xlu0 %2722
    %v2724 = vlaneseq
    %v2725 = vshrl.u32 %v2724, 7
    %v2726 = vsub.s32 %v2378, %v2725
    %v2727 = vrot.slane %v2720, %v2726
    %v2728 = vlaneseq
    %v2729 = vshrl.u32 %v2728, 7
    %v2730 = vsub.s32 %v2378, %v2729
    %v2731 = vrot.slane %v2723, %v2730
    %v2732 = vsel %vm2495, %v2731, %v2727
    %v2734 = vsel %vm2715, %v2732, %v2616
    %v2737 = vunpack.c.l.s4 1966171168
    %v2738 = vunpack.c.0.s8 %v2737
    %v2739 = vlaneseq
    %v2740 = vshrl.u32 %v2739, 7
    %v2741 = vsub.s32 %v2738, %v2740
    %v2742 = vrot.slane %v2734, %v2741
    %v2743 = vcombine.high %v2742, %v2742
    %v2745 = vunpack.c.l.s4 1966171168
    %v2746 = vunpack.c.0.s8 %v2745
    %v2747 = vlaneseq
    %v2748 = vshrl.u32 %v2747, 7
    %v2749 = vsub.s32 %v2746, %v2748
    %v2750 = vrot.slane %v2742, %v2749
    %v2752 = vunpack.c.l.s4 1966171168
    %v2753 = vunpack.c.0.s8 %v2752
    %v2754 = vlaneseq
    %v2755 = vshrl.u32 %v2754, 7
    %v2756 = vsub.s32 %v2753, %v2755
    %v2757 = vrot.slane %v2743, %v2756
    %v2758 = vlaneseq
    %v2759 = vshrl.u32 %v2758, 7
    %v2760 = vsub.s32 0, %v2759
    %v2761 = vrot.slane %v2750, %v2760
    %v2762 = vlaneseq
    %v2763 = vshrl.u32 %v2762, 7
    %v2764 = vsub.s32 0, %v2763
    %v2765 = vrot.slane %v2757, %v2764
    %v2768 = vadd.f32 %v2761, %v2376
    %v2769 = vadd.f32 %v2765, %v2376
    %v2770 = vsel %vm2414, %v2768, -inf
    %2771 = vmax.xlane.f32.xlu0 %v2770
    %v2772 = vpop.xlane.xlu0 %2771
    %v2773 = vsel %vm2414, %v2769, -inf
    %2774 = vmax.xlane.f32.xlu0 %v2773
    %v2775 = vpop.xlane.xlu0 %2774
    %vm2776 = vcmp.eq.f32.partialorder %v2768, %v2772
    %vm2777 = vcmp.eq.f32.partialorder %v2769, %v2775
    %v2778 = vsel %vm2776, %v2378, 8
    %v2779 = vsel %vm2777, %v2378, 8
    %v2780 = vsel %vm2414, %v2778, 2147483647
    %v2781 = vand.u32 %v2780, 65535
    %v2782 = vshra.s32 %v2780, 16
    %v2783 = vcvt.s32.f32 %v2781
    %v2784 = vcvt.s32.f32 %v2782
    %2785 = vmin.xlane.f32.xlu0 %v2784
    %v2786 = vpop.xlane.xlu0 %2785
    %vm2787 = vcmp.eq.f32.partialorder %v2784, %v2786
    %v2788 = vsel %vm2787, %v2783, inf
    %2789 = vmin.xlane.f32.xlu0 %v2788
    %v2790 = vpop.xlane.xlu0 %2789
    %v2791 = vcvt.f32.s32 %v2790
    %v2792 = vcvt.f32.s32 %v2786
    %v2793 = vshll.u32 %v2792, 16
    %v2794 = vadd.s32 %v2793, %v2791
    %v2795 = vsel %vm2414, %v2779, 2147483647
    %v2796 = vand.u32 %v2795, 65535
    %v2797 = vshra.s32 %v2795, 16
    %v2798 = vcvt.s32.f32 %v2796
    %v2799 = vcvt.s32.f32 %v2797
    %2800 = vmin.xlane.f32.xlu0 %v2799
    %v2801 = vpop.xlane.xlu0 %2800
    %vm2802 = vcmp.eq.f32.partialorder %v2799, %v2801
    %v2803 = vsel %vm2802, %v2798, inf
    %2804 = vmin.xlane.f32.xlu0 %v2803
    %v2805 = vpop.xlane.xlu0 %2804
    %v2806 = vcvt.f32.s32 %v2805
    %v2807 = vcvt.f32.s32 %v2801
    %v2808 = vshll.u32 %v2807, 16
    %v2809 = vadd.s32 %v2808, %v2806
    %v2811 = vlaneseq
    %v2812 = vshrl.u32 %v2811, 7
    %v2813 = vsub.s32 0, %v2812
    %v2814 = vrot.slane %v2372, %v2813
    %2816 = vbcast.lane.b32.xlu0 %v2814, 256
    %v2817 = vpop.permute.xlu0 %2816
    %v2818 = vlaneseq
    %v2819 = vshrl.u32 %v2818, 7
    %v2820 = vsub.s32 1, %v2819
    %v2821 = vrot.slane %v2372, %v2820
    %2823 = vbcast.lane.b32.xlu0 %v2821, 256
    %v2824 = vpop.permute.xlu0 %2823
    %v2827 = vadd.f32 %v2772, %v2817
    %v2828 = vadd.f32 %v2775, %v2824
    %vm2829 = vcmp.gt.s32.totalorder %v2375, 4
    %v2830 = vsel %vm2829, 1, 0
    %2831 = vset.pattern.permute.xlu0 0
    %2832 = vperm.xlu0 %2831, %v2830
    %v2833 = vpop.permute.xlu0 %2832
    %vm2834 = vcmp.eq.s32.totalorder %v2833, 1
    %2837 = vset.pattern.permute.xlu0 0
    %2838 = vperm.xlu0 %2837, %v2827
    %v2839 = vpop.permute.xlu0 %2838
    %2840 = vset.pattern.permute.xlu0 0
    %2841 = vperm.xlu0 %2840, %v2828
    %v2842 = vpop.permute.xlu0 %2841
    %v2843 = vlaneseq
    %v2844 = vshrl.u32 %v2843, 7
    %v2845 = vsub.s32 %v2378, %v2844
    %v2846 = vrot.slane %v2839, %v2845
    %v2847 = vlaneseq
    %v2848 = vshrl.u32 %v2847, 7
    %v2849 = vsub.s32 %v2378, %v2848
    %v2850 = vrot.slane %v2842, %v2849
    %v2851 = vsel %vm2495, %v2850, %v2846
    %v2853 = vsel %vm2834, %v2851, %v2734
    %v2856 = vunpack.c.l.s4 1966171168
    %v2857 = vunpack.c.0.s8 %v2856
    %v2858 = vlaneseq
    %v2859 = vshrl.u32 %v2858, 7
    %v2860 = vsub.s32 %v2857, %v2859
    %v2861 = vrot.slane %v2853, %v2860
    %v2862 = vcombine.high %v2861, %v2861
    %v2864 = vunpack.c.l.s4 1966171168
    %v2865 = vunpack.c.0.s8 %v2864
    %v2866 = vlaneseq
    %v2867 = vshrl.u32 %v2866, 7
    %v2868 = vsub.s32 %v2865, %v2867
    %v2869 = vrot.slane %v2861, %v2868
    %v2871 = vunpack.c.l.s4 1966171168
    %v2872 = vunpack.c.0.s8 %v2871
    %v2873 = vlaneseq
    %v2874 = vshrl.u32 %v2873, 7
    %v2875 = vsub.s32 %v2872, %v2874
    %v2876 = vrot.slane %v2862, %v2875
    %v2877 = vlaneseq
    %v2878 = vshrl.u32 %v2877, 7
    %v2879 = vsub.s32 0, %v2878
    %v2880 = vrot.slane %v2869, %v2879
    %v2881 = vlaneseq
    %v2882 = vshrl.u32 %v2881, 7
    %v2883 = vsub.s32 0, %v2882
    %v2884 = vrot.slane %v2876, %v2883
    %v2887 = vadd.f32 %v2880, %v2376
    %v2888 = vadd.f32 %v2884, %v2376
    %v2889 = vsel %vm2414, %v2887, -inf
    %2890 = vmax.xlane.f32.xlu0 %v2889
    %v2891 = vpop.xlane.xlu0 %2890
    %v2892 = vsel %vm2414, %v2888, -inf
    %2893 = vmax.xlane.f32.xlu0 %v2892
    %v2894 = vpop.xlane.xlu0 %2893
    %vm2895 = vcmp.eq.f32.partialorder %v2887, %v2891
    %vm2896 = vcmp.eq.f32.partialorder %v2888, %v2894
    %v2897 = vsel %vm2895, %v2378, 8
    %v2898 = vsel %vm2896, %v2378, 8
    %v2899 = vsel %vm2414, %v2897, 2147483647
    %v2900 = vand.u32 %v2899, 65535
    %v2901 = vshra.s32 %v2899, 16
    %v2902 = vcvt.s32.f32 %v2900
    %v2903 = vcvt.s32.f32 %v2901
    %2904 = vmin.xlane.f32.xlu0 %v2903
    %v2905 = vpop.xlane.xlu0 %2904
    %vm2906 = vcmp.eq.f32.partialorder %v2903, %v2905
    %v2907 = vsel %vm2906, %v2902, inf
    %2908 = vmin.xlane.f32.xlu0 %v2907
    %v2909 = vpop.xlane.xlu0 %2908
    %v2910 = vcvt.f32.s32 %v2909
    %v2911 = vcvt.f32.s32 %v2905
    %v2912 = vshll.u32 %v2911, 16
    %v2913 = vadd.s32 %v2912, %v2910
    %v2914 = vsel %vm2414, %v2898, 2147483647
    %v2915 = vand.u32 %v2914, 65535
    %v2916 = vshra.s32 %v2914, 16
    %v2917 = vcvt.s32.f32 %v2915
    %v2918 = vcvt.s32.f32 %v2916
    %2919 = vmin.xlane.f32.xlu0 %v2918
    %v2920 = vpop.xlane.xlu0 %2919
    %vm2921 = vcmp.eq.f32.partialorder %v2918, %v2920
    %v2922 = vsel %vm2921, %v2917, inf
    %2923 = vmin.xlane.f32.xlu0 %v2922
    %v2924 = vpop.xlane.xlu0 %2923
    %v2925 = vcvt.f32.s32 %v2924
    %v2926 = vcvt.f32.s32 %v2920
    %v2927 = vshll.u32 %v2926, 16
    %v2928 = vadd.s32 %v2927, %v2925
    %v2929 = vlaneseq
    %v2930 = vshrl.u32 %v2929, 7
    %v2931 = vsub.s32 2, %v2930
    %v2932 = vrot.slane %v2372, %v2931
    %2934 = vbcast.lane.b32.xlu0 %v2932, 256
    %v2935 = vpop.permute.xlu0 %2934
    %v2936 = vlaneseq
    %v2937 = vshrl.u32 %v2936, 7
    %v2938 = vsub.s32 3, %v2937
    %v2939 = vrot.slane %v2372, %v2938
    %2941 = vbcast.lane.b32.xlu0 %v2939, 256
    %v2942 = vpop.permute.xlu0 %2941
    %v2945 = vadd.f32 %v2891, %v2935
    %v2946 = vadd.f32 %v2894, %v2942
    %vm2947 = vcmp.gt.s32.totalorder %v2375, 5
    %v2948 = vsel %vm2947, 1, 0
    %2949 = vset.pattern.permute.xlu0 0
    %2950 = vperm.xlu0 %2949, %v2948
    %v2951 = vpop.permute.xlu0 %2950
    %vm2952 = vcmp.eq.s32.totalorder %v2951, 1
    %2955 = vset.pattern.permute.xlu0 0
    %2956 = vperm.xlu0 %2955, %v2945
    %v2957 = vpop.permute.xlu0 %2956
    %2958 = vset.pattern.permute.xlu0 0
    %2959 = vperm.xlu0 %2958, %v2946
    %v2960 = vpop.permute.xlu0 %2959
    %v2961 = vlaneseq
    %v2962 = vshrl.u32 %v2961, 7
    %v2963 = vsub.s32 %v2378, %v2962
    %v2964 = vrot.slane %v2957, %v2963
    %v2965 = vlaneseq
    %v2966 = vshrl.u32 %v2965, 7
    %v2967 = vsub.s32 %v2378, %v2966
    %v2968 = vrot.slane %v2960, %v2967
    %v2969 = vsel %vm2495, %v2968, %v2964
    %v2971 = vsel %vm2952, %v2969, %v2853
    %v2974 = vunpack.c.l.s4 1966171168
    %v2975 = vunpack.c.0.s8 %v2974
    %v2976 = vlaneseq
    %v2977 = vshrl.u32 %v2976, 7
    %v2978 = vsub.s32 %v2975, %v2977
    %v2979 = vrot.slane %v2971, %v2978
    %v2980 = vcombine.high %v2979, %v2979
    %v2982 = vunpack.c.l.s4 1966171168
    %v2983 = vunpack.c.0.s8 %v2982
    %v2984 = vlaneseq
    %v2985 = vshrl.u32 %v2984, 7
    %v2986 = vsub.s32 %v2983, %v2985
    %v2987 = vrot.slane %v2979, %v2986
    %v2989 = vunpack.c.l.s4 1966171168
    %v2990 = vunpack.c.0.s8 %v2989
    %v2991 = vlaneseq
    %v2992 = vshrl.u32 %v2991, 7
    %v2993 = vsub.s32 %v2990, %v2992
    %v2994 = vrot.slane %v2980, %v2993
    %v2995 = vlaneseq
    %v2996 = vshrl.u32 %v2995, 7
    %v2997 = vsub.s32 0, %v2996
    %v2998 = vrot.slane %v2987, %v2997
    %v2999 = vlaneseq
    %v3000 = vshrl.u32 %v2999, 7
    %v3001 = vsub.s32 0, %v3000
    %v3002 = vrot.slane %v2994, %v3001
    %v3005 = vadd.f32 %v2998, %v2376
    %v3006 = vadd.f32 %v3002, %v2376
    %v3007 = vsel %vm2414, %v3005, -inf
    %3008 = vmax.xlane.f32.xlu0 %v3007
    %v3009 = vpop.xlane.xlu0 %3008
    %v3010 = vsel %vm2414, %v3006, -inf
    %3011 = vmax.xlane.f32.xlu0 %v3010
    %v3012 = vpop.xlane.xlu0 %3011
    %vm3013 = vcmp.eq.f32.partialorder %v3005, %v3009
    %vm3014 = vcmp.eq.f32.partialorder %v3006, %v3012
    %v3015 = vsel %vm3013, %v2378, 8
    %v3016 = vsel %vm3014, %v2378, 8
    %v3017 = vsel %vm2414, %v3015, 2147483647
    %v3018 = vand.u32 %v3017, 65535
    %v3019 = vshra.s32 %v3017, 16
    %v3020 = vcvt.s32.f32 %v3018
    %v3021 = vcvt.s32.f32 %v3019
    %3022 = vmin.xlane.f32.xlu0 %v3021
    %v3023 = vpop.xlane.xlu0 %3022
    %vm3024 = vcmp.eq.f32.partialorder %v3021, %v3023
    %v3025 = vsel %vm3024, %v3020, inf
    %3026 = vmin.xlane.f32.xlu0 %v3025
    %v3027 = vpop.xlane.xlu0 %3026
    %v3028 = vcvt.f32.s32 %v3027
    %v3029 = vcvt.f32.s32 %v3023
    %v3030 = vshll.u32 %v3029, 16
    %v3031 = vadd.s32 %v3030, %v3028
    %v3032 = vsel %vm2414, %v3016, 2147483647
    %v3033 = vand.u32 %v3032, 65535
    %v3034 = vshra.s32 %v3032, 16
    %v3035 = vcvt.s32.f32 %v3033
    %v3036 = vcvt.s32.f32 %v3034
    %3037 = vmin.xlane.f32.xlu0 %v3036
    %v3038 = vpop.xlane.xlu0 %3037
    %vm3039 = vcmp.eq.f32.partialorder %v3036, %v3038
    %v3040 = vsel %vm3039, %v3035, inf
    %3041 = vmin.xlane.f32.xlu0 %v3040
    %v3042 = vpop.xlane.xlu0 %3041
    %v3043 = vcvt.f32.s32 %v3042
    %v3044 = vcvt.f32.s32 %v3038
    %v3045 = vshll.u32 %v3044, 16
    %v3046 = vadd.s32 %v3045, %v3043
    %v3047 = vlaneseq
    %v3048 = vshrl.u32 %v3047, 7
    %v3049 = vsub.s32 4, %v3048
    %v3050 = vrot.slane %v2372, %v3049
    %3052 = vbcast.lane.b32.xlu0 %v3050, 256
    %v3053 = vpop.permute.xlu0 %3052
    %v3054 = vlaneseq
    %v3055 = vshrl.u32 %v3054, 7
    %v3056 = vsub.s32 5, %v3055
    %v3057 = vrot.slane %v2372, %v3056
    %3059 = vbcast.lane.b32.xlu0 %v3057, 256
    %v3060 = vpop.permute.xlu0 %3059
    %v3063 = vadd.f32 %v3009, %v3053
    %v3064 = vadd.f32 %v3012, %v3060
    %vm3065 = vcmp.gt.s32.totalorder %v2375, 6
    %v3066 = vsel %vm3065, 1, 0
    %3067 = vset.pattern.permute.xlu0 0
    %3068 = vperm.xlu0 %3067, %v3066
    %v3069 = vpop.permute.xlu0 %3068
    %vm3070 = vcmp.eq.s32.totalorder %v3069, 1
    %3073 = vset.pattern.permute.xlu0 0
    %3074 = vperm.xlu0 %3073, %v3063
    %v3075 = vpop.permute.xlu0 %3074
    %3076 = vset.pattern.permute.xlu0 0
    %3077 = vperm.xlu0 %3076, %v3064
    %v3078 = vpop.permute.xlu0 %3077
    %v3079 = vlaneseq
    %v3080 = vshrl.u32 %v3079, 7
    %v3081 = vsub.s32 %v2378, %v3080
    %v3082 = vrot.slane %v3075, %v3081
    %v3083 = vlaneseq
    %v3084 = vshrl.u32 %v3083, 7
    %v3085 = vsub.s32 %v2378, %v3084
    %v3086 = vrot.slane %v3078, %v3085
    %v3087 = vsel %vm2495, %v3086, %v3082
    %v3089 = vsel %vm3070, %v3087, %v2971
    %v3092 = vunpack.c.l.s4 1966171168
    %v3093 = vunpack.c.0.s8 %v3092
    %v3094 = vlaneseq
    %v3095 = vshrl.u32 %v3094, 7
    %v3096 = vsub.s32 %v3093, %v3095
    %v3097 = vrot.slane %v3089, %v3096
    %v3098 = vcombine.high %v3097, %v3097
    %v3100 = vunpack.c.l.s4 1966171168
    %v3101 = vunpack.c.0.s8 %v3100
    %v3102 = vlaneseq
    %v3103 = vshrl.u32 %v3102, 7
    %v3104 = vsub.s32 %v3101, %v3103
    %v3105 = vrot.slane %v3097, %v3104
    %v3107 = vunpack.c.l.s4 1966171168
    %v3108 = vunpack.c.0.s8 %v3107
    %v3109 = vlaneseq
    %v3110 = vshrl.u32 %v3109, 7
    %v3111 = vsub.s32 %v3108, %v3110
    %v3112 = vrot.slane %v3098, %v3111
    %v3113 = vlaneseq
    %v3114 = vshrl.u32 %v3113, 7
    %v3115 = vsub.s32 0, %v3114
    %v3116 = vrot.slane %v3105, %v3115
    %v3117 = vlaneseq
    %v3118 = vshrl.u32 %v3117, 7
    %v3119 = vsub.s32 0, %v3118
    %v3120 = vrot.slane %v3112, %v3119
    %v3123 = vadd.f32 %v3116, %v2376
    %v3124 = vadd.f32 %v3120, %v2376
    %v3125 = vsel %vm2414, %v3123, -inf
    %3126 = vmax.xlane.f32.xlu0 %v3125
    %v3127 = vpop.xlane.xlu0 %3126
    %v3128 = vsel %vm2414, %v3124, -inf
    %3129 = vmax.xlane.f32.xlu0 %v3128
    %v3130 = vpop.xlane.xlu0 %3129
    %vm3131 = vcmp.eq.f32.partialorder %v3123, %v3127
    %vm3132 = vcmp.eq.f32.partialorder %v3124, %v3130
    %v3133 = vsel %vm3131, %v2378, 8
    %v3134 = vsel %vm3132, %v2378, 8
    %v3135 = vsel %vm2414, %v3133, 2147483647
    %v3136 = vand.u32 %v3135, 65535
    %v3137 = vshra.s32 %v3135, 16
    %v3138 = vcvt.s32.f32 %v3136
    %v3139 = vcvt.s32.f32 %v3137
    %3140 = vmin.xlane.f32.xlu0 %v3139
    %v3141 = vpop.xlane.xlu0 %3140
    %vm3142 = vcmp.eq.f32.partialorder %v3139, %v3141
    %v3143 = vsel %vm3142, %v3138, inf
    %3144 = vmin.xlane.f32.xlu0 %v3143
    %v3145 = vpop.xlane.xlu0 %3144
    %v3146 = vcvt.f32.s32 %v3145
    %v3147 = vcvt.f32.s32 %v3141
    %v3148 = vshll.u32 %v3147, 16
    %v3149 = vadd.s32 %v3148, %v3146
    %v3150 = vsel %vm2414, %v3134, 2147483647
    %v3151 = vand.u32 %v3150, 65535
    %v3152 = vshra.s32 %v3150, 16
    %v3153 = vcvt.s32.f32 %v3151
    %v3154 = vcvt.s32.f32 %v3152
    %3155 = vmin.xlane.f32.xlu0 %v3154
    %v3156 = vpop.xlane.xlu0 %3155
    %vm3157 = vcmp.eq.f32.partialorder %v3154, %v3156
    %v3158 = vsel %vm3157, %v3153, inf
    %3159 = vmin.xlane.f32.xlu0 %v3158
    %v3160 = vpop.xlane.xlu0 %3159
    %v3161 = vcvt.f32.s32 %v3160
    %v3162 = vcvt.f32.s32 %v3156
    %v3163 = vshll.u32 %v3162, 16
    %v3164 = vadd.s32 %v3163, %v3161
    %v3165 = vlaneseq
    %v3166 = vshrl.u32 %v3165, 7
    %v3167 = vsub.s32 6, %v3166
    %v3168 = vrot.slane %v2372, %v3167
    %3170 = vbcast.lane.b32.xlu0 %v3168, 256
    %v3171 = vpop.permute.xlu0 %3170
    %v3172 = vlaneseq
    %v3173 = vshrl.u32 %v3172, 7
    %v3174 = vsub.s32 7, %v3173
    %v3175 = vrot.slane %v2372, %v3174
    %3177 = vbcast.lane.b32.xlu0 %v3175, 256
    %v3178 = vpop.permute.xlu0 %3177
    %v3181 = vadd.f32 %v3127, %v3171
    %v3182 = vadd.f32 %v3130, %v3178
    %vm3183 = vcmp.gt.s32.totalorder %v2375, 7
    %v3184 = vsel %vm3183, 1, 0
    %3185 = vset.pattern.permute.xlu0 0
    %3186 = vperm.xlu0 %3185, %v3184
    %v3187 = vpop.permute.xlu0 %3186
    %vm3188 = vcmp.eq.s32.totalorder %v3187, 1
    %3191 = vset.pattern.permute.xlu0 0
    %3192 = vperm.xlu0 %3191, %v3181
    %v3193 = vpop.permute.xlu0 %3192
    %3194 = vset.pattern.permute.xlu0 0
    %3195 = vperm.xlu0 %3194, %v3182
    %v3196 = vpop.permute.xlu0 %3195
    %v3197 = vlaneseq
    %v3198 = vshrl.u32 %v3197, 7
    %v3199 = vsub.s32 %v2378, %v3198
    %v3200 = vrot.slane %v3193, %v3199
    %v3201 = vlaneseq
    %v3202 = vshrl.u32 %v3201, 7
    %v3203 = vsub.s32 %v2378, %v3202
    %v3204 = vrot.slane %v3196, %v3203
    %v3205 = vsel %vm2495, %v3204, %v3200
    %v3207 = vsel %vm3188, %v3205, %v3089
    %vm3208 = vcmask 58368
    %v3209 = vsel %vm3208, %v3207, -inf
    %3210 = vmax.xlane.f32.xlu0 %v3209
    %v3211 = vpop.xlane.xlu0 %3210
    %vm3212 = vcmp.eq.f32.partialorder %v3207, %v3211
    %v3213 = vsel %vm3212, %v2378, 8
    %v3214 = vsel %vm3208, %v3213, 2147483647
    %v3215 = vand.u32 %v3214, 65535
    %v3216 = vshra.s32 %v3214, 16
    %v3217 = vcvt.s32.f32 %v3215
    %v3218 = vcvt.s32.f32 %v3216
    %3219 = vmin.xlane.f32.xlu0 %v3218
    %v3220 = vpop.xlane.xlu0 %3219
    %vm3221 = vcmp.eq.f32.partialorder %v3218, %v3220
    %v3222 = vsel %vm3221, %v3217, inf
    %3223 = vmin.xlane.f32.xlu0 %v3222
    %v3224 = vpop.xlane.xlu0 %3223
    %v3225 = vcvt.f32.s32 %v3224
    %v3226 = vcvt.f32.s32 %v3220
    %v3227 = vshll.u32 %v3226, 16
    %v3228 = vadd.s32 %v3227, %v3225
    %vm3229 = vcmask 1024
    %3230 = vst.msk [vmem:[%s15] sm:$0x3] %vm3229, %v3211
    %vm3231 = vcmp.eq.s32.totalorder %v2378, %v3228
    %v3232 = vcvt.s32.f32 %v3149
    %v3233 = vcvt.s32.f32 %v3164
    %v3236 = vlaneseq
    %v3237 = vshrl.u32 %v3236, 7
    %v3238 = vsub.s32 %v2378, %v3237
    %v3239 = vrot.slane %v3232, %v3238
    %v3240 = vlaneseq
    %v3241 = vshrl.u32 %v3240, 7
    %v3242 = vsub.s32 %v2378, %v3241
    %v3243 = vrot.slane %v3233, %v3242
    %v3244 = vsel %vm2495, %v3243, %v3239
    %v3246 = vsel %vm3231, %v3244, 0.0
    %v3247 = vsel %vm3208, %v3246, 0.0
    %3248 = vadd.xlane.f32.xlu0 %v3247
    %v3249 = vpop.xlane.xlu0 %3248
    %v3250 = vcvt.f32.s32.to.zero.pseudo %v3249
    %v3251 = vsub.s32 %v2375, 1
    %vm3252 = vcmp.eq.s32.totalorder %v3251, 7
    %vm3253 = vcmp.gt.s32.totalorder %v3251, 7
    %v3254 = vsel %vm3253, %v3250, %v3228
    %v3255 = vsel %vm3252, %v3228, %v3254
    %v3256 = vsel %vm3183, %v3255, 0
    %vm3257 = vcmp.eq.s32.totalorder %v2378, 7
    %3258 = vset.pattern.permute.xlu0 0
    %3259 = vperm.xlu0 %3258, %v3256
    %v3260 = vpop.permute.xlu0 %3259
    %v3261 = vsel %vm3257, %v3260, 0
    %3262 = vset.pattern.permute.xlu0 0
    %3263 = vperm.xlu0 %3262, %v3255
    %v3264 = vpop.permute.xlu0 %3263
    %vm3265 = vcmp.eq.s32.totalorder %v2378, %v3264
    %v3266 = vsel %vm3265, %v3244, 0.0
    %v3267 = vsel %vm3208, %v3266, 0.0
    %3268 = vadd.xlane.f32.xlu0 %v3267
    %v3269 = vpop.xlane.xlu0 %3268
    %v3270 = vcvt.f32.s32.to.zero.pseudo %v3269
    %vm3271 = vcmp.eq.s32.totalorder %v3251, 6
    %vm3272 = vcmp.gt.s32.totalorder %v3251, 6
    %v3273 = vsel %vm3272, %v3270, %v3255
    %v3274 = vsel %vm3271, %v3228, %v3273
    %v3275 = vsel %vm3065, %v3274, 0
    %vm3276 = vcmp.eq.s32.totalorder %v2378, 6
    %3277 = vset.pattern.permute.xlu0 0
    %3278 = vperm.xlu0 %3277, %v3275
    %v3279 = vpop.permute.xlu0 %3278
    %v3280 = vsel %vm3276, %v3279, %v3261
    %3281 = vset.pattern.permute.xlu0 0
    %3282 = vperm.xlu0 %3281, %v3274
    %v3283 = vpop.permute.xlu0 %3282
    %vm3284 = vcmp.eq.s32.totalorder %v2378, %v3283
    %v3285 = vcvt.s32.f32 %v3031
    %v3286 = vcvt.s32.f32 %v3046
    %v3289 = vlaneseq
    %v3290 = vshrl.u32 %v3289, 7
    %v3291 = vsub.s32 %v2378, %v3290
    %v3292 = vrot.slane %v3285, %v3291
    %v3293 = vlaneseq
    %v3294 = vshrl.u32 %v3293, 7
    %v3295 = vsub.s32 %v2378, %v3294
    %v3296 = vrot.slane %v3286, %v3295
    %v3297 = vsel %vm2495, %v3296, %v3292
    %v3299 = vsel %vm3284, %v3297, 0.0
    %v3300 = vsel %vm3208, %v3299, 0.0
    %3301 = vadd.xlane.f32.xlu0 %v3300
    %v3302 = vpop.xlane.xlu0 %3301
    %v3303 = vcvt.f32.s32.to.zero.pseudo %v3302
    %vm3304 = vcmp.eq.s32.totalorder %v3251, 5
    %vm3305 = vcmp.gt.s32.totalorder %v3251, 5
    %v3306 = vsel %vm3305, %v3303, %v3274
    %v3307 = vsel %vm3304, %v3228, %v3306
    %v3308 = vsel %vm2947, %v3307, 0
    %vm3309 = vcmp.eq.s32.totalorder %v2378, 5
    %3310 = vset.pattern.permute.xlu0 0
    %3311 = vperm.xlu0 %3310, %v3308
    %v3312 = vpop.permute.xlu0 %3311
    %v3313 = vsel %vm3309, %v3312, %v3280
    %3314 = vset.pattern.permute.xlu0 0
    %3315 = vperm.xlu0 %3314, %v3307
    %v3316 = vpop.permute.xlu0 %3315
    %vm3317 = vcmp.eq.s32.totalorder %v2378, %v3316
    %v3318 = vcvt.s32.f32 %v2913
    %v3319 = vcvt.s32.f32 %v2928
    %v3322 = vlaneseq
    %v3323 = vshrl.u32 %v3322, 7
    %v3324 = vsub.s32 %v2378, %v3323
    %v3325 = vrot.slane %v3318, %v3324
    %v3326 = vlaneseq
    %v3327 = vshrl.u32 %v3326, 7
    %v3328 = vsub.s32 %v2378, %v3327
    %v3329 = vrot.slane %v3319, %v3328
    %v3330 = vsel %vm2495, %v3329, %v3325
    %v3332 = vsel %vm3317, %v3330, 0.0
    %v3333 = vsel %vm3208, %v3332, 0.0
    %3334 = vadd.xlane.f32.xlu0 %v3333
    %v3335 = vpop.xlane.xlu0 %3334
    %v3336 = vcvt.f32.s32.to.zero.pseudo %v3335
    %vm3337 = vcmp.eq.s32.totalorder %v3251, 4
    %vm3338 = vcmp.gt.s32.totalorder %v3251, 4
    %v3339 = vsel %vm3338, %v3336, %v3307
    %v3340 = vsel %vm3337, %v3228, %v3339
    %v3341 = vsel %vm2829, %v3340, 0
    %vm3342 = vcmp.eq.s32.totalorder %v2378, 4
    %3343 = vset.pattern.permute.xlu0 0
    %3344 = vperm.xlu0 %3343, %v3341
    %v3345 = vpop.permute.xlu0 %3344
    %v3346 = vsel %vm3342, %v3345, %v3313
    %3347 = vset.pattern.permute.xlu0 0
    %3348 = vperm.xlu0 %3347, %v3340
    %v3349 = vpop.permute.xlu0 %3348
    %vm3350 = vcmp.eq.s32.totalorder %v2378, %v3349
    %v3351 = vcvt.s32.f32 %v2794
    %v3352 = vcvt.s32.f32 %v2809
    %v3355 = vlaneseq
    %v3356 = vshrl.u32 %v3355, 7
    %v3357 = vsub.s32 %v2378, %v3356
    %v3358 = vrot.slane %v3351, %v3357
    %v3359 = vlaneseq
    %v3360 = vshrl.u32 %v3359, 7
    %v3361 = vsub.s32 %v2378, %v3360
    %v3362 = vrot.slane %v3352, %v3361
    %v3363 = vsel %vm2495, %v3362, %v3358
    %v3365 = vsel %vm3350, %v3363, 0.0
    %v3366 = vsel %vm3208, %v3365, 0.0
    %3367 = vadd.xlane.f32.xlu0 %v3366
    %v3368 = vpop.xlane.xlu0 %3367
    %v3369 = vcvt.f32.s32.to.zero.pseudo %v3368
    %vm3370 = vcmp.eq.s32.totalorder %v3251, 3
    %vm3371 = vcmp.gt.s32.totalorder %v3251, 3
    %v3372 = vsel %vm3371, %v3369, %v3340
    %v3373 = vsel %vm3370, %v3228, %v3372
    %v3374 = vsel %vm2710, %v3373, 0
    %vm3375 = vcmp.eq.s32.totalorder %v2378, 3
    %3376 = vset.pattern.permute.xlu0 0
    %3377 = vperm.xlu0 %3376, %v3374
    %v3378 = vpop.permute.xlu0 %3377
    %v3379 = vsel %vm3375, %v3378, %v3346
    %3380 = vset.pattern.permute.xlu0 0
    %3381 = vperm.xlu0 %3380, %v3373
    %v3382 = vpop.permute.xlu0 %3381
    %vm3383 = vcmp.eq.s32.totalorder %v2378, %v3382
    %v3384 = vcvt.s32.f32 %v2676
    %v3385 = vcvt.s32.f32 %v2691
    %v3388 = vlaneseq
    %v3389 = vshrl.u32 %v3388, 7
    %v3390 = vsub.s32 %v2378, %v3389
    %v3391 = vrot.slane %v3384, %v3390
    %v3392 = vlaneseq
    %v3393 = vshrl.u32 %v3392, 7
    %v3394 = vsub.s32 %v2378, %v3393
    %v3395 = vrot.slane %v3385, %v3394
    %v3396 = vsel %vm2495, %v3395, %v3391
    %v3398 = vsel %vm3383, %v3396, 0.0
    %v3399 = vsel %vm3208, %v3398, 0.0
    %3400 = vadd.xlane.f32.xlu0 %v3399
    %v3401 = vpop.xlane.xlu0 %3400
    %v3402 = vcvt.f32.s32.to.zero.pseudo %v3401
    %vm3403 = vcmp.eq.s32.totalorder %v3251, 2
    %vm3404 = vcmp.gt.s32.totalorder %v3251, 2
    %v3405 = vsel %vm3404, %v3402, %v3373
    %v3406 = vsel %vm3403, %v3228, %v3405
    %v3407 = vsel %vm2592, %v3406, 0
    %vm3408 = vcmp.eq.s32.totalorder %v2378, 2
    %3409 = vset.pattern.permute.xlu0 0
    %3410 = vperm.xlu0 %3409, %v3407
    %v3411 = vpop.permute.xlu0 %3410
    %v3412 = vsel %vm3408, %v3411, %v3379
    %3413 = vset.pattern.permute.xlu0 0
    %3414 = vperm.xlu0 %3413, %v3406
    %v3415 = vpop.permute.xlu0 %3414
    %vm3416 = vcmp.eq.s32.totalorder %v2378, %v3415
    %v3417 = vcvt.s32.f32 %v2558
    %v3418 = vcvt.s32.f32 %v2573
    %v3421 = vlaneseq
    %v3422 = vshrl.u32 %v3421, 7
    %v3423 = vsub.s32 %v2378, %v3422
    %v3424 = vrot.slane %v3417, %v3423
    %v3425 = vlaneseq
    %v3426 = vshrl.u32 %v3425, 7
    %v3427 = vsub.s32 %v2378, %v3426
    %v3428 = vrot.slane %v3418, %v3427
    %v3429 = vsel %vm2495, %v3428, %v3424
    %v3431 = vsel %vm3416, %v3429, 0.0
    %v3432 = vsel %vm3208, %v3431, 0.0
    %3433 = vadd.xlane.f32.xlu0 %v3432
    %v3434 = vpop.xlane.xlu0 %3433
    %v3435 = vcvt.f32.s32.to.zero.pseudo %v3434
    %vm3436 = vcmp.eq.s32.totalorder %v3251, 1
    %vm3437 = vcmp.gt.s32.totalorder %v3251, 1
    %v3438 = vsel %vm3437, %v3435, %v3406
    %v3439 = vsel %vm3436, %v3228, %v3438
    %v3440 = vsel %vm2473, %v3439, 0
    %vm3441 = vcmp.eq.s32.totalorder %v2378, 1
    %3442 = vset.pattern.permute.xlu0 0
    %3443 = vperm.xlu0 %3442, %v3440
    %v3444 = vpop.permute.xlu0 %3443
    %v3445 = vsel %vm3441, %v3444, %v3412
    %3446 = vset.pattern.permute.xlu0 0
    %3447 = vperm.xlu0 %3446, %v3439
    %v3448 = vpop.permute.xlu0 %3447
    %vm3449 = vcmp.eq.s32.totalorder %v2378, %v3448
    %v3450 = vcvt.s32.f32 %v2439
    %v3451 = vcvt.s32.f32 %v2454
    %v3454 = vlaneseq
    %v3455 = vshrl.u32 %v3454, 7
    %v3456 = vsub.s32 %v2378, %v3455
    %v3457 = vrot.slane %v3450, %v3456
    %v3458 = vlaneseq
    %v3459 = vshrl.u32 %v3458, 7
    %v3460 = vsub.s32 %v2378, %v3459
    %v3461 = vrot.slane %v3451, %v3460
    %v3462 = vsel %vm2495, %v3461, %v3457
    %v3464 = vsel %vm3449, %v3462, 0.0
    %v3465 = vsel %vm3208, %v3464, 0.0
    %3466 = vadd.xlane.f32.xlu0 %v3465
    %v3467 = vpop.xlane.xlu0 %3466
    %v3468 = vcvt.f32.s32.to.zero.pseudo %v3467
    %vm3469 = vcmp.eq.s32.totalorder %v3251, 0
    %vm3470 = vcmp.gt.s32.totalorder %v3251, 0
    %v3471 = vsel %vm3470, %v3468, %v3439
    %v3472 = vsel %vm3469, %v3228, %v3471
    %vm3473 = vcmp.gt.s32.totalorder %v2375, 0
    %v3474 = vsel %vm3473, %v3472, 0
    %vm3475 = vcmp.eq.s32.totalorder %v2378, 0
    %3476 = vset.pattern.permute.xlu0 0
    %3477 = vperm.xlu0 %3476, %v3474
    %v3478 = vpop.permute.xlu0 %3477
    %v3479 = vsel %vm3475, %v3478, %v3445
    %3480 = vst.msk [vmem:[#allocation15] sm:$0x3] %vm3208, %v3479
    // Predicated region
    $region86: #{tpu_custom_call.1} parent=1 // pred_check
      _
    $region87: #{tpu_custom_call.1} parent=1 // pred_check_branch
      %3482 = sbr.rel (0) target = $region89
    $region88: #{tpu_custom_call.1} parent=1 // pred_region
      %s3484 = ssub.s32 32, 32
      %3485 = vsyncadd [#allocation5], %s3484
      %s3487 = sshll.u32 [#allocation15], 4
      %s3488 = int_to_ptr.vmem [resolvable:$true] %s3487
      %3490 = dma.vmem_to_hbm [thread:$0]  %s3488, 32, %s14, [#allocation5]
    $region89: #{tpu_custom_call.1} parent=1 // pred_fallthru
      _
    // Predicated region
    $region90: #{tpu_custom_call.1} parent=1 // pred_check
      _
    $region91: #{tpu_custom_call.1} parent=1 // pred_check_branch
      %3492 = sbr.rel (0) target = $region93
    $region92: #{tpu_custom_call.1} parent=1 // pred_region
      _
    $region93: #{tpu_custom_call.1} parent=1 // pred_fallthru
      _
    // Predicated region
    $region94: #{tpu_custom_call.1} parent=1 // pred_check
      _
    $region95: #{tpu_custom_call.1} parent=1 // pred_check_branch
      %3494 = sbr.rel (0) target = $region97
    $region96: #{tpu_custom_call.1} parent=1 // pred_region
      %3495 = dma.done [#allocation5], 32
    $region97: #{tpu_custom_call.1} parent=1 // pred_fallthru
      _
    // Predicated region
    $region98: #{tpu_custom_call.1} parent=1 // pred_check
      _
    $region99: #{tpu_custom_call.1} parent=1 // pred_check_branch
      %3497 = sbr.rel (0) target = $region101
    $region100: #{tpu_custom_call.1} parent=1 // pred_region
      _
    $region101: #{tpu_custom_call.1} parent=1 // pred_fallthru
      _
    %3498 = vsyncpa [#allocation4], 1
    %3499 = vsyncpa [#allocation7], 1
    %3500 = vsyncpa [#allocation10], 1
    %3501 = vsyncpa [#allocation13], 1
    %3502 = vsyncpa [#allocation5], 1

</llo_original>
